<compile_context>
chip_gen: v7x
topology: tpu7x:2x2x1
jax: 0.10.0
libtpu: 0.0.40
codegen_flags: <defaults>
</compile_context>

<pallas_src>
import functools

import jax
import jax.numpy as jnp
from jax.experimental import pallas as pl
from jax.experimental.pallas import tpu as pltpu

H1 = 128    # hidden size of lstm1 (fixed by the module)
H2 = 64     # hidden size of lstm2 (fixed by the module)
H2P = 128   # lstm2 hidden padded to a full vreg lane width for the recurrence


def lstm2_kernel(x_ref, wih1_ref, whh1_ref, w2t_ref, w2b_ref, wfc_ref, bfc_ref,
                 out_ref, *, T, B):
    # x_ref    : (T, B, C)       time-major input block (batch tile), bf16
    # wih1_ref : (C, 4*H1)       lstm1 input weights (transposed), bf16
    # whh1_ref : (H1, 4*H1)      lstm1 recurrent weights (transposed), bf16
    # w2t_ref  : (H1, 4*H2P)     lstm2 input weights, gate cols zero-padded, bf16
    # w2b_ref  : (H2P, 4*H2P)    lstm2 recurrent weights, rows+cols padded, bf16
    # wfc_ref  : (T*H2, NCP)     fc weights, natural t-major/h-minor rows, bf16
    # bfc_ref  : (1, NCP)        fc bias (zero-padded), f32
    # out_ref  : (B, NCP)        f32, lane-dense
    f32 = jnp.float32
    bf16 = jnp.bfloat16
    C = x_ref.shape[2]
    NCP = out_ref.shape[1]

    # ---- non-recurrent work hoisted off the serial path -------------------
    # One bf16 MXU matmul for ALL timesteps' layer-1 input gates.
    x2d = x_ref[...].reshape(T * B, C)                                  # bf16
    xg1 = jnp.dot(x2d, wih1_ref[...], preferred_element_type=f32)      # (T*B, 4*H1)

    whh1 = whh1_ref[...]
    w2t = w2t_ref[...]
    w2b = w2b_ref[...]
    wfc = wfc_ref[...]

    def gates_to_hc(gates, c, H):
        # PyTorch gate order: i, f, g, o (all slices 128-lane aligned). f32 math.
        i = jax.nn.sigmoid(gates[:, 0 * H:1 * H])
        f = jax.nn.sigmoid(gates[:, 1 * H:2 * H])
        g = jnp.tanh(gates[:, 2 * H:3 * H])
        o = jax.nn.sigmoid(gates[:, 3 * H:4 * H])
        c_new = f * c + i * g
        h_new = o * jnp.tanh(c_new)
        return h_new, c_new

    h1 = jnp.zeros((B, H1), f32)
    c1 = jnp.zeros((B, H1), f32)
    h2 = jnp.zeros((B, H2P), f32)   # padded lanes stay exactly 0
    c2 = jnp.zeros((B, H2P), f32)
    acc = jnp.zeros((B, NCP), f32)  # deferred-FC accumulator (O(1) VMEM in T)

    # Short fixed trip count -> static unroll (full scheduler visibility).
    # TODO(synk): for T beyond ~32 switch to lax.fori_loop(..., unroll=2..4)
    # indexing xg1/wfc with pl.ds(pl.multiple_of(...)) to bound vreg pressure.
    for t in range(T):
        # layer 1: only the recurrent bf16 matmul sits on the serial path.
        g1 = xg1[t * B:(t + 1) * B, :] + jnp.dot(
            h1.astype(bf16), whh1, preferred_element_type=f32)
        h1, c1 = gates_to_hc(g1, c1, H1)

        # layer 2: two K=128 bf16 dots (no per-step concatenate copy).
        g2 = (jnp.dot(h1.astype(bf16), w2t, preferred_element_type=f32)
              + jnp.dot(h2.astype(bf16), w2b, preferred_element_type=f32))
        h2, c2 = gates_to_hc(g2, c2, H2P)

        # FC folded into the loop: not on the recurrent dependence chain, so
        # it hides under the per-step MXU slack; uses only the real 64 lanes.
        acc = acc + jnp.dot(h2[:, :H2].astype(bf16),
                            wfc[t * H2:(t + 1) * H2, :],
                            preferred_element_type=f32)

    out_ref[...] = acc + bfc_ref[...]


def lstm2_forward(x, params):
    """x: (B, T, C) float32 (batch_first, like the PyTorch module)."""
    wih1, whh1, wih2, whh2, wfc, bfc = params   # PyTorch-layout parameters
    B, T, C = x.shape
    NC = wfc.shape[0]

    NCP = ((NC + 127) // 128) * 128          # classes padded to a lane multiple
    # Batch padded to 16 (bf16 sublane packing).  Above 128 rows, tile the
    # batch over a parallel grid axis (engages the second TensorCore on v7x;
    # harmless single-step grid on v5e/v6e and for small batches).
    if B <= 128:
        BP = ((B + 15) // 16) * 16
        BB = BP
    else:
        BB = 128
        BP = ((B + BB - 1) // BB) * BB
    grid = (BP // BB,)

    bf16 = jnp.bfloat16
    f32 = jnp.float32

    # ---- layout plumbing / zero-padding / bf16 casts in plain JAX ----------
    x_tm = jnp.transpose(x, (1, 0, 2)).astype(f32)               # (T, B, C)
    x_tm = jnp.pad(x_tm, ((0, 0), (0, BP - B), (0, 0))).astype(bf16)  # (T, BP, C)

    wih1_t = wih1.T.astype(bf16)                                 # (C, 4*H1)
    whh1_t = whh1.T.astype(bf16)                                 # (H1, 4*H1)

    def pad_gate_cols(w_t, h, hp):
        # (K, 4*h) -> (K, 4*hp), zero-padding each gate block from h to hp.
        K = w_t.shape[0]
        w4 = w_t.reshape(K, 4, h)
        return (jnp.zeros((K, 4, hp), w_t.dtype)
                .at[:, :, :h].set(w4).reshape(K, 4 * hp))

    w2_top = pad_gate_cols(wih2.T.astype(f32), H2, H2P).astype(bf16)   # (H1, 4*H2P)
    whh2_p = pad_gate_cols(whh2.T.astype(f32), H2, H2P)                # (H2, 4*H2P)
    w2_bot = (jnp.zeros((H2P, 4 * H2P), f32)
              .at[:H2, :].set(whh2_p)).astype(bf16)                    # (H2P, 4*H2P)

    # fc: PyTorch flatten of (B, T, 64) -> row index t*64 + h; no row padding.
    wfc_p = (jnp.zeros((T * H2, NCP), f32)
             .at[:, :NC].set(wfc.T.astype(f32))).astype(bf16)          # (T*H2, NCP)
    bfc_p = jnp.zeros((1, NCP), f32).at[0, :NC].set(bfc.astype(f32))

    # advisory cost estimate for XLA's scheduler
    flops = int(2 * T * BP * (C * 4 * H1 + H1 * 4 * H1
                              + (H1 + H2P) * 4 * H2P + H2 * NCP))
    transcendentals = int(5 * T * BP * (H1 + H2P))
    bytes_accessed = int(
        x_tm.size * 2 + wih1_t.size * 2 + whh1_t.size * 2 + w2_top.size * 2
        + w2_bot.size * 2 + wfc_p.size * 2 + bfc_p.size * 4 + BP * NCP * 4)

    out = pl.pallas_call(
        functools.partial(lstm2_kernel, T=T, B=BB),
        out_shape=jax.ShapeDtypeStruct((BP, NCP), jnp.float32),
        grid=grid,
        in_specs=[
            pl.BlockSpec((T, BB, C), lambda b: (0, b, 0)),       # x (batch tile)
            pl.BlockSpec((C, 4 * H1), lambda b: (0, 0)),          # wih1
            pl.BlockSpec((H1, 4 * H1), lambda b: (0, 0)),         # whh1
            pl.BlockSpec((H1, 4 * H2P), lambda b: (0, 0)),        # w2_top
            pl.BlockSpec((H2P, 4 * H2P), lambda b: (0, 0)),       # w2_bot
            pl.BlockSpec((T * H2, NCP), lambda b: (0, 0)),        # wfc
            pl.BlockSpec((1, NCP), lambda b: (0, 0)),             # bfc
        ],
        out_specs=pl.BlockSpec((BB, NCP), lambda b: (b, 0)),
        compiler_params=pltpu.CompilerParams(
            dimension_semantics=("parallel",),
            vmem_limit_bytes=32 * 1024 * 1024),
        cost_estimate=pl.CostEstimate(flops=flops,
                                      transcendentals=transcendentals,
                                      bytes_accessed=bytes_accessed),
    )(x_tm, wih1_t, whh1_t, w2_top, w2_bot, wfc_p, bfc_p)

    return out[:B, :NC]


def reference_forward(x, params):
    """Pure-JAX f32 reference matching torch.nn.LSTM (bias=False) + Linear."""
    wih1, whh1, wih2, whh2, wfc, bfc = params

    def run_lstm(seq, wih, whh, H):
        B = seq.shape[0]

        def cell(carry, x_t):
            h, c = carry
            gates = x_t @ wih.T + h @ whh.T
            i = jax.nn.sigmoid(gates[:, 0 * H:1 * H])
            f = jax.nn.sigmoid(gates[:, 1 * H:2 * H])
            g = jnp.tanh(gates[:, 2 * H:3 * H])
            o = jax.nn.sigmoid(gates[:, 3 * H:4 * H])
            c = f * c + i * g
            h = o * jnp.tanh(c)
            return (h, c), h

        init = (jnp.zeros((B, H), jnp.float32), jnp.zeros((B, H), jnp.float32))
        _, ys = jax.lax.scan(cell, init, jnp.transpose(seq, (1, 0, 2)))
        return jnp.transpose(ys, (1, 0, 2))

    y1 = run_lstm(x, wih1, whh1, H1)
    y2 = run_lstm(y1, wih2, whh2, H2)
    flat = y2.reshape(x.shape[0], -1)
    return flat @ wfc.T + bfc


def init_params(key, num_channel, length, num_classes):
    """Deterministic parameter init (PyTorch-style uniform(-1/sqrt(H), 1/sqrt(H)))."""
    ks = jax.random.split(key, 6)
    k1 = 1.0 / jnp.sqrt(float(H1))
    k2 = 1.0 / jnp.sqrt(float(H2))
    kf = 1.0 / jnp.sqrt(float(length * H2))
    wih1 = jax.random.uniform(ks[0], (4 * H1, num_channel), jnp.float32, -k1, k1)
    whh1 = jax.random.uniform(ks[1], (4 * H1, H1), jnp.float32, -k1, k1)
    wih2 = jax.random.uniform(ks[2], (4 * H2, H1), jnp.float32, -k2, k2)
    whh2 = jax.random.uniform(ks[3], (4 * H2, H2), jnp.float32, -k2, k2)
    wfc = jax.random.uniform(ks[4], (num_classes, length * H2), jnp.float32, -kf, kf)
    bfc = jax.random.uniform(ks[5], (num_classes,), jnp.float32, -kf, kf)
    return (wih1, whh1, wih2, whh2, wfc, bfc)


if __name__ == "__main__":
    # Small shapes consistent with the module's forward:
    #   x: (batch, length, num_channel), batch_first LSTM input.
    batch, length, num_channel, num_classes = 2, 8, 4, 10

    key = jax.random.PRNGKey(0)
    kx, kp = jax.random.split(key)
    x = jax.random.normal(kx, (batch, length, num_channel), jnp.float32)
    params = init_params(kp, num_channel, length, num_classes)

    out = lstm2_forward(x, params)
    out = jax.block_until_ready(out)

    ref = reference_forward(x, params)
    assert out.shape == (batch, num_classes)
    # bf16 MXU operands -> relaxed tolerance vs. the f32 reference.
    assert jnp.allclose(out, ref, atol=3e-2, rtol=3e-2), (
        f"max abs err {jnp.max(jnp.abs(out - ref))}")
    print("KERNEL_OK")
</pallas_src>

<mosaic_0001>
module attributes {stable_mosaic.version = 11 : i64} {
  func.func @lstm2_kernel(%arg0: i32, %arg1: memref<8x16x4xbf16, #tpu.memory_space<vmem>>, %arg2: memref<4x512xbf16, #tpu.memory_space<vmem>>, %arg3: memref<128x512xbf16, #tpu.memory_space<vmem>>, %arg4: memref<128x512xbf16, #tpu.memory_space<vmem>>, %arg5: memref<128x512xbf16, #tpu.memory_space<vmem>>, %arg6: memref<512x128xbf16, #tpu.memory_space<vmem>>, %arg7: memref<1x128xf32, #tpu.memory_space<vmem>>, %arg8: memref<16x128xf32, #tpu.memory_space<vmem>>) attributes {dimension_semantics = [#tpu.dimension_semantics<parallel>], iteration_bounds = array<i64: 1>, scalar_prefetch = 0 : i64, scratch_operands = 0 : i64, tpu.core_type = #tpu.core_type<tc>, window_params = [{transform_indices = @transform_0, window_bounds = array<i64: 8, 16, 4>}, {pipeline_mode = #tpu.pipeline_mode<synchronous>, transform_indices = @transform_1, window_bounds = array<i64: 4, 512>}, {pipeline_mode = #tpu.pipeline_mode<synchronous>, transform_indices = @transform_2, window_bounds = array<i64: 128, 512>}, {pipeline_mode = #tpu.pipeline_mode<synchronous>, transform_indices = @transform_3, window_bounds = array<i64: 128, 512>}, {pipeline_mode = #tpu.pipeline_mode<synchronous>, transform_indices = @transform_4, window_bounds = array<i64: 128, 512>}, {pipeline_mode = #tpu.pipeline_mode<synchronous>, transform_indices = @transform_5, window_bounds = array<i64: 512, 128>}, {pipeline_mode = #tpu.pipeline_mode<synchronous>, transform_indices = @transform_6, window_bounds = array<i64: 1, 128>}, {transform_indices = @transform_7, window_bounds = array<i64: 16, 128>}]} {
    %c0 = arith.constant 0 : index
    %c0_0 = arith.constant 0 : index
    %c0_1 = arith.constant 0 : index
    %0 = vector.load %arg1[%c0, %c0_0, %c0_1] : memref<8x16x4xbf16, #tpu.memory_space<vmem>>, vector<8x16x4xbf16>
    %1 = vector.shape_cast %0 : vector<8x16x4xbf16> to vector<128x4xbf16>
    %c0_2 = arith.constant 0 : index
    %c0_3 = arith.constant 0 : index
    %2 = vector.load %arg2[%c0_2, %c0_3] : memref<4x512xbf16, #tpu.memory_space<vmem>>, vector<4x512xbf16>
    %cst = arith.constant dense<0.000000e+00> : vector<128x512xf32>
    %3 = tpu.matmul %1, %2, %cst {dimension_numbers = #tpu.dot_dimension_numbers<[1], [0], [0], [1], [0, 0, 1, 1], [], []>} : vector<128x4xbf16>, vector<4x512xbf16>, vector<128x512xf32> -> vector<128x512xf32>
    %c0_4 = arith.constant 0 : index
    %c0_5 = arith.constant 0 : index
    %4 = vector.load %arg3[%c0_4, %c0_5] : memref<128x512xbf16, #tpu.memory_space<vmem>>, vector<128x512xbf16>
    %c0_6 = arith.constant 0 : index
    %c0_7 = arith.constant 0 : index
    %5 = vector.load %arg4[%c0_6, %c0_7] : memref<128x512xbf16, #tpu.memory_space<vmem>>, vector<128x512xbf16>
    %c0_8 = arith.constant 0 : index
    %c0_9 = arith.constant 0 : index
    %6 = vector.load %arg5[%c0_8, %c0_9] : memref<128x512xbf16, #tpu.memory_space<vmem>>, vector<128x512xbf16>
    %c0_10 = arith.constant 0 : index
    %c0_11 = arith.constant 0 : index
    %7 = vector.load %arg6[%c0_10, %c0_11] : memref<512x128xbf16, #tpu.memory_space<vmem>>, vector<512x128xbf16>
    %cst_12 = arith.constant 0.000000e+00 : f32
    %8 = vector.broadcast %cst_12 : f32 to vector<16x128xf32>
    %cst_13 = arith.constant 0.000000e+00 : f32
    %9 = vector.broadcast %cst_13 : f32 to vector<16x128xf32>
    %cst_14 = arith.constant 0.000000e+00 : f32
    %10 = vector.broadcast %cst_14 : f32 to vector<16x128xf32>
    %cst_15 = arith.constant 0.000000e+00 : f32
    %11 = vector.broadcast %cst_15 : f32 to vector<16x128xf32>
    %cst_16 = arith.constant 0.000000e+00 : f32
    %12 = vector.broadcast %cst_16 : f32 to vector<16x128xf32>
    %13 = vector.extract_strided_slice %3 {offsets = [0, 0], sizes = [16, 512], strides = [1, 1]} : vector<128x512xf32> to vector<16x512xf32>
    %14 = arith.truncf %8 : vector<16x128xf32> to vector<16x128xbf16>
    %cst_17 = arith.constant dense<0.000000e+00> : vector<16x512xf32>
    %15 = tpu.matmul %14, %4, %cst_17 {dimension_numbers = #tpu.dot_dimension_numbers<[1], [0], [0], [1], [0, 0, 1, 1], [], []>} : vector<16x128xbf16>, vector<128x512xbf16>, vector<16x512xf32> -> vector<16x512xf32>
    %16 = arith.addf %13, %15 : vector<16x512xf32>
    %17 = vector.extract_strided_slice %16 {offsets = [0, 0], sizes = [16, 128], strides = [1, 1]} : vector<16x512xf32> to vector<16x128xf32>
    %18 = arith.negf %17 : vector<16x128xf32>
    %19 = math.exp %18 : vector<16x128xf32>
    %cst_18 = arith.constant 1.000000e+00 : f32
    %20 = vector.broadcast %cst_18 : f32 to vector<16x128xf32>
    %21 = arith.addf %20, %19 : vector<16x128xf32>
    %22 = arith.divf %20, %21 : vector<16x128xf32>
    %23 = vector.extract_strided_slice %16 {offsets = [0, 128], sizes = [16, 128], strides = [1, 1]} : vector<16x512xf32> to vector<16x128xf32>
    %24 = arith.negf %23 : vector<16x128xf32>
    %25 = math.exp %24 : vector<16x128xf32>
    %cst_19 = arith.constant 1.000000e+00 : f32
    %26 = vector.broadcast %cst_19 : f32 to vector<16x128xf32>
    %27 = arith.addf %26, %25 : vector<16x128xf32>
    %28 = arith.divf %26, %27 : vector<16x128xf32>
    %29 = vector.extract_strided_slice %16 {offsets = [0, 256], sizes = [16, 128], strides = [1, 1]} : vector<16x512xf32> to vector<16x128xf32>
    %30 = math.tanh %29 : vector<16x128xf32>
    %31 = vector.extract_strided_slice %16 {offsets = [0, 384], sizes = [16, 128], strides = [1, 1]} : vector<16x512xf32> to vector<16x128xf32>
    %32 = arith.negf %31 : vector<16x128xf32>
    %33 = math.exp %32 : vector<16x128xf32>
    %cst_20 = arith.constant 1.000000e+00 : f32
    %34 = vector.broadcast %cst_20 : f32 to vector<16x128xf32>
    %35 = arith.addf %34, %33 : vector<16x128xf32>
    %36 = arith.divf %34, %35 : vector<16x128xf32>
    %37 = arith.mulf %28, %9 : vector<16x128xf32>
    %38 = arith.mulf %22, %30 : vector<16x128xf32>
    %39 = arith.addf %37, %38 : vector<16x128xf32>
    %40 = math.tanh %39 : vector<16x128xf32>
    %41 = arith.mulf %36, %40 : vector<16x128xf32>
    %42 = arith.truncf %41 : vector<16x128xf32> to vector<16x128xbf16>
    %cst_21 = arith.constant dense<0.000000e+00> : vector<16x512xf32>
    %43 = tpu.matmul %42, %5, %cst_21 {dimension_numbers = #tpu.dot_dimension_numbers<[1], [0], [0], [1], [0, 0, 1, 1], [], []>} : vector<16x128xbf16>, vector<128x512xbf16>, vector<16x512xf32> -> vector<16x512xf32>
    %44 = arith.truncf %10 : vector<16x128xf32> to vector<16x128xbf16>
    %cst_22 = arith.constant dense<0.000000e+00> : vector<16x512xf32>
    %45 = tpu.matmul %44, %6, %cst_22 {dimension_numbers = #tpu.dot_dimension_numbers<[1], [0], [0], [1], [0, 0, 1, 1], [], []>} : vector<16x128xbf16>, vector<128x512xbf16>, vector<16x512xf32> -> vector<16x512xf32>
    %46 = arith.addf %43, %45 : vector<16x512xf32>
    %47 = vector.extract_strided_slice %46 {offsets = [0, 0], sizes = [16, 128], strides = [1, 1]} : vector<16x512xf32> to vector<16x128xf32>
    %48 = arith.negf %47 : vector<16x128xf32>
    %49 = math.exp %48 : vector<16x128xf32>
    %cst_23 = arith.constant 1.000000e+00 : f32
    %50 = vector.broadcast %cst_23 : f32 to vector<16x128xf32>
    %51 = arith.addf %50, %49 : vector<16x128xf32>
    %52 = arith.divf %50, %51 : vector<16x128xf32>
    %53 = vector.extract_strided_slice %46 {offsets = [0, 128], sizes = [16, 128], strides = [1, 1]} : vector<16x512xf32> to vector<16x128xf32>
    %54 = arith.negf %53 : vector<16x128xf32>
    %55 = math.exp %54 : vector<16x128xf32>
    %cst_24 = arith.constant 1.000000e+00 : f32
    %56 = vector.broadcast %cst_24 : f32 to vector<16x128xf32>
    %57 = arith.addf %56, %55 : vector<16x128xf32>
    %58 = arith.divf %56, %57 : vector<16x128xf32>
    %59 = vector.extract_strided_slice %46 {offsets = [0, 256], sizes = [16, 128], strides = [1, 1]} : vector<16x512xf32> to vector<16x128xf32>
    %60 = math.tanh %59 : vector<16x128xf32>
    %61 = vector.extract_strided_slice %46 {offsets = [0, 384], sizes = [16, 128], strides = [1, 1]} : vector<16x512xf32> to vector<16x128xf32>
    %62 = arith.negf %61 : vector<16x128xf32>
    %63 = math.exp %62 : vector<16x128xf32>
    %cst_25 = arith.constant 1.000000e+00 : f32
    %64 = vector.broadcast %cst_25 : f32 to vector<16x128xf32>
    %65 = arith.addf %64, %63 : vector<16x128xf32>
    %66 = arith.divf %64, %65 : vector<16x128xf32>
    %67 = arith.mulf %58, %11 : vector<16x128xf32>
    %68 = arith.mulf %52, %60 : vector<16x128xf32>
    %69 = arith.addf %67, %68 : vector<16x128xf32>
    %70 = math.tanh %69 : vector<16x128xf32>
    %71 = arith.mulf %66, %70 : vector<16x128xf32>
    %72 = vector.extract_strided_slice %71 {offsets = [0, 0], sizes = [16, 64], strides = [1, 1]} : vector<16x128xf32> to vector<16x64xf32>
    %73 = arith.truncf %72 : vector<16x64xf32> to vector<16x64xbf16>
    %74 = vector.extract_strided_slice %7 {offsets = [0, 0], sizes = [64, 128], strides = [1, 1]} : vector<512x128xbf16> to vector<64x128xbf16>
    %cst_26 = arith.constant dense<0.000000e+00> : vector<16x128xf32>
    %75 = tpu.matmul %73, %74, %cst_26 {dimension_numbers = #tpu.dot_dimension_numbers<[1], [0], [0], [1], [0, 0, 1, 1], [], []>} : vector<16x64xbf16>, vector<64x128xbf16>, vector<16x128xf32> -> vector<16x128xf32>
    %76 = arith.addf %12, %75 : vector<16x128xf32>
    %77 = vector.extract_strided_slice %3 {offsets = [16, 0], sizes = [16, 512], strides = [1, 1]} : vector<128x512xf32> to vector<16x512xf32>
    %78 = arith.truncf %41 : vector<16x128xf32> to vector<16x128xbf16>
    %cst_27 = arith.constant dense<0.000000e+00> : vector<16x512xf32>
    %79 = tpu.matmul %78, %4, %cst_27 {dimension_numbers = #tpu.dot_dimension_numbers<[1], [0], [0], [1], [0, 0, 1, 1], [], []>} : vector<16x128xbf16>, vector<128x512xbf16>, vector<16x512xf32> -> vector<16x512xf32>
    %80 = arith.addf %77, %79 : vector<16x512xf32>
    %81 = vector.extract_strided_slice %80 {offsets = [0, 0], sizes = [16, 128], strides = [1, 1]} : vector<16x512xf32> to vector<16x128xf32>
    %82 = arith.negf %81 : vector<16x128xf32>
    %83 = math.exp %82 : vector<16x128xf32>
    %cst_28 = arith.constant 1.000000e+00 : f32
    %84 = vector.broadcast %cst_28 : f32 to vector<16x128xf32>
    %85 = arith.addf %84, %83 : vector<16x128xf32>
    %86 = arith.divf %84, %85 : vector<16x128xf32>
    %87 = vector.extract_strided_slice %80 {offsets = [0, 128], sizes = [16, 128], strides = [1, 1]} : vector<16x512xf32> to vector<16x128xf32>
    %88 = arith.negf %87 : vector<16x128xf32>
    %89 = math.exp %88 : vector<16x128xf32>
    %cst_29 = arith.constant 1.000000e+00 : f32
    %90 = vector.broadcast %cst_29 : f32 to vector<16x128xf32>
    %91 = arith.addf %90, %89 : vector<16x128xf32>
    %92 = arith.divf %90, %91 : vector<16x128xf32>
    %93 = vector.extract_strided_slice %80 {offsets = [0, 256], sizes = [16, 128], strides = [1, 1]} : vector<16x512xf32> to vector<16x128xf32>
    %94 = math.tanh %93 : vector<16x128xf32>
    %95 = vector.extract_strided_slice %80 {offsets = [0, 384], sizes = [16, 128], strides = [1, 1]} : vector<16x512xf32> to vector<16x128xf32>
    %96 = arith.negf %95 : vector<16x128xf32>
    %97 = math.exp %96 : vector<16x128xf32>
    %cst_30 = arith.constant 1.000000e+00 : f32
    %98 = vector.broadcast %cst_30 : f32 to vector<16x128xf32>
    %99 = arith.addf %98, %97 : vector<16x128xf32>
    %100 = arith.divf %98, %99 : vector<16x128xf32>
    %101 = arith.mulf %92, %39 : vector<16x128xf32>
    %102 = arith.mulf %86, %94 : vector<16x128xf32>
    %103 = arith.addf %101, %102 : vector<16x128xf32>
    %104 = math.tanh %103 : vector<16x128xf32>
    %105 = arith.mulf %100, %104 : vector<16x128xf32>
    %106 = arith.truncf %105 : vector<16x128xf32> to vector<16x128xbf16>
    %cst_31 = arith.constant dense<0.000000e+00> : vector<16x512xf32>
    %107 = tpu.matmul %106, %5, %cst_31 {dimension_numbers = #tpu.dot_dimension_numbers<[1], [0], [0], [1], [0, 0, 1, 1], [], []>} : vector<16x128xbf16>, vector<128x512xbf16>, vector<16x512xf32> -> vector<16x512xf32>
    %108 = arith.truncf %71 : vector<16x128xf32> to vector<16x128xbf16>
    %cst_32 = arith.constant dense<0.000000e+00> : vector<16x512xf32>
    %109 = tpu.matmul %108, %6, %cst_32 {dimension_numbers = #tpu.dot_dimension_numbers<[1], [0], [0], [1], [0, 0, 1, 1], [], []>} : vector<16x128xbf16>, vector<128x512xbf16>, vector<16x512xf32> -> vector<16x512xf32>
    %110 = arith.addf %107, %109 : vector<16x512xf32>
    %111 = vector.extract_strided_slice %110 {offsets = [0, 0], sizes = [16, 128], strides = [1, 1]} : vector<16x512xf32> to vector<16x128xf32>
    %112 = arith.negf %111 : vector<16x128xf32>
    %113 = math.exp %112 : vector<16x128xf32>
    %cst_33 = arith.constant 1.000000e+00 : f32
    %114 = vector.broadcast %cst_33 : f32 to vector<16x128xf32>
    %115 = arith.addf %114, %113 : vector<16x128xf32>
    %116 = arith.divf %114, %115 : vector<16x128xf32>
    %117 = vector.extract_strided_slice %110 {offsets = [0, 128], sizes = [16, 128], strides = [1, 1]} : vector<16x512xf32> to vector<16x128xf32>
    %118 = arith.negf %117 : vector<16x128xf32>
    %119 = math.exp %118 : vector<16x128xf32>
    %cst_34 = arith.constant 1.000000e+00 : f32
    %120 = vector.broadcast %cst_34 : f32 to vector<16x128xf32>
    %121 = arith.addf %120, %119 : vector<16x128xf32>
    %122 = arith.divf %120, %121 : vector<16x128xf32>
    %123 = vector.extract_strided_slice %110 {offsets = [0, 256], sizes = [16, 128], strides = [1, 1]} : vector<16x512xf32> to vector<16x128xf32>
    %124 = math.tanh %123 : vector<16x128xf32>
    %125 = vector.extract_strided_slice %110 {offsets = [0, 384], sizes = [16, 128], strides = [1, 1]} : vector<16x512xf32> to vector<16x128xf32>
    %126 = arith.negf %125 : vector<16x128xf32>
    %127 = math.exp %126 : vector<16x128xf32>
    %cst_35 = arith.constant 1.000000e+00 : f32
    %128 = vector.broadcast %cst_35 : f32 to vector<16x128xf32>
    %129 = arith.addf %128, %127 : vector<16x128xf32>
    %130 = arith.divf %128, %129 : vector<16x128xf32>
    %131 = arith.mulf %122, %69 : vector<16x128xf32>
    %132 = arith.mulf %116, %124 : vector<16x128xf32>
    %133 = arith.addf %131, %132 : vector<16x128xf32>
    %134 = math.tanh %133 : vector<16x128xf32>
    %135 = arith.mulf %130, %134 : vector<16x128xf32>
    %136 = vector.extract_strided_slice %135 {offsets = [0, 0], sizes = [16, 64], strides = [1, 1]} : vector<16x128xf32> to vector<16x64xf32>
    %137 = arith.truncf %136 : vector<16x64xf32> to vector<16x64xbf16>
    %138 = vector.extract_strided_slice %7 {offsets = [64, 0], sizes = [64, 128], strides = [1, 1]} : vector<512x128xbf16> to vector<64x128xbf16>
    %cst_36 = arith.constant dense<0.000000e+00> : vector<16x128xf32>
    %139 = tpu.matmul %137, %138, %cst_36 {dimension_numbers = #tpu.dot_dimension_numbers<[1], [0], [0], [1], [0, 0, 1, 1], [], []>} : vector<16x64xbf16>, vector<64x128xbf16>, vector<16x128xf32> -> vector<16x128xf32>
    %140 = arith.addf %76, %139 : vector<16x128xf32>
    %141 = vector.extract_strided_slice %3 {offsets = [32, 0], sizes = [16, 512], strides = [1, 1]} : vector<128x512xf32> to vector<16x512xf32>
    %142 = arith.truncf %105 : vector<16x128xf32> to vector<16x128xbf16>
    %cst_37 = arith.constant dense<0.000000e+00> : vector<16x512xf32>
    %143 = tpu.matmul %142, %4, %cst_37 {dimension_numbers = #tpu.dot_dimension_numbers<[1], [0], [0], [1], [0, 0, 1, 1], [], []>} : vector<16x128xbf16>, vector<128x512xbf16>, vector<16x512xf32> -> vector<16x512xf32>
    %144 = arith.addf %141, %143 : vector<16x512xf32>
    %145 = vector.extract_strided_slice %144 {offsets = [0, 0], sizes = [16, 128], strides = [1, 1]} : vector<16x512xf32> to vector<16x128xf32>
    %146 = arith.negf %145 : vector<16x128xf32>
    %147 = math.exp %146 : vector<16x128xf32>
    %cst_38 = arith.constant 1.000000e+00 : f32
    %148 = vector.broadcast %cst_38 : f32 to vector<16x128xf32>
    %149 = arith.addf %148, %147 : vector<16x128xf32>
    %150 = arith.divf %148, %149 : vector<16x128xf32>
    %151 = vector.extract_strided_slice %144 {offsets = [0, 128], sizes = [16, 128], strides = [1, 1]} : vector<16x512xf32> to vector<16x128xf32>
    %152 = arith.negf %151 : vector<16x128xf32>
    %153 = math.exp %152 : vector<16x128xf32>
    %cst_39 = arith.constant 1.000000e+00 : f32
    %154 = vector.broadcast %cst_39 : f32 to vector<16x128xf32>
    %155 = arith.addf %154, %153 : vector<16x128xf32>
    %156 = arith.divf %154, %155 : vector<16x128xf32>
    %157 = vector.extract_strided_slice %144 {offsets = [0, 256], sizes = [16, 128], strides = [1, 1]} : vector<16x512xf32> to vector<16x128xf32>
    %158 = math.tanh %157 : vector<16x128xf32>
    %159 = vector.extract_strided_slice %144 {offsets = [0, 384], sizes = [16, 128], strides = [1, 1]} : vector<16x512xf32> to vector<16x128xf32>
    %160 = arith.negf %159 : vector<16x128xf32>
    %161 = math.exp %160 : vector<16x128xf32>
    %cst_40 = arith.constant 1.000000e+00 : f32
    %162 = vector.broadcast %cst_40 : f32 to vector<16x128xf32>
    %163 = arith.addf %162, %161 : vector<16x128xf32>
    %164 = arith.divf %162, %163 : vector<16x128xf32>
    %165 = arith.mulf %156, %103 : vector<16x128xf32>
    %166 = arith.mulf %150, %158 : vector<16x128xf32>
    %167 = arith.addf %165, %166 : vector<16x128xf32>
    %168 = math.tanh %167 : vector<16x128xf32>
    %169 = arith.mulf %164, %168 : vector<16x128xf32>
    %170 = arith.truncf %169 : vector<16x128xf32> to vector<16x128xbf16>
    %cst_41 = arith.constant dense<0.000000e+00> : vector<16x512xf32>
    %171 = tpu.matmul %170, %5, %cst_41 {dimension_numbers = #tpu.dot_dimension_numbers<[1], [0], [0], [1], [0, 0, 1, 1], [], []>} : vector<16x128xbf16>, vector<128x512xbf16>, vector<16x512xf32> -> vector<16x512xf32>
    %172 = arith.truncf %135 : vector<16x128xf32> to vector<16x128xbf16>
    %cst_42 = arith.constant dense<0.000000e+00> : vector<16x512xf32>
    %173 = tpu.matmul %172, %6, %cst_42 {dimension_numbers = #tpu.dot_dimension_numbers<[1], [0], [0], [1], [0, 0, 1, 1], [], []>} : vector<16x128xbf16>, vector<128x512xbf16>, vector<16x512xf32> -> vector<16x512xf32>
    %174 = arith.addf %171, %173 : vector<16x512xf32>
    %175 = vector.extract_strided_slice %174 {offsets = [0, 0], sizes = [16, 128], strides = [1, 1]} : vector<16x512xf32> to vector<16x128xf32>
    %176 = arith.negf %175 : vector<16x128xf32>
    %177 = math.exp %176 : vector<16x128xf32>
    %cst_43 = arith.constant 1.000000e+00 : f32
    %178 = vector.broadcast %cst_43 : f32 to vector<16x128xf32>
    %179 = arith.addf %178, %177 : vector<16x128xf32>
    %180 = arith.divf %178, %179 : vector<16x128xf32>
    %181 = vector.extract_strided_slice %174 {offsets = [0, 128], sizes = [16, 128], strides = [1, 1]} : vector<16x512xf32> to vector<16x128xf32>
    %182 = arith.negf %181 : vector<16x128xf32>
    %183 = math.exp %182 : vector<16x128xf32>
    %cst_44 = arith.constant 1.000000e+00 : f32
    %184 = vector.broadcast %cst_44 : f32 to vector<16x128xf32>
    %185 = arith.addf %184, %183 : vector<16x128xf32>
    %186 = arith.divf %184, %185 : vector<16x128xf32>
    %187 = vector.extract_strided_slice %174 {offsets = [0, 256], sizes = [16, 128], strides = [1, 1]} : vector<16x512xf32> to vector<16x128xf32>
    %188 = math.tanh %187 : vector<16x128xf32>
    %189 = vector.extract_strided_slice %174 {offsets = [0, 384], sizes = [16, 128], strides = [1, 1]} : vector<16x512xf32> to vector<16x128xf32>
    %190 = arith.negf %189 : vector<16x128xf32>
    %191 = math.exp %190 : vector<16x128xf32>
    %cst_45 = arith.constant 1.000000e+00 : f32
    %192 = vector.broadcast %cst_45 : f32 to vector<16x128xf32>
    %193 = arith.addf %192, %191 : vector<16x128xf32>
    %194 = arith.divf %192, %193 : vector<16x128xf32>
    %195 = arith.mulf %186, %133 : vector<16x128xf32>
    %196 = arith.mulf %180, %188 : vector<16x128xf32>
    %197 = arith.addf %195, %196 : vector<16x128xf32>
    %198 = math.tanh %197 : vector<16x128xf32>
    %199 = arith.mulf %194, %198 : vector<16x128xf32>
    %200 = vector.extract_strided_slice %199 {offsets = [0, 0], sizes = [16, 64], strides = [1, 1]} : vector<16x128xf32> to vector<16x64xf32>
    %201 = arith.truncf %200 : vector<16x64xf32> to vector<16x64xbf16>
    %202 = vector.extract_strided_slice %7 {offsets = [128, 0], sizes = [64, 128], strides = [1, 1]} : vector<512x128xbf16> to vector<64x128xbf16>
    %cst_46 = arith.constant dense<0.000000e+00> : vector<16x128xf32>
    %203 = tpu.matmul %201, %202, %cst_46 {dimension_numbers = #tpu.dot_dimension_numbers<[1], [0], [0], [1], [0, 0, 1, 1], [], []>} : vector<16x64xbf16>, vector<64x128xbf16>, vector<16x128xf32> -> vector<16x128xf32>
    %204 = arith.addf %140, %203 : vector<16x128xf32>
    %205 = vector.extract_strided_slice %3 {offsets = [48, 0], sizes = [16, 512], strides = [1, 1]} : vector<128x512xf32> to vector<16x512xf32>
    %206 = arith.truncf %169 : vector<16x128xf32> to vector<16x128xbf16>
    %cst_47 = arith.constant dense<0.000000e+00> : vector<16x512xf32>
    %207 = tpu.matmul %206, %4, %cst_47 {dimension_numbers = #tpu.dot_dimension_numbers<[1], [0], [0], [1], [0, 0, 1, 1], [], []>} : vector<16x128xbf16>, vector<128x512xbf16>, vector<16x512xf32> -> vector<16x512xf32>
    %208 = arith.addf %205, %207 : vector<16x512xf32>
    %209 = vector.extract_strided_slice %208 {offsets = [0, 0], sizes = [16, 128], strides = [1, 1]} : vector<16x512xf32> to vector<16x128xf32>
    %210 = arith.negf %209 : vector<16x128xf32>
    %211 = math.exp %210 : vector<16x128xf32>
    %cst_48 = arith.constant 1.000000e+00 : f32
    %212 = vector.broadcast %cst_48 : f32 to vector<16x128xf32>
    %213 = arith.addf %212, %211 : vector<16x128xf32>
    %214 = arith.divf %212, %213 : vector<16x128xf32>
    %215 = vector.extract_strided_slice %208 {offsets = [0, 128], sizes = [16, 128], strides = [1, 1]} : vector<16x512xf32> to vector<16x128xf32>
    %216 = arith.negf %215 : vector<16x128xf32>
    %217 = math.exp %216 : vector<16x128xf32>
    %cst_49 = arith.constant 1.000000e+00 : f32
    %218 = vector.broadcast %cst_49 : f32 to vector<16x128xf32>
    %219 = arith.addf %218, %217 : vector<16x128xf32>
    %220 = arith.divf %218, %219 : vector<16x128xf32>
    %221 = vector.extract_strided_slice %208 {offsets = [0, 256], sizes = [16, 128], strides = [1, 1]} : vector<16x512xf32> to vector<16x128xf32>
    %222 = math.tanh %221 : vector<16x128xf32>
    %223 = vector.extract_strided_slice %208 {offsets = [0, 384], sizes = [16, 128], strides = [1, 1]} : vector<16x512xf32> to vector<16x128xf32>
    %224 = arith.negf %223 : vector<16x128xf32>
    %225 = math.exp %224 : vector<16x128xf32>
    %cst_50 = arith.constant 1.000000e+00 : f32
    %226 = vector.broadcast %cst_50 : f32 to vector<16x128xf32>
    %227 = arith.addf %226, %225 : vector<16x128xf32>
    %228 = arith.divf %226, %227 : vector<16x128xf32>
    %229 = arith.mulf %220, %167 : vector<16x128xf32>
    %230 = arith.mulf %214, %222 : vector<16x128xf32>
    %231 = arith.addf %229, %230 : vector<16x128xf32>
    %232 = math.tanh %231 : vector<16x128xf32>
    %233 = arith.mulf %228, %232 : vector<16x128xf32>
    %234 = arith.truncf %233 : vector<16x128xf32> to vector<16x128xbf16>
    %cst_51 = arith.constant dense<0.000000e+00> : vector<16x512xf32>
    %235 = tpu.matmul %234, %5, %cst_51 {dimension_numbers = #tpu.dot_dimension_numbers<[1], [0], [0], [1], [0, 0, 1, 1], [], []>} : vector<16x128xbf16>, vector<128x512xbf16>, vector<16x512xf32> -> vector<16x512xf32>
    %236 = arith.truncf %199 : vector<16x128xf32> to vector<16x128xbf16>
    %cst_52 = arith.constant dense<0.000000e+00> : vector<16x512xf32>
    %237 = tpu.matmul %236, %6, %cst_52 {dimension_numbers = #tpu.dot_dimension_numbers<[1], [0], [0], [1], [0, 0, 1, 1], [], []>} : vector<16x128xbf16>, vector<128x512xbf16>, vector<16x512xf32> -> vector<16x512xf32>
    %238 = arith.addf %235, %237 : vector<16x512xf32>
    %239 = vector.extract_strided_slice %238 {offsets = [0, 0], sizes = [16, 128], strides = [1, 1]} : vector<16x512xf32> to vector<16x128xf32>
    %240 = arith.negf %239 : vector<16x128xf32>
    %241 = math.exp %240 : vector<16x128xf32>
    %cst_53 = arith.constant 1.000000e+00 : f32
    %242 = vector.broadcast %cst_53 : f32 to vector<16x128xf32>
    %243 = arith.addf %242, %241 : vector<16x128xf32>
    %244 = arith.divf %242, %243 : vector<16x128xf32>
    %245 = vector.extract_strided_slice %238 {offsets = [0, 128], sizes = [16, 128], strides = [1, 1]} : vector<16x512xf32> to vector<16x128xf32>
    %246 = arith.negf %245 : vector<16x128xf32>
    %247 = math.exp %246 : vector<16x128xf32>
    %cst_54 = arith.constant 1.000000e+00 : f32
    %248 = vector.broadcast %cst_54 : f32 to vector<16x128xf32>
    %249 = arith.addf %248, %247 : vector<16x128xf32>
    %250 = arith.divf %248, %249 : vector<16x128xf32>
    %251 = vector.extract_strided_slice %238 {offsets = [0, 256], sizes = [16, 128], strides = [1, 1]} : vector<16x512xf32> to vector<16x128xf32>
    %252 = math.tanh %251 : vector<16x128xf32>
    %253 = vector.extract_strided_slice %238 {offsets = [0, 384], sizes = [16, 128], strides = [1, 1]} : vector<16x512xf32> to vector<16x128xf32>
    %254 = arith.negf %253 : vector<16x128xf32>
    %255 = math.exp %254 : vector<16x128xf32>
    %cst_55 = arith.constant 1.000000e+00 : f32
    %256 = vector.broadcast %cst_55 : f32 to vector<16x128xf32>
    %257 = arith.addf %256, %255 : vector<16x128xf32>
    %258 = arith.divf %256, %257 : vector<16x128xf32>
    %259 = arith.mulf %250, %197 : vector<16x128xf32>
    %260 = arith.mulf %244, %252 : vector<16x128xf32>
    %261 = arith.addf %259, %260 : vector<16x128xf32>
    %262 = math.tanh %261 : vector<16x128xf32>
    %263 = arith.mulf %258, %262 : vector<16x128xf32>
    %264 = vector.extract_strided_slice %263 {offsets = [0, 0], sizes = [16, 64], strides = [1, 1]} : vector<16x128xf32> to vector<16x64xf32>
    %265 = arith.truncf %264 : vector<16x64xf32> to vector<16x64xbf16>
    %266 = vector.extract_strided_slice %7 {offsets = [192, 0], sizes = [64, 128], strides = [1, 1]} : vector<512x128xbf16> to vector<64x128xbf16>
    %cst_56 = arith.constant dense<0.000000e+00> : vector<16x128xf32>
    %267 = tpu.matmul %265, %266, %cst_56 {dimension_numbers = #tpu.dot_dimension_numbers<[1], [0], [0], [1], [0, 0, 1, 1], [], []>} : vector<16x64xbf16>, vector<64x128xbf16>, vector<16x128xf32> -> vector<16x128xf32>
    %268 = arith.addf %204, %267 : vector<16x128xf32>
    %269 = vector.extract_strided_slice %3 {offsets = [64, 0], sizes = [16, 512], strides = [1, 1]} : vector<128x512xf32> to vector<16x512xf32>
    %270 = arith.truncf %233 : vector<16x128xf32> to vector<16x128xbf16>
    %cst_57 = arith.constant dense<0.000000e+00> : vector<16x512xf32>
    %271 = tpu.matmul %270, %4, %cst_57 {dimension_numbers = #tpu.dot_dimension_numbers<[1], [0], [0], [1], [0, 0, 1, 1], [], []>} : vector<16x128xbf16>, vector<128x512xbf16>, vector<16x512xf32> -> vector<16x512xf32>
    %272 = arith.addf %269, %271 : vector<16x512xf32>
    %273 = vector.extract_strided_slice %272 {offsets = [0, 0], sizes = [16, 128], strides = [1, 1]} : vector<16x512xf32> to vector<16x128xf32>
    %274 = arith.negf %273 : vector<16x128xf32>
    %275 = math.exp %274 : vector<16x128xf32>
    %cst_58 = arith.constant 1.000000e+00 : f32
    %276 = vector.broadcast %cst_58 : f32 to vector<16x128xf32>
    %277 = arith.addf %276, %275 : vector<16x128xf32>
    %278 = arith.divf %276, %277 : vector<16x128xf32>
    %279 = vector.extract_strided_slice %272 {offsets = [0, 128], sizes = [16, 128], strides = [1, 1]} : vector<16x512xf32> to vector<16x128xf32>
    %280 = arith.negf %279 : vector<16x128xf32>
    %281 = math.exp %280 : vector<16x128xf32>
    %cst_59 = arith.constant 1.000000e+00 : f32
    %282 = vector.broadcast %cst_59 : f32 to vector<16x128xf32>
    %283 = arith.addf %282, %281 : vector<16x128xf32>
    %284 = arith.divf %282, %283 : vector<16x128xf32>
    %285 = vector.extract_strided_slice %272 {offsets = [0, 256], sizes = [16, 128], strides = [1, 1]} : vector<16x512xf32> to vector<16x128xf32>
    %286 = math.tanh %285 : vector<16x128xf32>
    %287 = vector.extract_strided_slice %272 {offsets = [0, 384], sizes = [16, 128], strides = [1, 1]} : vector<16x512xf32> to vector<16x128xf32>
    %288 = arith.negf %287 : vector<16x128xf32>
    %289 = math.exp %288 : vector<16x128xf32>
    %cst_60 = arith.constant 1.000000e+00 : f32
    %290 = vector.broadcast %cst_60 : f32 to vector<16x128xf32>
    %291 = arith.addf %290, %289 : vector<16x128xf32>
    %292 = arith.divf %290, %291 : vector<16x128xf32>
    %293 = arith.mulf %284, %231 : vector<16x128xf32>
    %294 = arith.mulf %278, %286 : vector<16x128xf32>
    %295 = arith.addf %293, %294 : vector<16x128xf32>
    %296 = math.tanh %295 : vector<16x128xf32>
    %297 = arith.mulf %292, %296 : vector<16x128xf32>
    %298 = arith.truncf %297 : vector<16x128xf32> to vector<16x128xbf16>
    %cst_61 = arith.constant dense<0.000000e+00> : vector<16x512xf32>
    %299 = tpu.matmul %298, %5, %cst_61 {dimension_numbers = #tpu.dot_dimension_numbers<[1], [0], [0], [1], [0, 0, 1, 1], [], []>} : vector<16x128xbf16>, vector<128x512xbf16>, vector<16x512xf32> -> vector<16x512xf32>
    %300 = arith.truncf %263 : vector<16x128xf32> to vector<16x128xbf16>
    %cst_62 = arith.constant dense<0.000000e+00> : vector<16x512xf32>
    %301 = tpu.matmul %300, %6, %cst_62 {dimension_numbers = #tpu.dot_dimension_numbers<[1], [0], [0], [1], [0, 0, 1, 1], [], []>} : vector<16x128xbf16>, vector<128x512xbf16>, vector<16x512xf32> -> vector<16x512xf32>
    %302 = arith.addf %299, %301 : vector<16x512xf32>
    %303 = vector.extract_strided_slice %302 {offsets = [0, 0], sizes = [16, 128], strides = [1, 1]} : vector<16x512xf32> to vector<16x128xf32>
    %304 = arith.negf %303 : vector<16x128xf32>
    %305 = math.exp %304 : vector<16x128xf32>
    %cst_63 = arith.constant 1.000000e+00 : f32
    %306 = vector.broadcast %cst_63 : f32 to vector<16x128xf32>
    %307 = arith.addf %306, %305 : vector<16x128xf32>
    %308 = arith.divf %306, %307 : vector<16x128xf32>
    %309 = vector.extract_strided_slice %302 {offsets = [0, 128], sizes = [16, 128], strides = [1, 1]} : vector<16x512xf32> to vector<16x128xf32>
    %310 = arith.negf %309 : vector<16x128xf32>
    %311 = math.exp %310 : vector<16x128xf32>
    %cst_64 = arith.constant 1.000000e+00 : f32
    %312 = vector.broadcast %cst_64 : f32 to vector<16x128xf32>
    %313 = arith.addf %312, %311 : vector<16x128xf32>
    %314 = arith.divf %312, %313 : vector<16x128xf32>
    %315 = vector.extract_strided_slice %302 {offsets = [0, 256], sizes = [16, 128], strides = [1, 1]} : vector<16x512xf32> to vector<16x128xf32>
    %316 = math.tanh %315 : vector<16x128xf32>
    %317 = vector.extract_strided_slice %302 {offsets = [0, 384], sizes = [16, 128], strides = [1, 1]} : vector<16x512xf32> to vector<16x128xf32>
    %318 = arith.negf %317 : vector<16x128xf32>
    %319 = math.exp %318 : vector<16x128xf32>
    %cst_65 = arith.constant 1.000000e+00 : f32
    %320 = vector.broadcast %cst_65 : f32 to vector<16x128xf32>
    %321 = arith.addf %320, %319 : vector<16x128xf32>
    %322 = arith.divf %320, %321 : vector<16x128xf32>
    %323 = arith.mulf %314, %261 : vector<16x128xf32>
    %324 = arith.mulf %308, %316 : vector<16x128xf32>
    %325 = arith.addf %323, %324 : vector<16x128xf32>
    %326 = math.tanh %325 : vector<16x128xf32>
    %327 = arith.mulf %322, %326 : vector<16x128xf32>
    %328 = vector.extract_strided_slice %327 {offsets = [0, 0], sizes = [16, 64], strides = [1, 1]} : vector<16x128xf32> to vector<16x64xf32>
    %329 = arith.truncf %328 : vector<16x64xf32> to vector<16x64xbf16>
    %330 = vector.extract_strided_slice %7 {offsets = [256, 0], sizes = [64, 128], strides = [1, 1]} : vector<512x128xbf16> to vector<64x128xbf16>
    %cst_66 = arith.constant dense<0.000000e+00> : vector<16x128xf32>
    %331 = tpu.matmul %329, %330, %cst_66 {dimension_numbers = #tpu.dot_dimension_numbers<[1], [0], [0], [1], [0, 0, 1, 1], [], []>} : vector<16x64xbf16>, vector<64x128xbf16>, vector<16x128xf32> -> vector<16x128xf32>
    %332 = arith.addf %268, %331 : vector<16x128xf32>
    %333 = vector.extract_strided_slice %3 {offsets = [80, 0], sizes = [16, 512], strides = [1, 1]} : vector<128x512xf32> to vector<16x512xf32>
    %334 = arith.truncf %297 : vector<16x128xf32> to vector<16x128xbf16>
    %cst_67 = arith.constant dense<0.000000e+00> : vector<16x512xf32>
    %335 = tpu.matmul %334, %4, %cst_67 {dimension_numbers = #tpu.dot_dimension_numbers<[1], [0], [0], [1], [0, 0, 1, 1], [], []>} : vector<16x128xbf16>, vector<128x512xbf16>, vector<16x512xf32> -> vector<16x512xf32>
    %336 = arith.addf %333, %335 : vector<16x512xf32>
    %337 = vector.extract_strided_slice %336 {offsets = [0, 0], sizes = [16, 128], strides = [1, 1]} : vector<16x512xf32> to vector<16x128xf32>
    %338 = arith.negf %337 : vector<16x128xf32>
    %339 = math.exp %338 : vector<16x128xf32>
    %cst_68 = arith.constant 1.000000e+00 : f32
    %340 = vector.broadcast %cst_68 : f32 to vector<16x128xf32>
    %341 = arith.addf %340, %339 : vector<16x128xf32>
    %342 = arith.divf %340, %341 : vector<16x128xf32>
    %343 = vector.extract_strided_slice %336 {offsets = [0, 128], sizes = [16, 128], strides = [1, 1]} : vector<16x512xf32> to vector<16x128xf32>
    %344 = arith.negf %343 : vector<16x128xf32>
    %345 = math.exp %344 : vector<16x128xf32>
    %cst_69 = arith.constant 1.000000e+00 : f32
    %346 = vector.broadcast %cst_69 : f32 to vector<16x128xf32>
    %347 = arith.addf %346, %345 : vector<16x128xf32>
    %348 = arith.divf %346, %347 : vector<16x128xf32>
    %349 = vector.extract_strided_slice %336 {offsets = [0, 256], sizes = [16, 128], strides = [1, 1]} : vector<16x512xf32> to vector<16x128xf32>
    %350 = math.tanh %349 : vector<16x128xf32>
    %351 = vector.extract_strided_slice %336 {offsets = [0, 384], sizes = [16, 128], strides = [1, 1]} : vector<16x512xf32> to vector<16x128xf32>
    %352 = arith.negf %351 : vector<16x128xf32>
    %353 = math.exp %352 : vector<16x128xf32>
    %cst_70 = arith.constant 1.000000e+00 : f32
    %354 = vector.broadcast %cst_70 : f32 to vector<16x128xf32>
    %355 = arith.addf %354, %353 : vector<16x128xf32>
    %356 = arith.divf %354, %355 : vector<16x128xf32>
    %357 = arith.mulf %348, %295 : vector<16x128xf32>
    %358 = arith.mulf %342, %350 : vector<16x128xf32>
    %359 = arith.addf %357, %358 : vector<16x128xf32>
    %360 = math.tanh %359 : vector<16x128xf32>
    %361 = arith.mulf %356, %360 : vector<16x128xf32>
    %362 = arith.truncf %361 : vector<16x128xf32> to vector<16x128xbf16>
    %cst_71 = arith.constant dense<0.000000e+00> : vector<16x512xf32>
    %363 = tpu.matmul %362, %5, %cst_71 {dimension_numbers = #tpu.dot_dimension_numbers<[1], [0], [0], [1], [0, 0, 1, 1], [], []>} : vector<16x128xbf16>, vector<128x512xbf16>, vector<16x512xf32> -> vector<16x512xf32>
    %364 = arith.truncf %327 : vector<16x128xf32> to vector<16x128xbf16>
    %cst_72 = arith.constant dense<0.000000e+00> : vector<16x512xf32>
    %365 = tpu.matmul %364, %6, %cst_72 {dimension_numbers = #tpu.dot_dimension_numbers<[1], [0], [0], [1], [0, 0, 1, 1], [], []>} : vector<16x128xbf16>, vector<128x512xbf16>, vector<16x512xf32> -> vector<16x512xf32>
    %366 = arith.addf %363, %365 : vector<16x512xf32>
    %367 = vector.extract_strided_slice %366 {offsets = [0, 0], sizes = [16, 128], strides = [1, 1]} : vector<16x512xf32> to vector<16x128xf32>
    %368 = arith.negf %367 : vector<16x128xf32>
    %369 = math.exp %368 : vector<16x128xf32>
    %cst_73 = arith.constant 1.000000e+00 : f32
    %370 = vector.broadcast %cst_73 : f32 to vector<16x128xf32>
    %371 = arith.addf %370, %369 : vector<16x128xf32>
    %372 = arith.divf %370, %371 : vector<16x128xf32>
    %373 = vector.extract_strided_slice %366 {offsets = [0, 128], sizes = [16, 128], strides = [1, 1]} : vector<16x512xf32> to vector<16x128xf32>
    %374 = arith.negf %373 : vector<16x128xf32>
    %375 = math.exp %374 : vector<16x128xf32>
    %cst_74 = arith.constant 1.000000e+00 : f32
    %376 = vector.broadcast %cst_74 : f32 to vector<16x128xf32>
    %377 = arith.addf %376, %375 : vector<16x128xf32>
    %378 = arith.divf %376, %377 : vector<16x128xf32>
    %379 = vector.extract_strided_slice %366 {offsets = [0, 256], sizes = [16, 128], strides = [1, 1]} : vector<16x512xf32> to vector<16x128xf32>
    %380 = math.tanh %379 : vector<16x128xf32>
    %381 = vector.extract_strided_slice %366 {offsets = [0, 384], sizes = [16, 128], strides = [1, 1]} : vector<16x512xf32> to vector<16x128xf32>
    %382 = arith.negf %381 : vector<16x128xf32>
    %383 = math.exp %382 : vector<16x128xf32>
    %cst_75 = arith.constant 1.000000e+00 : f32
    %384 = vector.broadcast %cst_75 : f32 to vector<16x128xf32>
    %385 = arith.addf %384, %383 : vector<16x128xf32>
    %386 = arith.divf %384, %385 : vector<16x128xf32>
    %387 = arith.mulf %378, %325 : vector<16x128xf32>
    %388 = arith.mulf %372, %380 : vector<16x128xf32>
    %389 = arith.addf %387, %388 : vector<16x128xf32>
    %390 = math.tanh %389 : vector<16x128xf32>
    %391 = arith.mulf %386, %390 : vector<16x128xf32>
    %392 = vector.extract_strided_slice %391 {offsets = [0, 0], sizes = [16, 64], strides = [1, 1]} : vector<16x128xf32> to vector<16x64xf32>
    %393 = arith.truncf %392 : vector<16x64xf32> to vector<16x64xbf16>
    %394 = vector.extract_strided_slice %7 {offsets = [320, 0], sizes = [64, 128], strides = [1, 1]} : vector<512x128xbf16> to vector<64x128xbf16>
    %cst_76 = arith.constant dense<0.000000e+00> : vector<16x128xf32>
    %395 = tpu.matmul %393, %394, %cst_76 {dimension_numbers = #tpu.dot_dimension_numbers<[1], [0], [0], [1], [0, 0, 1, 1], [], []>} : vector<16x64xbf16>, vector<64x128xbf16>, vector<16x128xf32> -> vector<16x128xf32>
    %396 = arith.addf %332, %395 : vector<16x128xf32>
    %397 = vector.extract_strided_slice %3 {offsets = [96, 0], sizes = [16, 512], strides = [1, 1]} : vector<128x512xf32> to vector<16x512xf32>
    %398 = arith.truncf %361 : vector<16x128xf32> to vector<16x128xbf16>
    %cst_77 = arith.constant dense<0.000000e+00> : vector<16x512xf32>
    %399 = tpu.matmul %398, %4, %cst_77 {dimension_numbers = #tpu.dot_dimension_numbers<[1], [0], [0], [1], [0, 0, 1, 1], [], []>} : vector<16x128xbf16>, vector<128x512xbf16>, vector<16x512xf32> -> vector<16x512xf32>
    %400 = arith.addf %397, %399 : vector<16x512xf32>
    %401 = vector.extract_strided_slice %400 {offsets = [0, 0], sizes = [16, 128], strides = [1, 1]} : vector<16x512xf32> to vector<16x128xf32>
    %402 = arith.negf %401 : vector<16x128xf32>
    %403 = math.exp %402 : vector<16x128xf32>
    %cst_78 = arith.constant 1.000000e+00 : f32
    %404 = vector.broadcast %cst_78 : f32 to vector<16x128xf32>
    %405 = arith.addf %404, %403 : vector<16x128xf32>
    %406 = arith.divf %404, %405 : vector<16x128xf32>
    %407 = vector.extract_strided_slice %400 {offsets = [0, 128], sizes = [16, 128], strides = [1, 1]} : vector<16x512xf32> to vector<16x128xf32>
    %408 = arith.negf %407 : vector<16x128xf32>
    %409 = math.exp %408 : vector<16x128xf32>
    %cst_79 = arith.constant 1.000000e+00 : f32
    %410 = vector.broadcast %cst_79 : f32 to vector<16x128xf32>
    %411 = arith.addf %410, %409 : vector<16x128xf32>
    %412 = arith.divf %410, %411 : vector<16x128xf32>
    %413 = vector.extract_strided_slice %400 {offsets = [0, 256], sizes = [16, 128], strides = [1, 1]} : vector<16x512xf32> to vector<16x128xf32>
    %414 = math.tanh %413 : vector<16x128xf32>
    %415 = vector.extract_strided_slice %400 {offsets = [0, 384], sizes = [16, 128], strides = [1, 1]} : vector<16x512xf32> to vector<16x128xf32>
    %416 = arith.negf %415 : vector<16x128xf32>
    %417 = math.exp %416 : vector<16x128xf32>
    %cst_80 = arith.constant 1.000000e+00 : f32
    %418 = vector.broadcast %cst_80 : f32 to vector<16x128xf32>
    %419 = arith.addf %418, %417 : vector<16x128xf32>
    %420 = arith.divf %418, %419 : vector<16x128xf32>
    %421 = arith.mulf %412, %359 : vector<16x128xf32>
    %422 = arith.mulf %406, %414 : vector<16x128xf32>
    %423 = arith.addf %421, %422 : vector<16x128xf32>
    %424 = math.tanh %423 : vector<16x128xf32>
    %425 = arith.mulf %420, %424 : vector<16x128xf32>
    %426 = arith.truncf %425 : vector<16x128xf32> to vector<16x128xbf16>
    %cst_81 = arith.constant dense<0.000000e+00> : vector<16x512xf32>
    %427 = tpu.matmul %426, %5, %cst_81 {dimension_numbers = #tpu.dot_dimension_numbers<[1], [0], [0], [1], [0, 0, 1, 1], [], []>} : vector<16x128xbf16>, vector<128x512xbf16>, vector<16x512xf32> -> vector<16x512xf32>
    %428 = arith.truncf %391 : vector<16x128xf32> to vector<16x128xbf16>
    %cst_82 = arith.constant dense<0.000000e+00> : vector<16x512xf32>
    %429 = tpu.matmul %428, %6, %cst_82 {dimension_numbers = #tpu.dot_dimension_numbers<[1], [0], [0], [1], [0, 0, 1, 1], [], []>} : vector<16x128xbf16>, vector<128x512xbf16>, vector<16x512xf32> -> vector<16x512xf32>
    %430 = arith.addf %427, %429 : vector<16x512xf32>
    %431 = vector.extract_strided_slice %430 {offsets = [0, 0], sizes = [16, 128], strides = [1, 1]} : vector<16x512xf32> to vector<16x128xf32>
    %432 = arith.negf %431 : vector<16x128xf32>
    %433 = math.exp %432 : vector<16x128xf32>
    %cst_83 = arith.constant 1.000000e+00 : f32
    %434 = vector.broadcast %cst_83 : f32 to vector<16x128xf32>
    %435 = arith.addf %434, %433 : vector<16x128xf32>
    %436 = arith.divf %434, %435 : vector<16x128xf32>
    %437 = vector.extract_strided_slice %430 {offsets = [0, 128], sizes = [16, 128], strides = [1, 1]} : vector<16x512xf32> to vector<16x128xf32>
    %438 = arith.negf %437 : vector<16x128xf32>
    %439 = math.exp %438 : vector<16x128xf32>
    %cst_84 = arith.constant 1.000000e+00 : f32
    %440 = vector.broadcast %cst_84 : f32 to vector<16x128xf32>
    %441 = arith.addf %440, %439 : vector<16x128xf32>
    %442 = arith.divf %440, %441 : vector<16x128xf32>
    %443 = vector.extract_strided_slice %430 {offsets = [0, 256], sizes = [16, 128], strides = [1, 1]} : vector<16x512xf32> to vector<16x128xf32>
    %444 = math.tanh %443 : vector<16x128xf32>
    %445 = vector.extract_strided_slice %430 {offsets = [0, 384], sizes = [16, 128], strides = [1, 1]} : vector<16x512xf32> to vector<16x128xf32>
    %446 = arith.negf %445 : vector<16x128xf32>
    %447 = math.exp %446 : vector<16x128xf32>
    %cst_85 = arith.constant 1.000000e+00 : f32
    %448 = vector.broadcast %cst_85 : f32 to vector<16x128xf32>
    %449 = arith.addf %448, %447 : vector<16x128xf32>
    %450 = arith.divf %448, %449 : vector<16x128xf32>
    %451 = arith.mulf %442, %389 : vector<16x128xf32>
    %452 = arith.mulf %436, %444 : vector<16x128xf32>
    %453 = arith.addf %451, %452 : vector<16x128xf32>
    %454 = math.tanh %453 : vector<16x128xf32>
    %455 = arith.mulf %450, %454 : vector<16x128xf32>
    %456 = vector.extract_strided_slice %455 {offsets = [0, 0], sizes = [16, 64], strides = [1, 1]} : vector<16x128xf32> to vector<16x64xf32>
    %457 = arith.truncf %456 : vector<16x64xf32> to vector<16x64xbf16>
    %458 = vector.extract_strided_slice %7 {offsets = [384, 0], sizes = [64, 128], strides = [1, 1]} : vector<512x128xbf16> to vector<64x128xbf16>
    %cst_86 = arith.constant dense<0.000000e+00> : vector<16x128xf32>
    %459 = tpu.matmul %457, %458, %cst_86 {dimension_numbers = #tpu.dot_dimension_numbers<[1], [0], [0], [1], [0, 0, 1, 1], [], []>} : vector<16x64xbf16>, vector<64x128xbf16>, vector<16x128xf32> -> vector<16x128xf32>
    %460 = arith.addf %396, %459 : vector<16x128xf32>
    %461 = vector.extract_strided_slice %3 {offsets = [112, 0], sizes = [16, 512], strides = [1, 1]} : vector<128x512xf32> to vector<16x512xf32>
    %462 = arith.truncf %425 : vector<16x128xf32> to vector<16x128xbf16>
    %cst_87 = arith.constant dense<0.000000e+00> : vector<16x512xf32>
    %463 = tpu.matmul %462, %4, %cst_87 {dimension_numbers = #tpu.dot_dimension_numbers<[1], [0], [0], [1], [0, 0, 1, 1], [], []>} : vector<16x128xbf16>, vector<128x512xbf16>, vector<16x512xf32> -> vector<16x512xf32>
    %464 = arith.addf %461, %463 : vector<16x512xf32>
    %465 = vector.extract_strided_slice %464 {offsets = [0, 0], sizes = [16, 128], strides = [1, 1]} : vector<16x512xf32> to vector<16x128xf32>
    %466 = arith.negf %465 : vector<16x128xf32>
    %467 = math.exp %466 : vector<16x128xf32>
    %cst_88 = arith.constant 1.000000e+00 : f32
    %468 = vector.broadcast %cst_88 : f32 to vector<16x128xf32>
    %469 = arith.addf %468, %467 : vector<16x128xf32>
    %470 = arith.divf %468, %469 : vector<16x128xf32>
    %471 = vector.extract_strided_slice %464 {offsets = [0, 128], sizes = [16, 128], strides = [1, 1]} : vector<16x512xf32> to vector<16x128xf32>
    %472 = arith.negf %471 : vector<16x128xf32>
    %473 = math.exp %472 : vector<16x128xf32>
    %cst_89 = arith.constant 1.000000e+00 : f32
    %474 = vector.broadcast %cst_89 : f32 to vector<16x128xf32>
    %475 = arith.addf %474, %473 : vector<16x128xf32>
    %476 = arith.divf %474, %475 : vector<16x128xf32>
    %477 = vector.extract_strided_slice %464 {offsets = [0, 256], sizes = [16, 128], strides = [1, 1]} : vector<16x512xf32> to vector<16x128xf32>
    %478 = math.tanh %477 : vector<16x128xf32>
    %479 = vector.extract_strided_slice %464 {offsets = [0, 384], sizes = [16, 128], strides = [1, 1]} : vector<16x512xf32> to vector<16x128xf32>
    %480 = arith.negf %479 : vector<16x128xf32>
    %481 = math.exp %480 : vector<16x128xf32>
    %cst_90 = arith.constant 1.000000e+00 : f32
    %482 = vector.broadcast %cst_90 : f32 to vector<16x128xf32>
    %483 = arith.addf %482, %481 : vector<16x128xf32>
    %484 = arith.divf %482, %483 : vector<16x128xf32>
    %485 = arith.mulf %476, %423 : vector<16x128xf32>
    %486 = arith.mulf %470, %478 : vector<16x128xf32>
    %487 = arith.addf %485, %486 : vector<16x128xf32>
    %488 = math.tanh %487 : vector<16x128xf32>
    %489 = arith.mulf %484, %488 : vector<16x128xf32>
    %490 = arith.truncf %489 : vector<16x128xf32> to vector<16x128xbf16>
    %cst_91 = arith.constant dense<0.000000e+00> : vector<16x512xf32>
    %491 = tpu.matmul %490, %5, %cst_91 {dimension_numbers = #tpu.dot_dimension_numbers<[1], [0], [0], [1], [0, 0, 1, 1], [], []>} : vector<16x128xbf16>, vector<128x512xbf16>, vector<16x512xf32> -> vector<16x512xf32>
    %492 = arith.truncf %455 : vector<16x128xf32> to vector<16x128xbf16>
    %cst_92 = arith.constant dense<0.000000e+00> : vector<16x512xf32>
    %493 = tpu.matmul %492, %6, %cst_92 {dimension_numbers = #tpu.dot_dimension_numbers<[1], [0], [0], [1], [0, 0, 1, 1], [], []>} : vector<16x128xbf16>, vector<128x512xbf16>, vector<16x512xf32> -> vector<16x512xf32>
    %494 = arith.addf %491, %493 : vector<16x512xf32>
    %495 = vector.extract_strided_slice %494 {offsets = [0, 0], sizes = [16, 128], strides = [1, 1]} : vector<16x512xf32> to vector<16x128xf32>
    %496 = arith.negf %495 : vector<16x128xf32>
    %497 = math.exp %496 : vector<16x128xf32>
    %cst_93 = arith.constant 1.000000e+00 : f32
    %498 = vector.broadcast %cst_93 : f32 to vector<16x128xf32>
    %499 = arith.addf %498, %497 : vector<16x128xf32>
    %500 = arith.divf %498, %499 : vector<16x128xf32>
    %501 = vector.extract_strided_slice %494 {offsets = [0, 128], sizes = [16, 128], strides = [1, 1]} : vector<16x512xf32> to vector<16x128xf32>
    %502 = arith.negf %501 : vector<16x128xf32>
    %503 = math.exp %502 : vector<16x128xf32>
    %cst_94 = arith.constant 1.000000e+00 : f32
    %504 = vector.broadcast %cst_94 : f32 to vector<16x128xf32>
    %505 = arith.addf %504, %503 : vector<16x128xf32>
    %506 = arith.divf %504, %505 : vector<16x128xf32>
    %507 = vector.extract_strided_slice %494 {offsets = [0, 256], sizes = [16, 128], strides = [1, 1]} : vector<16x512xf32> to vector<16x128xf32>
    %508 = math.tanh %507 : vector<16x128xf32>
    %509 = vector.extract_strided_slice %494 {offsets = [0, 384], sizes = [16, 128], strides = [1, 1]} : vector<16x512xf32> to vector<16x128xf32>
    %510 = arith.negf %509 : vector<16x128xf32>
    %511 = math.exp %510 : vector<16x128xf32>
    %cst_95 = arith.constant 1.000000e+00 : f32
    %512 = vector.broadcast %cst_95 : f32 to vector<16x128xf32>
    %513 = arith.addf %512, %511 : vector<16x128xf32>
    %514 = arith.divf %512, %513 : vector<16x128xf32>
    %515 = arith.mulf %506, %453 : vector<16x128xf32>
    %516 = arith.mulf %500, %508 : vector<16x128xf32>
    %517 = arith.addf %515, %516 : vector<16x128xf32>
    %518 = math.tanh %517 : vector<16x128xf32>
    %519 = arith.mulf %514, %518 : vector<16x128xf32>
    %520 = vector.extract_strided_slice %519 {offsets = [0, 0], sizes = [16, 64], strides = [1, 1]} : vector<16x128xf32> to vector<16x64xf32>
    %521 = arith.truncf %520 : vector<16x64xf32> to vector<16x64xbf16>
    %522 = vector.extract_strided_slice %7 {offsets = [448, 0], sizes = [64, 128], strides = [1, 1]} : vector<512x128xbf16> to vector<64x128xbf16>
    %cst_96 = arith.constant dense<0.000000e+00> : vector<16x128xf32>
    %523 = tpu.matmul %521, %522, %cst_96 {dimension_numbers = #tpu.dot_dimension_numbers<[1], [0], [0], [1], [0, 0, 1, 1], [], []>} : vector<16x64xbf16>, vector<64x128xbf16>, vector<16x128xf32> -> vector<16x128xf32>
    %524 = arith.addf %460, %523 : vector<16x128xf32>
    %c0_97 = arith.constant 0 : index
    %c0_98 = arith.constant 0 : index
    %525 = vector.load %arg7[%c0_97, %c0_98] : memref<1x128xf32, #tpu.memory_space<vmem>>, vector<1x128xf32>
    %526 = vector.broadcast %525 : vector<1x128xf32> to vector<16x128xf32>
    %527 = arith.addf %524, %526 : vector<16x128xf32>
    %c0_99 = arith.constant 0 : index
    %c0_100 = arith.constant 0 : index
    %528 = vector.load %arg8[%c0_99, %c0_100] : memref<16x128xf32, #tpu.memory_space<vmem>>, vector<16x128xf32>
    tpu.vector_store %arg8[%c0_99, %c0_100], %527 {strides = array<i32>} : memref<16x128xf32, #tpu.memory_space<vmem>>, vector<16x128xf32>,
    return
  }
  func.func @transform_0(%arg0: i32) -> (i32, i32, i32) {
    %c0_i32 = arith.constant 0 : i32
    %c0_i32_0 = arith.constant 0 : i32
    %c0_i32_1 = arith.constant 0 : i32
    return %c0_i32, %arg0, %c0_i32_0 : i32, i32, i32
  }
  func.func @transform_1(%arg0: i32) -> (i32, i32) {
    %c0_i32 = arith.constant 0 : i32
    %c0_i32_0 = arith.constant 0 : i32
    %c0_i32_1 = arith.constant 0 : i32
    return %c0_i32, %c0_i32_0 : i32, i32
  }
  func.func @transform_2(%arg0: i32) -> (i32, i32) {
    %c0_i32 = arith.constant 0 : i32
    %c0_i32_0 = arith.constant 0 : i32
    %c0_i32_1 = arith.constant 0 : i32
    return %c0_i32, %c0_i32_0 : i32, i32
  }
  func.func @transform_3(%arg0: i32) -> (i32, i32) {
    %c0_i32 = arith.constant 0 : i32
    %c0_i32_0 = arith.constant 0 : i32
    %c0_i32_1 = arith.constant 0 : i32
    return %c0_i32, %c0_i32_0 : i32, i32
  }
  func.func @transform_4(%arg0: i32) -> (i32, i32) {
    %c0_i32 = arith.constant 0 : i32
    %c0_i32_0 = arith.constant 0 : i32
    %c0_i32_1 = arith.constant 0 : i32
    return %c0_i32, %c0_i32_0 : i32, i32
  }
  func.func @transform_5(%arg0: i32) -> (i32, i32) {
    %c0_i32 = arith.constant 0 : i32
    %c0_i32_0 = arith.constant 0 : i32
    %c0_i32_1 = arith.constant 0 : i32
    return %c0_i32, %c0_i32_0 : i32, i32
  }
  func.func @transform_6(%arg0: i32) -> (i32, i32) {
    %c0_i32 = arith.constant 0 : i32
    %c0_i32_0 = arith.constant 0 : i32
    %c0_i32_1 = arith.constant 0 : i32
    return %c0_i32, %c0_i32_0 : i32, i32
  }
  func.func @transform_7(%arg0: i32) -> (i32, i32) {
    %c0_i32 = arith.constant 0 : i32
    %c0_i32_0 = arith.constant 0 : i32
    return %arg0, %c0_i32 : i32, i32
  }
}

</mosaic_0001>

<llo_original>
// kernel: tpu_custom_call.1
$region0: #{tpu_custom_call.1}
  #allocation0 [shape = 'u32[]', space=smem, size = 0x4, offset = 0x4, fixed_abs, tag = 'smem constant byte address 0x4 - core index']
  #allocation1 [shape = 'u32[144,128]{1,0:T(1,128)}', space=vmem, size = 0x12000, scoped, tag = 'internal scratch']
  %s0 = inlined_call_operand.vmem [shape: bf16[8,16,4], index: 0, kind: input, shape index: {}]
  %s1 = inlined_call_operand.vmem [shape: bf16[4,512], index: 1, kind: input, shape index: {}]
  %s2 = inlined_call_operand.hbm [shape: bf16[128,512], index: 2, kind: input, shape index: {}]
  %s3 = inlined_call_operand.hbm [shape: bf16[128,512], index: 3, kind: input, shape index: {}]
  %s4 = inlined_call_operand.hbm [shape: bf16[128,512], index: 4, kind: input, shape index: {}]
  %s5 = inlined_call_operand.hbm [shape: bf16[512,128], index: 5, kind: input, shape index: {}]
  %s6 = inlined_call_operand.vmem [shape: f32[1,128], index: 6, kind: input, shape index: {}]
  %s7 = inlined_call_operand.hbm [shape: f32[16,128], index: 7, kind: output, shape index: {}]
  %s8 = sld [smem:[#allocation0]]
  $region54: #{tpu_custom_call.1} parent=0
    _
  %s10 = ssub.s32 1, %s8
  %s11 = scalar_select 0, %s10, %s8
  $region1: #{tpu_custom_call.1} parent=0
    #allocation2 [shape = 'u8[131072]{0}', space=vmem, size = 0x20000, scoped, tag = 'input window, operand 2, single buffered']
    #allocation3 [shape = 's32[1]{0}', space=sflag, size = 0x4, scoped, tag = 'scoped memory for tpu_custom_call.1']
    #allocation4 [shape = 's32[1]{0}', space=sflag, size = 0x4, scoped, tag = 'scoped memory for tpu_custom_call.1']
    #allocation5 [shape = 'u8[131072]{0}', space=vmem, size = 0x20000, scoped, tag = 'input window, operand 3, single buffered']
    #allocation6 [shape = 's32[1]{0}', space=sflag, size = 0x4, scoped, tag = 'scoped memory for tpu_custom_call.1']
    #allocation7 [shape = 'u8[131072]{0}', space=vmem, size = 0x20000, scoped, tag = 'input window, operand 4, single buffered']
    #allocation8 [shape = 'u8[131072]{0}', space=vmem, size = 0x20000, scoped, tag = 'input window, operand 5, single buffered']
    #allocation9 [shape = 's32[1]{0}', space=sflag, size = 0x4, scoped, tag = 'scoped memory for tpu_custom_call.1']
    #allocation10 [shape = 'u8[8192]{0}', space=vmem, size = 0x2000, scoped, tag = 'output window, operand 0, single buffered']
    %12 = vsyncpa [#allocation3], 0
    %13 = vsyncpa [#allocation6], 0
    %14 = vsyncpa [#allocation9], 0
    %15 = vsyncpa [#allocation4], 0
    // Predicated region
    $region2: #{tpu_custom_call.1} parent=1 // pred_check
      _
    $region3: #{tpu_custom_call.1} parent=1 // pred_check_branch
      %17 = sbr.rel (0) target = $region5
    $region4: #{tpu_custom_call.1} parent=1 // pred_region
      _
    $region5: #{tpu_custom_call.1} parent=1 // pred_fallthru
      _
    // Predicated region
    $region6: #{tpu_custom_call.1} parent=1 // pred_check
      _
    $region7: #{tpu_custom_call.1} parent=1 // pred_check_branch
      %19 = sbr.rel (0) target = $region9
    $region8: #{tpu_custom_call.1} parent=1 // pred_region
      _
    $region9: #{tpu_custom_call.1} parent=1 // pred_fallthru
      _
    // Predicated region
    $region10: #{tpu_custom_call.1} parent=1 // pred_check
      _
    $region11: #{tpu_custom_call.1} parent=1 // pred_check_branch
      %21 = sbr.rel (0) target = $region13
    $region12: #{tpu_custom_call.1} parent=1 // pred_region
      %s23 = ssub.s32 4096, 4096
      %24 = vsyncadd [#allocation3], %s23
      %s25 = sshll.u32 [#allocation2], 4
      %s26 = int_to_ptr.vmem [resolvable:$true] %s25
      %31 = dma.hbm_to_vmem [thread:$0]  %s2, 4096, %s26, [#allocation3], 256, 256, 16
    $region13: #{tpu_custom_call.1} parent=1 // pred_fallthru
      _
    // Predicated region
    $region14: #{tpu_custom_call.1} parent=1 // pred_check
      _
    $region15: #{tpu_custom_call.1} parent=1 // pred_check_branch
      %33 = sbr.rel (0) target = $region17
    $region16: #{tpu_custom_call.1} parent=1 // pred_region
      %s35 = ssub.s32 4096, 4096
      %36 = vsyncadd [#allocation6], %s35
      %s37 = sshll.u32 [#allocation5], 4
      %s38 = int_to_ptr.vmem [resolvable:$true] %s37
      %43 = dma.hbm_to_vmem [thread:$0]  %s3, 4096, %s38, [#allocation6], 256, 256, 16
    $region17: #{tpu_custom_call.1} parent=1 // pred_fallthru
      _
    // Predicated region
    $region18: #{tpu_custom_call.1} parent=1 // pred_check
      _
    $region19: #{tpu_custom_call.1} parent=1 // pred_check_branch
      %45 = sbr.rel (0) target = $region21
    $region20: #{tpu_custom_call.1} parent=1 // pred_region
      %s47 = ssub.s32 4096, 4096
      %48 = vsyncadd [#allocation6], %s47
      %s49 = sshll.u32 [#allocation7], 4
      %s50 = int_to_ptr.vmem [resolvable:$true] %s49
      %55 = dma.hbm_to_vmem [thread:$0]  %s4, 4096, %s50, [#allocation6], 256, 256, 16
    $region21: #{tpu_custom_call.1} parent=1 // pred_fallthru
      _
    // Predicated region
    $region22: #{tpu_custom_call.1} parent=1 // pred_check
      _
    $region23: #{tpu_custom_call.1} parent=1 // pred_check_branch
      %57 = sbr.rel (0) target = $region25
    $region24: #{tpu_custom_call.1} parent=1 // pred_region
      %s59 = ssub.s32 4096, 4096
      %60 = vsyncadd [#allocation9], %s59
      %s61 = sshll.u32 [#allocation8], 4
      %s62 = int_to_ptr.vmem [resolvable:$true] %s61
      %67 = dma.hbm_to_vmem [thread:$0]  %s5, 4096, %s62, [#allocation9], 64, 64, 4
    $region25: #{tpu_custom_call.1} parent=1 // pred_fallthru
      _
    // Predicated region
    $region26: #{tpu_custom_call.1} parent=1 // pred_check
      _
    $region27: #{tpu_custom_call.1} parent=1 // pred_check_branch
      %69 = sbr.rel (0) target = $region29
    $region28: #{tpu_custom_call.1} parent=1 // pred_region
      _
    $region29: #{tpu_custom_call.1} parent=1 // pred_fallthru
      _
    // Predicated region
    $region30: #{tpu_custom_call.1} parent=1 // pred_check
      _
    $region31: #{tpu_custom_call.1} parent=1 // pred_check_branch
      %71 = sbr.rel (0) target = $region33
    $region32: #{tpu_custom_call.1} parent=1 // pred_region
      %72 = dma.done [#allocation3], 4096
    $region33: #{tpu_custom_call.1} parent=1 // pred_fallthru
      _
    // Predicated region
    $region34: #{tpu_custom_call.1} parent=1 // pred_check
      _
    $region35: #{tpu_custom_call.1} parent=1 // pred_check_branch
      %74 = sbr.rel (0) target = $region37
    $region36: #{tpu_custom_call.1} parent=1 // pred_region
      %75 = dma.done [#allocation6], 4096
    $region37: #{tpu_custom_call.1} parent=1 // pred_fallthru
      _
    // Predicated region
    $region38: #{tpu_custom_call.1} parent=1 // pred_check
      _
    $region39: #{tpu_custom_call.1} parent=1 // pred_check_branch
      %77 = sbr.rel (0) target = $region41
    $region40: #{tpu_custom_call.1} parent=1 // pred_region
      %78 = dma.done [#allocation6], 4096
    $region41: #{tpu_custom_call.1} parent=1 // pred_fallthru
      _
    // Predicated region
    $region42: #{tpu_custom_call.1} parent=1 // pred_check
      _
    $region43: #{tpu_custom_call.1} parent=1 // pred_check_branch
      %80 = sbr.rel (0) target = $region45
    $region44: #{tpu_custom_call.1} parent=1 // pred_region
      %81 = dma.done [#allocation9], 4096
    $region45: #{tpu_custom_call.1} parent=1 // pred_fallthru
      _
    %v83 = vld [vmem:[%s0] sm:$0xf]
    %v84 = vld [vmem:[%s0 + $0x4] sm:$0xf]
    %v85 = vld [vmem:[%s0 + $0x8] sm:$0xf]
    %v86 = vld [vmem:[%s0 + $0xc] sm:$0xf]
    %v87 = vld [vmem:[%s0 + $0x10] sm:$0xf]
    %v88 = vld [vmem:[%s0 + $0x14] sm:$0xf]
    %v89 = vld [vmem:[%s0 + $0x18] sm:$0xf]
    %v90 = vld [vmem:[%s0 + $0x1c] sm:$0xf]
    %v91 = vld [vmem:[%s0 + $0x20] sm:$0xf]
    %v92 = vld [vmem:[%s0 + $0x24] sm:$0xf]
    %v93 = vld [vmem:[%s0 + $0x28] sm:$0xf]
    %v94 = vld [vmem:[%s0 + $0x2c] sm:$0xf]
    %v95 = vld [vmem:[%s0 + $0x30] sm:$0xf]
    %v96 = vld [vmem:[%s0 + $0x34] sm:$0xf]
    %v97 = vld [vmem:[%s0 + $0x38] sm:$0xf]
    %v98 = vld [vmem:[%s0 + $0x3c] sm:$0xf]
    %v99 = vld [vmem:[%s1] sm:$0xff]
    %v116 = vunpack.c.l.b16 %v83
    %v117 = vunpack.c.l.b16 %v84
    %v118 = vunpack.c.l.b16 %v85
    %v119 = vunpack.c.l.b16 %v86
    %v120 = vunpack.c.l.b16 %v87
    %v121 = vunpack.c.l.b16 %v88
    %v122 = vunpack.c.l.b16 %v89
    %v123 = vunpack.c.l.b16 %v90
    %v124 = vunpack.c.l.b16 %v91
    %v125 = vunpack.c.l.b16 %v92
    %v126 = vunpack.c.l.b16 %v93
    %v127 = vunpack.c.l.b16 %v94
    %v128 = vunpack.c.l.b16 %v95
    %v129 = vunpack.c.l.b16 %v96
    %v130 = vunpack.c.l.b16 %v97
    %v131 = vunpack.c.l.b16 %v98
    %v132 = vpack.c.b16 %v117, %v116
    %v133 = vpack.c.b16 %v119, %v118
    %v134 = vpack.c.b16 %v121, %v120
    %v135 = vpack.c.b16 %v123, %v122
    %v136 = vpack.c.b16 %v125, %v124
    %v137 = vpack.c.b16 %v127, %v126
    %v138 = vpack.c.b16 %v129, %v128
    %v139 = vpack.c.b16 %v131, %v130
    %v141 = vcombine.high %v99, %v99
    %v143 = vunpack.c.l.s4 1983009808
    %v144 = vunpack.c.0.s8 %v143
    %v145 = vlaneseq
    %v146 = vshrl.u32 %v145, 7
    %v147 = vsub.s32 %v144, %v146
    %v148 = vrot.slane %v99, %v147
    %v150 = vunpack.c.l.s4 1983009808
    %v151 = vunpack.c.0.s8 %v150
    %v152 = vlaneseq
    %v153 = vshrl.u32 %v152, 7
    %v154 = vsub.s32 %v151, %v153
    %v155 = vrot.slane %v141, %v154
    %v156 = vcombine.high %v148, %v148
    %v157 = vcombine.high %v155, %v155
    %vm158 = vcmask 31744
    %v160 = vsel %vm158, %v132, 0
    %v163 = vsel %vm158, %v133, 0
    %v166 = vsel %vm158, %v134, 0
    %v169 = vsel %vm158, %v135, 0
    %v172 = vsel %vm158, %v136, 0
    %v175 = vsel %vm158, %v137, 0
    %v178 = vsel %vm158, %v138, 0
    %v181 = vsel %vm158, %v139, 0
    %vm183 = vcmask 1041408
    %v185 = vsel %vm183, %v148, 0
    %v188 = vsel %vm183, %v156, 0
    %v191 = vsel %vm183, %v155, 0
    %v194 = vsel %vm183, %v157, 0
    %196 = vmatprep.subr.bf16.mxu0 %v188
    %197 = vmatpush1.bf16.msra.mxu0 %v185
    %198 = vmatprep.subr.bf16.mxu0 0
    %199 = vmatpush1.bf16.msra.mxu0 0
    %200 = vmatprep.subr.bf16.mxu0 0
    %201 = vmatpush1.bf16.msra.mxu0 0
    %202 = vmatprep.subr.bf16.mxu0 0
    %203 = vmatpush1.bf16.msra.mxu0 0
    %204 = vmatprep.subr.bf16.mxu0 0
    %205 = vmatpush1.bf16.msra.mxu0 0
    %206 = vmatprep.subr.bf16.mxu0 0
    %207 = vmatpush1.bf16.msra.mxu0 0
    %208 = vmatprep.subr.bf16.mxu0 0
    %209 = vmatpush1.bf16.msra.mxu0 0
    %210 = vmatprep.subr.bf16.mxu0 0
    %211 = vmatpush1.bf16.msra.mxu0 0
    %212 = vmatprep.subr.bf16.mxu0 0
    %213 = vmatpush1.bf16.msra.mxu0 0
    %214 = vmatprep.subr.bf16.mxu0 0
    %215 = vmatpush1.bf16.msra.mxu0 0
    %216 = vmatprep.subr.bf16.mxu0 0
    %217 = vmatpush1.bf16.msra.mxu0 0
    %218 = vmatprep.subr.bf16.mxu0 0
    %219 = vmatpush1.bf16.msra.mxu0 0
    %220 = vmatprep.subr.bf16.mxu0 0
    %221 = vmatpush1.bf16.msra.mxu0 0
    %222 = vmatprep.subr.bf16.mxu0 0
    %223 = vmatpush1.bf16.msra.mxu0 0
    %224 = vmatprep.subr.bf16.mxu0 0
    %225 = vmatpush1.bf16.msra.mxu0 0
    %226 = vmatprep.subr.bf16.mxu0 0
    %227 = vmatpush1.bf16.msra.mxu0 0
    %228 = vmatprep.mubr.bf16.mxu0 0
    %229 = vmatmul.mubr.bf16.gmra.mrb[0].mxu0 %v160
    %v230 = vpop.f32.mrb[0].mxu0
    %v231 = vadd.f32 0.0, %v230
    %v232 = vpop.f32.mrb[0].mxu0
    %v233 = vadd.f32 0.0, %v232
    %v234 = vpop.f32.mrb[0].mxu0
    %v235 = vadd.f32 0.0, %v234
    %v236 = vpop.f32.mrb[0].mxu0
    %v237 = vadd.f32 0.0, %v236
    %238 = vmatprep.mubr.bf16.mxu0 0
    %239 = vmatmul.mubr.bf16.gmra.mrb[0].mxu0 %v163
    %v240 = vpop.f32.mrb[0].mxu0
    %v241 = vadd.f32 0.0, %v240
    %v242 = vpop.f32.mrb[0].mxu0
    %v243 = vadd.f32 0.0, %v242
    %v244 = vpop.f32.mrb[0].mxu0
    %v245 = vadd.f32 0.0, %v244
    %v246 = vpop.f32.mrb[0].mxu0
    %v247 = vadd.f32 0.0, %v246
    %248 = vmatprep.mubr.bf16.mxu0 0
    %249 = vmatmul.mubr.bf16.gmra.mrb[0].mxu0 %v166
    %v250 = vpop.f32.mrb[0].mxu0
    %v251 = vadd.f32 0.0, %v250
    %v252 = vpop.f32.mrb[0].mxu0
    %v253 = vadd.f32 0.0, %v252
    %v254 = vpop.f32.mrb[0].mxu0
    %v255 = vadd.f32 0.0, %v254
    %v256 = vpop.f32.mrb[0].mxu0
    %v257 = vadd.f32 0.0, %v256
    %258 = vmatprep.mubr.bf16.mxu0 0
    %259 = vmatmul.mubr.bf16.gmra.mrb[0].mxu0 %v169
    %v260 = vpop.f32.mrb[0].mxu0
    %v261 = vadd.f32 0.0, %v260
    %v262 = vpop.f32.mrb[0].mxu0
    %v263 = vadd.f32 0.0, %v262
    %v264 = vpop.f32.mrb[0].mxu0
    %v265 = vadd.f32 0.0, %v264
    %v266 = vpop.f32.mrb[0].mxu0
    %v267 = vadd.f32 0.0, %v266
    %268 = vmatprep.mubr.bf16.mxu0 0
    %269 = vmatmul.mubr.bf16.gmra.mrb[0].mxu0 %v172
    %v270 = vpop.f32.mrb[0].mxu0
    %v271 = vadd.f32 0.0, %v270
    %v272 = vpop.f32.mrb[0].mxu0
    %v273 = vadd.f32 0.0, %v272
    %v274 = vpop.f32.mrb[0].mxu0
    %v275 = vadd.f32 0.0, %v274
    %v276 = vpop.f32.mrb[0].mxu0
    %v277 = vadd.f32 0.0, %v276
    %278 = vmatprep.mubr.bf16.mxu0 0
    %279 = vmatmul.mubr.bf16.gmra.mrb[0].mxu0 %v175
    %v280 = vpop.f32.mrb[0].mxu0
    %v281 = vadd.f32 0.0, %v280
    %v282 = vpop.f32.mrb[0].mxu0
    %v283 = vadd.f32 0.0, %v282
    %v284 = vpop.f32.mrb[0].mxu0
    %v285 = vadd.f32 0.0, %v284
    %v286 = vpop.f32.mrb[0].mxu0
    %v287 = vadd.f32 0.0, %v286
    %288 = vmatprep.mubr.bf16.mxu0 0
    %289 = vmatmul.mubr.bf16.gmra.mrb[0].mxu0 %v178
    %v290 = vpop.f32.mrb[0].mxu0
    %v291 = vadd.f32 0.0, %v290
    %v292 = vpop.f32.mrb[0].mxu0
    %v293 = vadd.f32 0.0, %v292
    %v294 = vpop.f32.mrb[0].mxu0
    %v295 = vadd.f32 0.0, %v294
    %v296 = vpop.f32.mrb[0].mxu0
    %v297 = vadd.f32 0.0, %v296
    %298 = vmatprep.mubr.bf16.mxu0 0
    %299 = vmatmul.mubr.bf16.gmra.mrb[0].mxu0 %v181
    %v300 = vpop.f32.mrb[0].mxu0
    %v301 = vadd.f32 0.0, %v300
    %v302 = vpop.f32.mrb[0].mxu0
    %v303 = vadd.f32 0.0, %v302
    %v304 = vpop.f32.mrb[0].mxu0
    %v305 = vadd.f32 0.0, %v304
    %v306 = vpop.f32.mrb[0].mxu0
    %v307 = vadd.f32 0.0, %v306
    %308 = vdwg.mxu0
    %309 = vmatprep.subr.bf16.mxu0 %v194
    %310 = vmatpush1.bf16.msra.mxu0 %v191
    %311 = vmatprep.subr.bf16.mxu0 0
    %312 = vmatpush1.bf16.msra.mxu0 0
    %313 = vmatprep.subr.bf16.mxu0 0
    %314 = vmatpush1.bf16.msra.mxu0 0
    %315 = vmatprep.subr.bf16.mxu0 0
    %316 = vmatpush1.bf16.msra.mxu0 0
    %317 = vmatprep.subr.bf16.mxu0 0
    %318 = vmatpush1.bf16.msra.mxu0 0
    %319 = vmatprep.subr.bf16.mxu0 0
    %320 = vmatpush1.bf16.msra.mxu0 0
    %321 = vmatprep.subr.bf16.mxu0 0
    %322 = vmatpush1.bf16.msra.mxu0 0
    %323 = vmatprep.subr.bf16.mxu0 0
    %324 = vmatpush1.bf16.msra.mxu0 0
    %325 = vmatprep.subr.bf16.mxu0 0
    %326 = vmatpush1.bf16.msra.mxu0 0
    %327 = vmatprep.subr.bf16.mxu0 0
    %328 = vmatpush1.bf16.msra.mxu0 0
    %329 = vmatprep.subr.bf16.mxu0 0
    %330 = vmatpush1.bf16.msra.mxu0 0
    %331 = vmatprep.subr.bf16.mxu0 0
    %332 = vmatpush1.bf16.msra.mxu0 0
    %333 = vmatprep.subr.bf16.mxu0 0
    %334 = vmatpush1.bf16.msra.mxu0 0
    %335 = vmatprep.subr.bf16.mxu0 0
    %336 = vmatpush1.bf16.msra.mxu0 0
    %337 = vmatprep.subr.bf16.mxu0 0
    %338 = vmatpush1.bf16.msra.mxu0 0
    %339 = vmatprep.subr.bf16.mxu0 0
    %340 = vmatpush1.bf16.msra.mxu0 0
    %341 = vmatprep.mubr.bf16.mxu0 0
    %342 = vmatmul.mubr.bf16.gmra.mrb[0].mxu0 %v160
    %v343 = vpop.f32.mrb[0].mxu0
    %v344 = vadd.f32 0.0, %v343
    %v345 = vpop.f32.mrb[0].mxu0
    %v346 = vadd.f32 0.0, %v345
    %v347 = vpop.f32.mrb[0].mxu0
    %v348 = vadd.f32 0.0, %v347
    %v349 = vpop.f32.mrb[0].mxu0
    %v350 = vadd.f32 0.0, %v349
    %351 = vmatprep.mubr.bf16.mxu0 0
    %352 = vmatmul.mubr.bf16.gmra.mrb[0].mxu0 %v163
    %v353 = vpop.f32.mrb[0].mxu0
    %v354 = vadd.f32 0.0, %v353
    %v355 = vpop.f32.mrb[0].mxu0
    %v356 = vadd.f32 0.0, %v355
    %v357 = vpop.f32.mrb[0].mxu0
    %v358 = vadd.f32 0.0, %v357
    %v359 = vpop.f32.mrb[0].mxu0
    %v360 = vadd.f32 0.0, %v359
    %361 = vmatprep.mubr.bf16.mxu0 0
    %362 = vmatmul.mubr.bf16.gmra.mrb[0].mxu0 %v166
    %v363 = vpop.f32.mrb[0].mxu0
    %v364 = vadd.f32 0.0, %v363
    %v365 = vpop.f32.mrb[0].mxu0
    %v366 = vadd.f32 0.0, %v365
    %v367 = vpop.f32.mrb[0].mxu0
    %v368 = vadd.f32 0.0, %v367
    %v369 = vpop.f32.mrb[0].mxu0
    %v370 = vadd.f32 0.0, %v369
    %371 = vmatprep.mubr.bf16.mxu0 0
    %372 = vmatmul.mubr.bf16.gmra.mrb[0].mxu0 %v169
    %v373 = vpop.f32.mrb[0].mxu0
    %v374 = vadd.f32 0.0, %v373
    %v375 = vpop.f32.mrb[0].mxu0
    %v376 = vadd.f32 0.0, %v375
    %v377 = vpop.f32.mrb[0].mxu0
    %v378 = vadd.f32 0.0, %v377
    %v379 = vpop.f32.mrb[0].mxu0
    %v380 = vadd.f32 0.0, %v379
    %381 = vmatprep.mubr.bf16.mxu0 0
    %382 = vmatmul.mubr.bf16.gmra.mrb[0].mxu0 %v172
    %v383 = vpop.f32.mrb[0].mxu0
    %v384 = vadd.f32 0.0, %v383
    %v385 = vpop.f32.mrb[0].mxu0
    %v386 = vadd.f32 0.0, %v385
    %v387 = vpop.f32.mrb[0].mxu0
    %v388 = vadd.f32 0.0, %v387
    %v389 = vpop.f32.mrb[0].mxu0
    %v390 = vadd.f32 0.0, %v389
    %391 = vmatprep.mubr.bf16.mxu0 0
    %392 = vmatmul.mubr.bf16.gmra.mrb[0].mxu0 %v175
    %v393 = vpop.f32.mrb[0].mxu0
    %v394 = vadd.f32 0.0, %v393
    %v395 = vpop.f32.mrb[0].mxu0
    %v396 = vadd.f32 0.0, %v395
    %v397 = vpop.f32.mrb[0].mxu0
    %v398 = vadd.f32 0.0, %v397
    %v399 = vpop.f32.mrb[0].mxu0
    %v400 = vadd.f32 0.0, %v399
    %401 = vmatprep.mubr.bf16.mxu0 0
    %402 = vmatmul.mubr.bf16.gmra.mrb[0].mxu0 %v178
    %v403 = vpop.f32.mrb[0].mxu0
    %v404 = vadd.f32 0.0, %v403
    %v405 = vpop.f32.mrb[0].mxu0
    %v406 = vadd.f32 0.0, %v405
    %v407 = vpop.f32.mrb[0].mxu0
    %v408 = vadd.f32 0.0, %v407
    %v409 = vpop.f32.mrb[0].mxu0
    %v410 = vadd.f32 0.0, %v409
    %411 = vmatprep.mubr.bf16.mxu0 0
    %412 = vmatmul.mubr.bf16.gmra.mrb[0].mxu0 %v181
    %v413 = vpop.f32.mrb[0].mxu0
    %v414 = vadd.f32 0.0, %v413
    %v415 = vpop.f32.mrb[0].mxu0
    %v416 = vadd.f32 0.0, %v415
    %v417 = vpop.f32.mrb[0].mxu0
    %v418 = vadd.f32 0.0, %v417
    %v419 = vpop.f32.mrb[0].mxu0
    %v420 = vadd.f32 0.0, %v419
    %421 = vdwg.mxu0
    %v422 = vld [vmem:[#allocation2] sm:$0xff]
    %v423 = vld [vmem:[#allocation2 + $0x8] sm:$0xff]
    %v424 = vld [vmem:[#allocation2 + $0x10] sm:$0xff]
    %v425 = vld [vmem:[#allocation2 + $0x18] sm:$0xff]
    %v426 = vld [vmem:[#allocation2 + $0x20] sm:$0xff]
    %v427 = vld [vmem:[#allocation2 + $0x28] sm:$0xff]
    %v428 = vld [vmem:[#allocation2 + $0x30] sm:$0xff]
    %v429 = vld [vmem:[#allocation2 + $0x38] sm:$0xff]
    %v430 = vld [vmem:[#allocation2 + $0x40] sm:$0xff]
    %v431 = vld [vmem:[#allocation2 + $0x48] sm:$0xff]
    %v432 = vld [vmem:[#allocation2 + $0x50] sm:$0xff]
    %v433 = vld [vmem:[#allocation2 + $0x58] sm:$0xff]
    %v434 = vld [vmem:[#allocation2 + $0x60] sm:$0xff]
    %v435 = vld [vmem:[#allocation2 + $0x68] sm:$0xff]
    %v436 = vld [vmem:[#allocation2 + $0x70] sm:$0xff]
    %v437 = vld [vmem:[#allocation2 + $0x78] sm:$0xff]
    %v438 = vld [vmem:[#allocation2 + $0x80] sm:$0xff]
    %v439 = vld [vmem:[#allocation2 + $0x88] sm:$0xff]
    %v440 = vld [vmem:[#allocation2 + $0x90] sm:$0xff]
    %v441 = vld [vmem:[#allocation2 + $0x98] sm:$0xff]
    %v442 = vld [vmem:[#allocation2 + $0xa0] sm:$0xff]
    %v443 = vld [vmem:[#allocation2 + $0xa8] sm:$0xff]
    %v444 = vld [vmem:[#allocation2 + $0xb0] sm:$0xff]
    %v445 = vld [vmem:[#allocation2 + $0xb8] sm:$0xff]
    %v446 = vld [vmem:[#allocation2 + $0xc0] sm:$0xff]
    %v447 = vld [vmem:[#allocation2 + $0xc8] sm:$0xff]
    %v448 = vld [vmem:[#allocation2 + $0xd0] sm:$0xff]
    %v449 = vld [vmem:[#allocation2 + $0xd8] sm:$0xff]
    %v450 = vld [vmem:[#allocation2 + $0xe0] sm:$0xff]
    %v451 = vld [vmem:[#allocation2 + $0xe8] sm:$0xff]
    %v452 = vld [vmem:[#allocation2 + $0xf0] sm:$0xff]
    %v453 = vld [vmem:[#allocation2 + $0xf8] sm:$0xff]
    %v454 = vld [vmem:[#allocation5] sm:$0xff]
    %v455 = vld [vmem:[#allocation5 + $0x8] sm:$0xff]
    %v456 = vld [vmem:[#allocation5 + $0x10] sm:$0xff]
    %v457 = vld [vmem:[#allocation5 + $0x18] sm:$0xff]
    %v458 = vld [vmem:[#allocation5 + $0x20] sm:$0xff]
    %v459 = vld [vmem:[#allocation5 + $0x28] sm:$0xff]
    %v460 = vld [vmem:[#allocation5 + $0x30] sm:$0xff]
    %v461 = vld [vmem:[#allocation5 + $0x38] sm:$0xff]
    %v462 = vld [vmem:[#allocation5 + $0x40] sm:$0xff]
    %v463 = vld [vmem:[#allocation5 + $0x48] sm:$0xff]
    %v464 = vld [vmem:[#allocation5 + $0x50] sm:$0xff]
    %v465 = vld [vmem:[#allocation5 + $0x58] sm:$0xff]
    %v466 = vld [vmem:[#allocation5 + $0x60] sm:$0xff]
    %v467 = vld [vmem:[#allocation5 + $0x68] sm:$0xff]
    %v468 = vld [vmem:[#allocation5 + $0x70] sm:$0xff]
    %v469 = vld [vmem:[#allocation5 + $0x78] sm:$0xff]
    %v470 = vld [vmem:[#allocation5 + $0x80] sm:$0xff]
    %v471 = vld [vmem:[#allocation5 + $0x88] sm:$0xff]
    %v472 = vld [vmem:[#allocation5 + $0x90] sm:$0xff]
    %v473 = vld [vmem:[#allocation5 + $0x98] sm:$0xff]
    %v474 = vld [vmem:[#allocation5 + $0xa0] sm:$0xff]
    %v475 = vld [vmem:[#allocation5 + $0xa8] sm:$0xff]
    %v476 = vld [vmem:[#allocation5 + $0xb0] sm:$0xff]
    %v477 = vld [vmem:[#allocation5 + $0xb8] sm:$0xff]
    %v478 = vld [vmem:[#allocation5 + $0xc0] sm:$0xff]
    %v479 = vld [vmem:[#allocation5 + $0xc8] sm:$0xff]
    %v480 = vld [vmem:[#allocation5 + $0xd0] sm:$0xff]
    %v481 = vld [vmem:[#allocation5 + $0xd8] sm:$0xff]
    %v482 = vld [vmem:[#allocation5 + $0xe0] sm:$0xff]
    %v483 = vld [vmem:[#allocation5 + $0xe8] sm:$0xff]
    %v484 = vld [vmem:[#allocation5 + $0xf0] sm:$0xff]
    %v485 = vld [vmem:[#allocation5 + $0xf8] sm:$0xff]
    %v486 = vld [vmem:[#allocation7] sm:$0xff]
    %v487 = vld [vmem:[#allocation7 + $0x8] sm:$0xff]
    %v488 = vld [vmem:[#allocation7 + $0x10] sm:$0xff]
    %v489 = vld [vmem:[#allocation7 + $0x18] sm:$0xff]
    %v490 = vld [vmem:[#allocation7 + $0x20] sm:$0xff]
    %v491 = vld [vmem:[#allocation7 + $0x28] sm:$0xff]
    %v492 = vld [vmem:[#allocation7 + $0x30] sm:$0xff]
    %v493 = vld [vmem:[#allocation7 + $0x38] sm:$0xff]
    %v494 = vld [vmem:[#allocation7 + $0x40] sm:$0xff]
    %v495 = vld [vmem:[#allocation7 + $0x48] sm:$0xff]
    %v496 = vld [vmem:[#allocation7 + $0x50] sm:$0xff]
    %v497 = vld [vmem:[#allocation7 + $0x58] sm:$0xff]
    %v498 = vld [vmem:[#allocation7 + $0x60] sm:$0xff]
    %v499 = vld [vmem:[#allocation7 + $0x68] sm:$0xff]
    %v500 = vld [vmem:[#allocation7 + $0x70] sm:$0xff]
    %v501 = vld [vmem:[#allocation7 + $0x78] sm:$0xff]
    %v502 = vld [vmem:[#allocation7 + $0x80] sm:$0xff]
    %v503 = vld [vmem:[#allocation7 + $0x88] sm:$0xff]
    %v504 = vld [vmem:[#allocation7 + $0x90] sm:$0xff]
    %v505 = vld [vmem:[#allocation7 + $0x98] sm:$0xff]
    %v506 = vld [vmem:[#allocation7 + $0xa0] sm:$0xff]
    %v507 = vld [vmem:[#allocation7 + $0xa8] sm:$0xff]
    %v508 = vld [vmem:[#allocation7 + $0xb0] sm:$0xff]
    %v509 = vld [vmem:[#allocation7 + $0xb8] sm:$0xff]
    %v510 = vld [vmem:[#allocation7 + $0xc0] sm:$0xff]
    %v511 = vld [vmem:[#allocation7 + $0xc8] sm:$0xff]
    %v512 = vld [vmem:[#allocation7 + $0xd0] sm:$0xff]
    %v513 = vld [vmem:[#allocation7 + $0xd8] sm:$0xff]
    %v514 = vld [vmem:[#allocation7 + $0xe0] sm:$0xff]
    %v515 = vld [vmem:[#allocation7 + $0xe8] sm:$0xff]
    %v516 = vld [vmem:[#allocation7 + $0xf0] sm:$0xff]
    %v517 = vld [vmem:[#allocation7 + $0xf8] sm:$0xff]
    %v518 = vld [vmem:[#allocation8] sm:$0xf]
    %v519 = vld [vmem:[#allocation8 + $0x4] sm:$0xf]
    %v520 = vld [vmem:[#allocation8 + $0x8] sm:$0xf]
    %v521 = vld [vmem:[#allocation8 + $0xc] sm:$0xf]
    %v522 = vld [vmem:[#allocation8 + $0x10] sm:$0xf]
    %v523 = vld [vmem:[#allocation8 + $0x14] sm:$0xf]
    %v524 = vld [vmem:[#allocation8 + $0x18] sm:$0xf]
    %v525 = vld [vmem:[#allocation8 + $0x1c] sm:$0xf]
    %v526 = vld [vmem:[#allocation8 + $0x20] sm:$0xf]
    %v527 = vld [vmem:[#allocation8 + $0x24] sm:$0xf]
    %v528 = vld [vmem:[#allocation8 + $0x28] sm:$0xf]
    %v529 = vld [vmem:[#allocation8 + $0x2c] sm:$0xf]
    %v530 = vld [vmem:[#allocation8 + $0x30] sm:$0xf]
    %v531 = vld [vmem:[#allocation8 + $0x34] sm:$0xf]
    %v532 = vld [vmem:[#allocation8 + $0x38] sm:$0xf]
    %v533 = vld [vmem:[#allocation8 + $0x3c] sm:$0xf]
    %v534 = vld [vmem:[#allocation8 + $0x40] sm:$0xf]
    %v535 = vld [vmem:[#allocation8 + $0x44] sm:$0xf]
    %v536 = vld [vmem:[#allocation8 + $0x48] sm:$0xf]
    %v537 = vld [vmem:[#allocation8 + $0x4c] sm:$0xf]
    %v538 = vld [vmem:[#allocation8 + $0x50] sm:$0xf]
    %v539 = vld [vmem:[#allocation8 + $0x54] sm:$0xf]
    %v540 = vld [vmem:[#allocation8 + $0x58] sm:$0xf]
    %v541 = vld [vmem:[#allocation8 + $0x5c] sm:$0xf]
    %v542 = vld [vmem:[#allocation8 + $0x60] sm:$0xf]
    %v543 = vld [vmem:[#allocation8 + $0x64] sm:$0xf]
    %v544 = vld [vmem:[#allocation8 + $0x68] sm:$0xf]
    %v545 = vld [vmem:[#allocation8 + $0x6c] sm:$0xf]
    %v546 = vld [vmem:[#allocation8 + $0x70] sm:$0xf]
    %v547 = vld [vmem:[#allocation8 + $0x74] sm:$0xf]
    %v548 = vld [vmem:[#allocation8 + $0x78] sm:$0xf]
    %v549 = vld [vmem:[#allocation8 + $0x7c] sm:$0xf]
    %v550 = vld [vmem:[#allocation8 + $0x80] sm:$0xf]
    %v551 = vld [vmem:[#allocation8 + $0x84] sm:$0xf]
    %v552 = vld [vmem:[#allocation8 + $0x88] sm:$0xf]
    %v553 = vld [vmem:[#allocation8 + $0x8c] sm:$0xf]
    %v554 = vld [vmem:[#allocation8 + $0x90] sm:$0xf]
    %v555 = vld [vmem:[#allocation8 + $0x94] sm:$0xf]
    %v556 = vld [vmem:[#allocation8 + $0x98] sm:$0xf]
    %v557 = vld [vmem:[#allocation8 + $0x9c] sm:$0xf]
    %v558 = vld [vmem:[#allocation8 + $0xa0] sm:$0xf]
    %v559 = vld [vmem:[#allocation8 + $0xa4] sm:$0xf]
    %v560 = vld [vmem:[#allocation8 + $0xa8] sm:$0xf]
    %v561 = vld [vmem:[#allocation8 + $0xac] sm:$0xf]
    %v562 = vld [vmem:[#allocation8 + $0xb0] sm:$0xf]
    %v563 = vld [vmem:[#allocation8 + $0xb4] sm:$0xf]
    %v564 = vld [vmem:[#allocation8 + $0xb8] sm:$0xf]
    %v565 = vld [vmem:[#allocation8 + $0xbc] sm:$0xf]
    %v566 = vld [vmem:[#allocation8 + $0xc0] sm:$0xf]
    %v567 = vld [vmem:[#allocation8 + $0xc4] sm:$0xf]
    %v568 = vld [vmem:[#allocation8 + $0xc8] sm:$0xf]
    %v569 = vld [vmem:[#allocation8 + $0xcc] sm:$0xf]
    %v570 = vld [vmem:[#allocation8 + $0xd0] sm:$0xf]
    %v571 = vld [vmem:[#allocation8 + $0xd4] sm:$0xf]
    %v572 = vld [vmem:[#allocation8 + $0xd8] sm:$0xf]
    %v573 = vld [vmem:[#allocation8 + $0xdc] sm:$0xf]
    %v574 = vld [vmem:[#allocation8 + $0xe0] sm:$0xf]
    %v575 = vld [vmem:[#allocation8 + $0xe4] sm:$0xf]
    %v576 = vld [vmem:[#allocation8 + $0xe8] sm:$0xf]
    %v577 = vld [vmem:[#allocation8 + $0xec] sm:$0xf]
    %v578 = vld [vmem:[#allocation8 + $0xf0] sm:$0xf]
    %v579 = vld [vmem:[#allocation8 + $0xf4] sm:$0xf]
    %v580 = vld [vmem:[#allocation8 + $0xf8] sm:$0xf]
    %v581 = vld [vmem:[#allocation8 + $0xfc] sm:$0xf]
    %v614 = vunpack.c.l.b16 %v422
    %v615 = vunpack.c.h.b16 %v422
    %v616 = vunpack.c.l.b16 %v423
    %v617 = vunpack.c.h.b16 %v423
    %v618 = vunpack.c.l.b16 %v424
    %v619 = vunpack.c.h.b16 %v424
    %v620 = vunpack.c.l.b16 %v425
    %v621 = vunpack.c.h.b16 %v425
    %v622 = vunpack.c.l.b16 %v426
    %v623 = vunpack.c.h.b16 %v426
    %v624 = vunpack.c.l.b16 %v427
    %v625 = vunpack.c.h.b16 %v427
    %v626 = vunpack.c.l.b16 %v428
    %v627 = vunpack.c.h.b16 %v428
    %v628 = vunpack.c.l.b16 %v429
    %v629 = vunpack.c.h.b16 %v429
    %v630 = vunpack.c.l.b16 %v430
    %v631 = vunpack.c.h.b16 %v430
    %v632 = vunpack.c.l.b16 %v431
    %v633 = vunpack.c.h.b16 %v431
    %v634 = vunpack.c.l.b16 %v432
    %v635 = vunpack.c.h.b16 %v432
    %v636 = vunpack.c.l.b16 %v433
    %v637 = vunpack.c.h.b16 %v433
    %v638 = vunpack.c.l.b16 %v434
    %v639 = vunpack.c.h.b16 %v434
    %v640 = vunpack.c.l.b16 %v435
    %v641 = vunpack.c.h.b16 %v435
    %v642 = vunpack.c.l.b16 %v436
    %v643 = vunpack.c.h.b16 %v436
    %v644 = vunpack.c.l.b16 %v437
    %v645 = vunpack.c.h.b16 %v437
    %v646 = vunpack.c.l.b16 %v438
    %v647 = vunpack.c.h.b16 %v438
    %v648 = vunpack.c.l.b16 %v439
    %v649 = vunpack.c.h.b16 %v439
    %v650 = vunpack.c.l.b16 %v440
    %v651 = vunpack.c.h.b16 %v440
    %v652 = vunpack.c.l.b16 %v441
    %v653 = vunpack.c.h.b16 %v441
    %v654 = vunpack.c.l.b16 %v442
    %v655 = vunpack.c.h.b16 %v442
    %v656 = vunpack.c.l.b16 %v443
    %v657 = vunpack.c.h.b16 %v443
    %v658 = vunpack.c.l.b16 %v444
    %v659 = vunpack.c.h.b16 %v444
    %v660 = vunpack.c.l.b16 %v445
    %v661 = vunpack.c.h.b16 %v445
    %v662 = vunpack.c.l.b16 %v446
    %v663 = vunpack.c.h.b16 %v446
    %v664 = vunpack.c.l.b16 %v447
    %v665 = vunpack.c.h.b16 %v447
    %v666 = vunpack.c.l.b16 %v448
    %v667 = vunpack.c.h.b16 %v448
    %v668 = vunpack.c.l.b16 %v449
    %v669 = vunpack.c.h.b16 %v449
    %v670 = vunpack.c.l.b16 %v450
    %v671 = vunpack.c.h.b16 %v450
    %v672 = vunpack.c.l.b16 %v451
    %v673 = vunpack.c.h.b16 %v451
    %v674 = vunpack.c.l.b16 %v452
    %v675 = vunpack.c.h.b16 %v452
    %v676 = vunpack.c.l.b16 %v453
    %v677 = vunpack.c.h.b16 %v453
    %v678 = vpack.c.b16 %v618, %v614
    %v679 = vpack.c.b16 %v619, %v615
    %v680 = vpack.c.b16 %v620, %v616
    %v681 = vpack.c.b16 %v621, %v617
    %v682 = vpack.c.b16 %v626, %v622
    %v683 = vpack.c.b16 %v627, %v623
    %v684 = vpack.c.b16 %v628, %v624
    %v685 = vpack.c.b16 %v629, %v625
    %v686 = vpack.c.b16 %v634, %v630
    %v687 = vpack.c.b16 %v635, %v631
    %v688 = vpack.c.b16 %v636, %v632
    %v689 = vpack.c.b16 %v637, %v633
    %v690 = vpack.c.b16 %v642, %v638
    %v691 = vpack.c.b16 %v643, %v639
    %v692 = vpack.c.b16 %v644, %v640
    %v693 = vpack.c.b16 %v645, %v641
    %v694 = vpack.c.b16 %v650, %v646
    %v695 = vpack.c.b16 %v651, %v647
    %v696 = vpack.c.b16 %v652, %v648
    %v697 = vpack.c.b16 %v653, %v649
    %v698 = vpack.c.b16 %v658, %v654
    %v699 = vpack.c.b16 %v659, %v655
    %v700 = vpack.c.b16 %v660, %v656
    %v701 = vpack.c.b16 %v661, %v657
    %v702 = vpack.c.b16 %v666, %v662
    %v703 = vpack.c.b16 %v667, %v663
    %v704 = vpack.c.b16 %v668, %v664
    %v705 = vpack.c.b16 %v669, %v665
    %v706 = vpack.c.b16 %v674, %v670
    %v707 = vpack.c.b16 %v675, %v671
    %v708 = vpack.c.b16 %v676, %v672
    %v709 = vpack.c.b16 %v677, %v673
    %742 = vmatprep.subr.bf16.mxu0 %v679
    %743 = vmatpush1.bf16.msra.mxu0 %v678
    %744 = vmatprep.subr.bf16.mxu0 %v683
    %745 = vmatpush1.bf16.msra.mxu0 %v682
    %746 = vmatprep.subr.bf16.mxu0 %v687
    %747 = vmatpush1.bf16.msra.mxu0 %v686
    %748 = vmatprep.subr.bf16.mxu0 %v691
    %749 = vmatpush1.bf16.msra.mxu0 %v690
    %750 = vmatprep.subr.bf16.mxu0 %v695
    %751 = vmatpush1.bf16.msra.mxu0 %v694
    %752 = vmatprep.subr.bf16.mxu0 %v699
    %753 = vmatpush1.bf16.msra.mxu0 %v698
    %754 = vmatprep.subr.bf16.mxu0 %v703
    %755 = vmatpush1.bf16.msra.mxu0 %v702
    %756 = vmatprep.subr.bf16.mxu0 %v707
    %757 = vmatpush1.bf16.msra.mxu0 %v706
    %758 = vmatprep.subr.bf16.mxu0 0
    %759 = vmatpush1.bf16.msra.mxu0 0
    %760 = vmatprep.subr.bf16.mxu0 0
    %761 = vmatpush1.bf16.msra.mxu0 0
    %762 = vmatprep.subr.bf16.mxu0 0
    %763 = vmatpush1.bf16.msra.mxu0 0
    %764 = vmatprep.subr.bf16.mxu0 0
    %765 = vmatpush1.bf16.msra.mxu0 0
    %766 = vmatprep.subr.bf16.mxu0 0
    %767 = vmatpush1.bf16.msra.mxu0 0
    %768 = vmatprep.subr.bf16.mxu0 0
    %769 = vmatpush1.bf16.msra.mxu0 0
    %770 = vmatprep.subr.bf16.mxu0 0
    %771 = vmatpush1.bf16.msra.mxu0 0
    %772 = vmatprep.subr.bf16.mxu0 0
    %773 = vmatpush1.bf16.msra.mxu0 0
    %774 = vmatprep.mubr.bf16.mxu0 0
    %775 = vmatmul.mubr.bf16.gmra.mrb[0].mxu0 0
    %v776 = vpop.f32.mrb[0].mxu0
    %v777 = vadd.f32 0.0, %v776
    %v778 = vpop.f32.mrb[0].mxu0
    %v779 = vadd.f32 0.0, %v778
    %v780 = vpop.f32.mrb[0].mxu0
    %v781 = vadd.f32 0.0, %v780
    %v782 = vpop.f32.mrb[0].mxu0
    %v783 = vadd.f32 0.0, %v782
    %784 = vdwg.mxu0
    %785 = vmatprep.subr.bf16.mxu0 %v681
    %786 = vmatpush1.bf16.msra.mxu0 %v680
    %787 = vmatprep.subr.bf16.mxu0 %v685
    %788 = vmatpush1.bf16.msra.mxu0 %v684
    %789 = vmatprep.subr.bf16.mxu0 %v689
    %790 = vmatpush1.bf16.msra.mxu0 %v688
    %791 = vmatprep.subr.bf16.mxu0 %v693
    %792 = vmatpush1.bf16.msra.mxu0 %v692
    %793 = vmatprep.subr.bf16.mxu0 %v697
    %794 = vmatpush1.bf16.msra.mxu0 %v696
    %795 = vmatprep.subr.bf16.mxu0 %v701
    %796 = vmatpush1.bf16.msra.mxu0 %v700
    %797 = vmatprep.subr.bf16.mxu0 %v705
    %798 = vmatpush1.bf16.msra.mxu0 %v704
    %799 = vmatprep.subr.bf16.mxu0 %v709
    %800 = vmatpush1.bf16.msra.mxu0 %v708
    %801 = vmatprep.subr.bf16.mxu0 0
    %802 = vmatpush1.bf16.msra.mxu0 0
    %803 = vmatprep.subr.bf16.mxu0 0
    %804 = vmatpush1.bf16.msra.mxu0 0
    %805 = vmatprep.subr.bf16.mxu0 0
    %806 = vmatpush1.bf16.msra.mxu0 0
    %807 = vmatprep.subr.bf16.mxu0 0
    %808 = vmatpush1.bf16.msra.mxu0 0
    %809 = vmatprep.subr.bf16.mxu0 0
    %810 = vmatpush1.bf16.msra.mxu0 0
    %811 = vmatprep.subr.bf16.mxu0 0
    %812 = vmatpush1.bf16.msra.mxu0 0
    %813 = vmatprep.subr.bf16.mxu0 0
    %814 = vmatpush1.bf16.msra.mxu0 0
    %815 = vmatprep.subr.bf16.mxu0 0
    %816 = vmatpush1.bf16.msra.mxu0 0
    %817 = vmatprep.mubr.bf16.mxu0 0
    %818 = vmatmul.mubr.bf16.gmra.mrb[0].mxu0 0
    %v819 = vpop.f32.mrb[0].mxu0
    %v820 = vadd.f32 0.0, %v819
    %v821 = vpop.f32.mrb[0].mxu0
    %v822 = vadd.f32 0.0, %v821
    %v823 = vpop.f32.mrb[0].mxu0
    %v824 = vadd.f32 0.0, %v823
    %v825 = vpop.f32.mrb[0].mxu0
    %v826 = vadd.f32 0.0, %v825
    %827 = vdwg.mxu0
    %v828 = vadd.f32 %v231, %v777
    %v829 = vadd.f32 %v233, %v779
    %v830 = vadd.f32 %v344, %v820
    %v831 = vadd.f32 %v346, %v822
    %v832 = vadd.f32 %v235, %v781
    %v833 = vadd.f32 %v237, %v783
    %v834 = vadd.f32 %v348, %v824
    %v835 = vadd.f32 %v350, %v826
    %v836 = vxor.u32 %v828, 2147483648
    %v837 = vxor.u32 %v832, 2147483648
    %v838 = vmul.f32 %v836, 1.442695
    %v839 = vpow.pop %v838
    %v840 = vmul.f32 %v837, 1.442695
    %v841 = vpow.pop %v840
    %v842 = vadd.f32 %v839, 1.0
    %v843 = vadd.f32 %v841, 1.0
    %v844 = vrcp.pop %v842
    %v845 = vmul.f32 1.0, %v844
    %v846 = vrcp.pop %v843
    %v847 = vmul.f32 1.0, %v846
    %v848 = vxor.u32 %v829, 2147483648
    %v849 = vxor.u32 %v833, 2147483648
    %v850 = vmul.f32 %v848, 1.442695
    %v851 = vpow.pop %v850
    %v852 = vmul.f32 %v849, 1.442695
    %v853 = vpow.pop %v852
    %v854 = vadd.f32 %v851, 1.0
    %v855 = vadd.f32 %v853, 1.0
    %v856 = vrcp.pop %v854
    %v857 = vmul.f32 1.0, %v856
    %v858 = vrcp.pop %v855
    %v859 = vmul.f32 1.0, %v858
    %v860 = vtanh.pop %v830
    %v861 = vtanh.pop %v834
    %v862 = vxor.u32 %v831, 2147483648
    %v863 = vxor.u32 %v835, 2147483648
    %v864 = vmul.f32 %v862, 1.442695
    %v865 = vpow.pop %v864
    %v866 = vmul.f32 %v863, 1.442695
    %v867 = vpow.pop %v866
    %v868 = vadd.f32 %v865, 1.0
    %v869 = vadd.f32 %v867, 1.0
    %v870 = vrcp.pop %v868
    %v871 = vmul.f32 1.0, %v870
    %v872 = vrcp.pop %v869
    %v873 = vmul.f32 1.0, %v872
    %v874 = vmul.f32 %v857, 0.0
    %v875 = vmul.f32 %v859, 0.0
    %v876 = vmul.f32 %v845, %v860
    %v877 = vmul.f32 %v847, %v861
    %v878 = vadd.f32 %v874, %v876
    %v879 = vadd.f32 %v875, %v877
    %v880 = vtanh.pop %v878
    %v881 = vtanh.pop %v879
    %v882 = vmul.f32 %v871, %v880
    %v883 = vmul.f32 %v873, %v881
    %v884 = vpack.c.bf16 %v883, %v882
    %v917 = vunpack.c.l.b16 %v486
    %v918 = vunpack.c.h.b16 %v486
    %v919 = vunpack.c.l.b16 %v487
    %v920 = vunpack.c.h.b16 %v487
    %v921 = vunpack.c.l.b16 %v488
    %v922 = vunpack.c.h.b16 %v488
    %v923 = vunpack.c.l.b16 %v489
    %v924 = vunpack.c.h.b16 %v489
    %v925 = vunpack.c.l.b16 %v490
    %v926 = vunpack.c.h.b16 %v490
    %v927 = vunpack.c.l.b16 %v491
    %v928 = vunpack.c.h.b16 %v491
    %v929 = vunpack.c.l.b16 %v492
    %v930 = vunpack.c.h.b16 %v492
    %v931 = vunpack.c.l.b16 %v493
    %v932 = vunpack.c.h.b16 %v493
    %v933 = vunpack.c.l.b16 %v494
    %v934 = vunpack.c.h.b16 %v494
    %v935 = vunpack.c.l.b16 %v495
    %v936 = vunpack.c.h.b16 %v495
    %v937 = vunpack.c.l.b16 %v496
    %v938 = vunpack.c.h.b16 %v496
    %v939 = vunpack.c.l.b16 %v497
    %v940 = vunpack.c.h.b16 %v497
    %v941 = vunpack.c.l.b16 %v498
    %v942 = vunpack.c.h.b16 %v498
    %v943 = vunpack.c.l.b16 %v499
    %v944 = vunpack.c.h.b16 %v499
    %v945 = vunpack.c.l.b16 %v500
    %v946 = vunpack.c.h.b16 %v500
    %v947 = vunpack.c.l.b16 %v501
    %v948 = vunpack.c.h.b16 %v501
    %v949 = vunpack.c.l.b16 %v502
    %v950 = vunpack.c.h.b16 %v502
    %v951 = vunpack.c.l.b16 %v503
    %v952 = vunpack.c.h.b16 %v503
    %v953 = vunpack.c.l.b16 %v504
    %v954 = vunpack.c.h.b16 %v504
    %v955 = vunpack.c.l.b16 %v505
    %v956 = vunpack.c.h.b16 %v505
    %v957 = vunpack.c.l.b16 %v506
    %v958 = vunpack.c.h.b16 %v506
    %v959 = vunpack.c.l.b16 %v507
    %v960 = vunpack.c.h.b16 %v507
    %v961 = vunpack.c.l.b16 %v508
    %v962 = vunpack.c.h.b16 %v508
    %v963 = vunpack.c.l.b16 %v509
    %v964 = vunpack.c.h.b16 %v509
    %v965 = vunpack.c.l.b16 %v510
    %v966 = vunpack.c.h.b16 %v510
    %v967 = vunpack.c.l.b16 %v511
    %v968 = vunpack.c.h.b16 %v511
    %v969 = vunpack.c.l.b16 %v512
    %v970 = vunpack.c.h.b16 %v512
    %v971 = vunpack.c.l.b16 %v513
    %v972 = vunpack.c.h.b16 %v513
    %v973 = vunpack.c.l.b16 %v514
    %v974 = vunpack.c.h.b16 %v514
    %v975 = vunpack.c.l.b16 %v515
    %v976 = vunpack.c.h.b16 %v515
    %v977 = vunpack.c.l.b16 %v516
    %v978 = vunpack.c.h.b16 %v516
    %v979 = vunpack.c.l.b16 %v517
    %v980 = vunpack.c.h.b16 %v517
    %v981 = vpack.c.b16 %v921, %v917
    %v982 = vpack.c.b16 %v922, %v918
    %v983 = vpack.c.b16 %v923, %v919
    %v984 = vpack.c.b16 %v924, %v920
    %v985 = vpack.c.b16 %v929, %v925
    %v986 = vpack.c.b16 %v930, %v926
    %v987 = vpack.c.b16 %v931, %v927
    %v988 = vpack.c.b16 %v932, %v928
    %v989 = vpack.c.b16 %v937, %v933
    %v990 = vpack.c.b16 %v938, %v934
    %v991 = vpack.c.b16 %v939, %v935
    %v992 = vpack.c.b16 %v940, %v936
    %v993 = vpack.c.b16 %v945, %v941
    %v994 = vpack.c.b16 %v946, %v942
    %v995 = vpack.c.b16 %v947, %v943
    %v996 = vpack.c.b16 %v948, %v944
    %v997 = vpack.c.b16 %v953, %v949
    %v998 = vpack.c.b16 %v954, %v950
    %v999 = vpack.c.b16 %v955, %v951
    %v1000 = vpack.c.b16 %v956, %v952
    %v1001 = vpack.c.b16 %v961, %v957
    %v1002 = vpack.c.b16 %v962, %v958
    %v1003 = vpack.c.b16 %v963, %v959
    %v1004 = vpack.c.b16 %v964, %v960
    %v1005 = vpack.c.b16 %v969, %v965
    %v1006 = vpack.c.b16 %v970, %v966
    %v1007 = vpack.c.b16 %v971, %v967
    %v1008 = vpack.c.b16 %v972, %v968
    %v1009 = vpack.c.b16 %v977, %v973
    %v1010 = vpack.c.b16 %v978, %v974
    %v1011 = vpack.c.b16 %v979, %v975
    %v1012 = vpack.c.b16 %v980, %v976
    %1045 = vmatprep.subr.bf16.mxu0 %v982
    %1046 = vmatpush1.bf16.msra.mxu0 %v981
    %1047 = vmatprep.subr.bf16.mxu0 %v986
    %1048 = vmatpush1.bf16.msra.mxu0 %v985
    %1049 = vmatprep.subr.bf16.mxu0 %v990
    %1050 = vmatpush1.bf16.msra.mxu0 %v989
    %1051 = vmatprep.subr.bf16.mxu0 %v994
    %1052 = vmatpush1.bf16.msra.mxu0 %v993
    %1053 = vmatprep.subr.bf16.mxu0 %v998
    %1054 = vmatpush1.bf16.msra.mxu0 %v997
    %1055 = vmatprep.subr.bf16.mxu0 %v1002
    %1056 = vmatpush1.bf16.msra.mxu0 %v1001
    %1057 = vmatprep.subr.bf16.mxu0 %v1006
    %1058 = vmatpush1.bf16.msra.mxu0 %v1005
    %1059 = vmatprep.subr.bf16.mxu0 %v1010
    %1060 = vmatpush1.bf16.msra.mxu0 %v1009
    %1061 = vmatprep.subr.bf16.mxu0 0
    %1062 = vmatpush1.bf16.msra.mxu0 0
    %1063 = vmatprep.subr.bf16.mxu0 0
    %1064 = vmatpush1.bf16.msra.mxu0 0
    %1065 = vmatprep.subr.bf16.mxu0 0
    %1066 = vmatpush1.bf16.msra.mxu0 0
    %1067 = vmatprep.subr.bf16.mxu0 0
    %1068 = vmatpush1.bf16.msra.mxu0 0
    %1069 = vmatprep.subr.bf16.mxu0 0
    %1070 = vmatpush1.bf16.msra.mxu0 0
    %1071 = vmatprep.subr.bf16.mxu0 0
    %1072 = vmatpush1.bf16.msra.mxu0 0
    %1073 = vmatprep.subr.bf16.mxu0 0
    %1074 = vmatpush1.bf16.msra.mxu0 0
    %1075 = vmatprep.subr.bf16.mxu0 0
    %1076 = vmatpush1.bf16.msra.mxu0 0
    %1077 = vmatprep.mubr.bf16.mxu0 0
    %1078 = vmatmul.mubr.bf16.gmra.mrb[0].mxu0 0
    %v1079 = vpop.f32.mrb[0].mxu0
    %v1080 = vadd.f32 0.0, %v1079
    %v1081 = vpop.f32.mrb[0].mxu0
    %v1082 = vadd.f32 0.0, %v1081
    %v1083 = vpop.f32.mrb[0].mxu0
    %v1084 = vadd.f32 0.0, %v1083
    %v1085 = vpop.f32.mrb[0].mxu0
    %v1086 = vadd.f32 0.0, %v1085
    %1087 = vdwg.mxu0
    %1088 = vmatprep.subr.bf16.mxu0 %v984
    %1089 = vmatpush1.bf16.msra.mxu0 %v983
    %1090 = vmatprep.subr.bf16.mxu0 %v988
    %1091 = vmatpush1.bf16.msra.mxu0 %v987
    %1092 = vmatprep.subr.bf16.mxu0 %v992
    %1093 = vmatpush1.bf16.msra.mxu0 %v991
    %1094 = vmatprep.subr.bf16.mxu0 %v996
    %1095 = vmatpush1.bf16.msra.mxu0 %v995
    %1096 = vmatprep.subr.bf16.mxu0 %v1000
    %1097 = vmatpush1.bf16.msra.mxu0 %v999
    %1098 = vmatprep.subr.bf16.mxu0 %v1004
    %1099 = vmatpush1.bf16.msra.mxu0 %v1003
    %1100 = vmatprep.subr.bf16.mxu0 %v1008
    %1101 = vmatpush1.bf16.msra.mxu0 %v1007
    %1102 = vmatprep.subr.bf16.mxu0 %v1012
    %1103 = vmatpush1.bf16.msra.mxu0 %v1011
    %1104 = vmatprep.subr.bf16.mxu0 0
    %1105 = vmatpush1.bf16.msra.mxu0 0
    %1106 = vmatprep.subr.bf16.mxu0 0
    %1107 = vmatpush1.bf16.msra.mxu0 0
    %1108 = vmatprep.subr.bf16.mxu0 0
    %1109 = vmatpush1.bf16.msra.mxu0 0
    %1110 = vmatprep.subr.bf16.mxu0 0
    %1111 = vmatpush1.bf16.msra.mxu0 0
    %1112 = vmatprep.subr.bf16.mxu0 0
    %1113 = vmatpush1.bf16.msra.mxu0 0
    %1114 = vmatprep.subr.bf16.mxu0 0
    %1115 = vmatpush1.bf16.msra.mxu0 0
    %1116 = vmatprep.subr.bf16.mxu0 0
    %1117 = vmatpush1.bf16.msra.mxu0 0
    %1118 = vmatprep.subr.bf16.mxu0 0
    %1119 = vmatpush1.bf16.msra.mxu0 0
    %1120 = vmatprep.mubr.bf16.mxu0 0
    %1121 = vmatmul.mubr.bf16.gmra.mrb[0].mxu0 0
    %v1122 = vpop.f32.mrb[0].mxu0
    %v1123 = vadd.f32 0.0, %v1122
    %v1124 = vpop.f32.mrb[0].mxu0
    %v1125 = vadd.f32 0.0, %v1124
    %v1126 = vpop.f32.mrb[0].mxu0
    %v1127 = vadd.f32 0.0, %v1126
    %v1128 = vpop.f32.mrb[0].mxu0
    %v1129 = vadd.f32 0.0, %v1128
    %1130 = vdwg.mxu0
    %v1163 = vunpack.c.l.b16 %v454
    %v1164 = vunpack.c.h.b16 %v454
    %v1165 = vunpack.c.l.b16 %v455
    %v1166 = vunpack.c.h.b16 %v455
    %v1167 = vunpack.c.l.b16 %v456
    %v1168 = vunpack.c.h.b16 %v456
    %v1169 = vunpack.c.l.b16 %v457
    %v1170 = vunpack.c.h.b16 %v457
    %v1171 = vunpack.c.l.b16 %v458
    %v1172 = vunpack.c.h.b16 %v458
    %v1173 = vunpack.c.l.b16 %v459
    %v1174 = vunpack.c.h.b16 %v459
    %v1175 = vunpack.c.l.b16 %v460
    %v1176 = vunpack.c.h.b16 %v460
    %v1177 = vunpack.c.l.b16 %v461
    %v1178 = vunpack.c.h.b16 %v461
    %v1179 = vunpack.c.l.b16 %v462
    %v1180 = vunpack.c.h.b16 %v462
    %v1181 = vunpack.c.l.b16 %v463
    %v1182 = vunpack.c.h.b16 %v463
    %v1183 = vunpack.c.l.b16 %v464
    %v1184 = vunpack.c.h.b16 %v464
    %v1185 = vunpack.c.l.b16 %v465
    %v1186 = vunpack.c.h.b16 %v465
    %v1187 = vunpack.c.l.b16 %v466
    %v1188 = vunpack.c.h.b16 %v466
    %v1189 = vunpack.c.l.b16 %v467
    %v1190 = vunpack.c.h.b16 %v467
    %v1191 = vunpack.c.l.b16 %v468
    %v1192 = vunpack.c.h.b16 %v468
    %v1193 = vunpack.c.l.b16 %v469
    %v1194 = vunpack.c.h.b16 %v469
    %v1195 = vunpack.c.l.b16 %v470
    %v1196 = vunpack.c.h.b16 %v470
    %v1197 = vunpack.c.l.b16 %v471
    %v1198 = vunpack.c.h.b16 %v471
    %v1199 = vunpack.c.l.b16 %v472
    %v1200 = vunpack.c.h.b16 %v472
    %v1201 = vunpack.c.l.b16 %v473
    %v1202 = vunpack.c.h.b16 %v473
    %v1203 = vunpack.c.l.b16 %v474
    %v1204 = vunpack.c.h.b16 %v474
    %v1205 = vunpack.c.l.b16 %v475
    %v1206 = vunpack.c.h.b16 %v475
    %v1207 = vunpack.c.l.b16 %v476
    %v1208 = vunpack.c.h.b16 %v476
    %v1209 = vunpack.c.l.b16 %v477
    %v1210 = vunpack.c.h.b16 %v477
    %v1211 = vunpack.c.l.b16 %v478
    %v1212 = vunpack.c.h.b16 %v478
    %v1213 = vunpack.c.l.b16 %v479
    %v1214 = vunpack.c.h.b16 %v479
    %v1215 = vunpack.c.l.b16 %v480
    %v1216 = vunpack.c.h.b16 %v480
    %v1217 = vunpack.c.l.b16 %v481
    %v1218 = vunpack.c.h.b16 %v481
    %v1219 = vunpack.c.l.b16 %v482
    %v1220 = vunpack.c.h.b16 %v482
    %v1221 = vunpack.c.l.b16 %v483
    %v1222 = vunpack.c.h.b16 %v483
    %v1223 = vunpack.c.l.b16 %v484
    %v1224 = vunpack.c.h.b16 %v484
    %v1225 = vunpack.c.l.b16 %v485
    %v1226 = vunpack.c.h.b16 %v485
    %v1227 = vpack.c.b16 %v1167, %v1163
    %v1228 = vpack.c.b16 %v1168, %v1164
    %v1229 = vpack.c.b16 %v1169, %v1165
    %v1230 = vpack.c.b16 %v1170, %v1166
    %v1231 = vpack.c.b16 %v1175, %v1171
    %v1232 = vpack.c.b16 %v1176, %v1172
    %v1233 = vpack.c.b16 %v1177, %v1173
    %v1234 = vpack.c.b16 %v1178, %v1174
    %v1235 = vpack.c.b16 %v1183, %v1179
    %v1236 = vpack.c.b16 %v1184, %v1180
    %v1237 = vpack.c.b16 %v1185, %v1181
    %v1238 = vpack.c.b16 %v1186, %v1182
    %v1239 = vpack.c.b16 %v1191, %v1187
    %v1240 = vpack.c.b16 %v1192, %v1188
    %v1241 = vpack.c.b16 %v1193, %v1189
    %v1242 = vpack.c.b16 %v1194, %v1190
    %v1243 = vpack.c.b16 %v1199, %v1195
    %v1244 = vpack.c.b16 %v1200, %v1196
    %v1245 = vpack.c.b16 %v1201, %v1197
    %v1246 = vpack.c.b16 %v1202, %v1198
    %v1247 = vpack.c.b16 %v1207, %v1203
    %v1248 = vpack.c.b16 %v1208, %v1204
    %v1249 = vpack.c.b16 %v1209, %v1205
    %v1250 = vpack.c.b16 %v1210, %v1206
    %v1251 = vpack.c.b16 %v1215, %v1211
    %v1252 = vpack.c.b16 %v1216, %v1212
    %v1253 = vpack.c.b16 %v1217, %v1213
    %v1254 = vpack.c.b16 %v1218, %v1214
    %v1255 = vpack.c.b16 %v1223, %v1219
    %v1256 = vpack.c.b16 %v1224, %v1220
    %v1257 = vpack.c.b16 %v1225, %v1221
    %v1258 = vpack.c.b16 %v1226, %v1222
    %1291 = vmatprep.subr.bf16.mxu0 %v1228
    %1292 = vmatpush1.bf16.msra.mxu0 %v1227
    %1293 = vmatprep.subr.bf16.mxu0 %v1232
    %1294 = vmatpush1.bf16.msra.mxu0 %v1231
    %1295 = vmatprep.subr.bf16.mxu0 %v1236
    %1296 = vmatpush1.bf16.msra.mxu0 %v1235
    %1297 = vmatprep.subr.bf16.mxu0 %v1240
    %1298 = vmatpush1.bf16.msra.mxu0 %v1239
    %1299 = vmatprep.subr.bf16.mxu0 %v1244
    %1300 = vmatpush1.bf16.msra.mxu0 %v1243
    %1301 = vmatprep.subr.bf16.mxu0 %v1248
    %1302 = vmatpush1.bf16.msra.mxu0 %v1247
    %1303 = vmatprep.subr.bf16.mxu0 %v1252
    %1304 = vmatpush1.bf16.msra.mxu0 %v1251
    %1305 = vmatprep.subr.bf16.mxu0 %v1256
    %1306 = vmatpush1.bf16.msra.mxu0 %v1255
    %1307 = vmatprep.subr.bf16.mxu0 0
    %1308 = vmatpush1.bf16.msra.mxu0 0
    %1309 = vmatprep.subr.bf16.mxu0 0
    %1310 = vmatpush1.bf16.msra.mxu0 0
    %1311 = vmatprep.subr.bf16.mxu0 0
    %1312 = vmatpush1.bf16.msra.mxu0 0
    %1313 = vmatprep.subr.bf16.mxu0 0
    %1314 = vmatpush1.bf16.msra.mxu0 0
    %1315 = vmatprep.subr.bf16.mxu0 0
    %1316 = vmatpush1.bf16.msra.mxu0 0
    %1317 = vmatprep.subr.bf16.mxu0 0
    %1318 = vmatpush1.bf16.msra.mxu0 0
    %1319 = vmatprep.subr.bf16.mxu0 0
    %1320 = vmatpush1.bf16.msra.mxu0 0
    %1321 = vmatprep.subr.bf16.mxu0 0
    %1322 = vmatpush1.bf16.msra.mxu0 0
    %1323 = vmatprep.mubr.bf16.mxu0 0
    %1324 = vmatmul.mubr.bf16.gmra.mrb[0].mxu0 %v884
    %v1325 = vpop.f32.mrb[0].mxu0
    %v1326 = vadd.f32 %v1080, %v1325
    %v1327 = vpop.f32.mrb[0].mxu0
    %v1328 = vadd.f32 %v1082, %v1327
    %v1329 = vpop.f32.mrb[0].mxu0
    %v1330 = vadd.f32 %v1084, %v1329
    %v1331 = vpop.f32.mrb[0].mxu0
    %v1332 = vadd.f32 %v1086, %v1331
    %1333 = vdwg.mxu0
    %1334 = vmatprep.subr.bf16.mxu0 %v1230
    %1335 = vmatpush1.bf16.msra.mxu0 %v1229
    %1336 = vmatprep.subr.bf16.mxu0 %v1234
    %1337 = vmatpush1.bf16.msra.mxu0 %v1233
    %1338 = vmatprep.subr.bf16.mxu0 %v1238
    %1339 = vmatpush1.bf16.msra.mxu0 %v1237
    %1340 = vmatprep.subr.bf16.mxu0 %v1242
    %1341 = vmatpush1.bf16.msra.mxu0 %v1241
    %1342 = vmatprep.subr.bf16.mxu0 %v1246
    %1343 = vmatpush1.bf16.msra.mxu0 %v1245
    %1344 = vmatprep.subr.bf16.mxu0 %v1250
    %1345 = vmatpush1.bf16.msra.mxu0 %v1249
    %1346 = vmatprep.subr.bf16.mxu0 %v1254
    %1347 = vmatpush1.bf16.msra.mxu0 %v1253
    %1348 = vmatprep.subr.bf16.mxu0 %v1258
    %1349 = vmatpush1.bf16.msra.mxu0 %v1257
    %1350 = vmatprep.subr.bf16.mxu0 0
    %1351 = vmatpush1.bf16.msra.mxu0 0
    %1352 = vmatprep.subr.bf16.mxu0 0
    %1353 = vmatpush1.bf16.msra.mxu0 0
    %1354 = vmatprep.subr.bf16.mxu0 0
    %1355 = vmatpush1.bf16.msra.mxu0 0
    %1356 = vmatprep.subr.bf16.mxu0 0
    %1357 = vmatpush1.bf16.msra.mxu0 0
    %1358 = vmatprep.subr.bf16.mxu0 0
    %1359 = vmatpush1.bf16.msra.mxu0 0
    %1360 = vmatprep.subr.bf16.mxu0 0
    %1361 = vmatpush1.bf16.msra.mxu0 0
    %1362 = vmatprep.subr.bf16.mxu0 0
    %1363 = vmatpush1.bf16.msra.mxu0 0
    %1364 = vmatprep.subr.bf16.mxu0 0
    %1365 = vmatpush1.bf16.msra.mxu0 0
    %1366 = vmatprep.mubr.bf16.mxu0 0
    %1367 = vmatmul.mubr.bf16.gmra.mrb[0].mxu0 %v884
    %v1368 = vpop.f32.mrb[0].mxu0
    %v1369 = vadd.f32 %v1123, %v1368
    %v1370 = vpop.f32.mrb[0].mxu0
    %v1371 = vadd.f32 %v1125, %v1370
    %v1372 = vpop.f32.mrb[0].mxu0
    %v1373 = vadd.f32 %v1127, %v1372
    %v1374 = vpop.f32.mrb[0].mxu0
    %v1375 = vadd.f32 %v1129, %v1374
    %1376 = vdwg.mxu0
    %v1377 = vxor.u32 %v1326, 2147483648
    %v1378 = vxor.u32 %v1330, 2147483648
    %v1379 = vmul.f32 %v1377, 1.442695
    %v1380 = vpow.pop %v1379
    %v1381 = vmul.f32 %v1378, 1.442695
    %v1382 = vpow.pop %v1381
    %v1383 = vadd.f32 %v1380, 1.0
    %v1384 = vadd.f32 %v1382, 1.0
    %v1385 = vrcp.pop %v1383
    %v1386 = vmul.f32 1.0, %v1385
    %v1387 = vrcp.pop %v1384
    %v1388 = vmul.f32 1.0, %v1387
    %v1389 = vxor.u32 %v1328, 2147483648
    %v1390 = vxor.u32 %v1332, 2147483648
    %v1391 = vmul.f32 %v1389, 1.442695
    %v1392 = vpow.pop %v1391
    %v1393 = vmul.f32 %v1390, 1.442695
    %v1394 = vpow.pop %v1393
    %v1395 = vadd.f32 %v1392, 1.0
    %v1396 = vadd.f32 %v1394, 1.0
    %v1397 = vrcp.pop %v1395
    %v1398 = vmul.f32 1.0, %v1397
    %v1399 = vrcp.pop %v1396
    %v1400 = vmul.f32 1.0, %v1399
    %v1401 = vtanh.pop %v1369
    %v1402 = vtanh.pop %v1373
    %v1403 = vxor.u32 %v1371, 2147483648
    %v1404 = vxor.u32 %v1375, 2147483648
    %v1405 = vmul.f32 %v1403, 1.442695
    %v1406 = vpow.pop %v1405
    %v1407 = vmul.f32 %v1404, 1.442695
    %v1408 = vpow.pop %v1407
    %v1409 = vadd.f32 %v1406, 1.0
    %v1410 = vadd.f32 %v1408, 1.0
    %v1411 = vrcp.pop %v1409
    %v1412 = vmul.f32 1.0, %v1411
    %v1413 = vrcp.pop %v1410
    %v1414 = vmul.f32 1.0, %v1413
    %v1415 = vmul.f32 %v1398, 0.0
    %v1416 = vmul.f32 %v1400, 0.0
    %v1417 = vmul.f32 %v1386, %v1401
    %v1418 = vmul.f32 %v1388, %v1402
    %v1419 = vadd.f32 %v1415, %v1417
    %v1420 = vadd.f32 %v1416, %v1418
    %v1421 = vtanh.pop %v1419
    %v1422 = vtanh.pop %v1420
    %v1423 = vmul.f32 %v1412, %v1421
    %v1424 = vmul.f32 %v1414, %v1422
    %v1425 = vpack.c.bf16 %v1424, %v1423
    %1426 = vmatprep.subr.bf16.mxu0 %v679
    %1427 = vmatpush1.bf16.msra.mxu0 %v678
    %1428 = vmatprep.subr.bf16.mxu0 %v683
    %1429 = vmatpush1.bf16.msra.mxu0 %v682
    %1430 = vmatprep.subr.bf16.mxu0 %v687
    %1431 = vmatpush1.bf16.msra.mxu0 %v686
    %1432 = vmatprep.subr.bf16.mxu0 %v691
    %1433 = vmatpush1.bf16.msra.mxu0 %v690
    %1434 = vmatprep.subr.bf16.mxu0 %v695
    %1435 = vmatpush1.bf16.msra.mxu0 %v694
    %1436 = vmatprep.subr.bf16.mxu0 %v699
    %1437 = vmatpush1.bf16.msra.mxu0 %v698
    %1438 = vmatprep.subr.bf16.mxu0 %v703
    %1439 = vmatpush1.bf16.msra.mxu0 %v702
    %1440 = vmatprep.subr.bf16.mxu0 %v707
    %1441 = vmatpush1.bf16.msra.mxu0 %v706
    %1442 = vmatprep.subr.bf16.mxu0 0
    %1443 = vmatpush1.bf16.msra.mxu0 0
    %1444 = vmatprep.subr.bf16.mxu0 0
    %1445 = vmatpush1.bf16.msra.mxu0 0
    %1446 = vmatprep.subr.bf16.mxu0 0
    %1447 = vmatpush1.bf16.msra.mxu0 0
    %1448 = vmatprep.subr.bf16.mxu0 0
    %1449 = vmatpush1.bf16.msra.mxu0 0
    %1450 = vmatprep.subr.bf16.mxu0 0
    %1451 = vmatpush1.bf16.msra.mxu0 0
    %1452 = vmatprep.subr.bf16.mxu0 0
    %1453 = vmatpush1.bf16.msra.mxu0 0
    %1454 = vmatprep.subr.bf16.mxu0 0
    %1455 = vmatpush1.bf16.msra.mxu0 0
    %1456 = vmatprep.subr.bf16.mxu0 0
    %1457 = vmatpush1.bf16.msra.mxu0 0
    %1458 = vmatprep.mubr.bf16.mxu0 0
    %1459 = vmatmul.mubr.bf16.gmra.mrb[0].mxu0 %v884
    %v1460 = vpop.f32.mrb[0].mxu0
    %v1461 = vadd.f32 0.0, %v1460
    %v1462 = vpop.f32.mrb[0].mxu0
    %v1463 = vadd.f32 0.0, %v1462
    %v1464 = vpop.f32.mrb[0].mxu0
    %v1465 = vadd.f32 0.0, %v1464
    %v1466 = vpop.f32.mrb[0].mxu0
    %v1467 = vadd.f32 0.0, %v1466
    %1468 = vdwg.mxu0
    %1469 = vmatprep.subr.bf16.mxu0 %v681
    %1470 = vmatpush1.bf16.msra.mxu0 %v680
    %1471 = vmatprep.subr.bf16.mxu0 %v685
    %1472 = vmatpush1.bf16.msra.mxu0 %v684
    %1473 = vmatprep.subr.bf16.mxu0 %v689
    %1474 = vmatpush1.bf16.msra.mxu0 %v688
    %1475 = vmatprep.subr.bf16.mxu0 %v693
    %1476 = vmatpush1.bf16.msra.mxu0 %v692
    %1477 = vmatprep.subr.bf16.mxu0 %v697
    %1478 = vmatpush1.bf16.msra.mxu0 %v696
    %1479 = vmatprep.subr.bf16.mxu0 %v701
    %1480 = vmatpush1.bf16.msra.mxu0 %v700
    %1481 = vmatprep.subr.bf16.mxu0 %v705
    %1482 = vmatpush1.bf16.msra.mxu0 %v704
    %1483 = vmatprep.subr.bf16.mxu0 %v709
    %1484 = vmatpush1.bf16.msra.mxu0 %v708
    %1485 = vmatprep.subr.bf16.mxu0 0
    %1486 = vmatpush1.bf16.msra.mxu0 0
    %1487 = vmatprep.subr.bf16.mxu0 0
    %1488 = vmatpush1.bf16.msra.mxu0 0
    %1489 = vmatprep.subr.bf16.mxu0 0
    %1490 = vmatpush1.bf16.msra.mxu0 0
    %1491 = vmatprep.subr.bf16.mxu0 0
    %1492 = vmatpush1.bf16.msra.mxu0 0
    %1493 = vmatprep.subr.bf16.mxu0 0
    %1494 = vmatpush1.bf16.msra.mxu0 0
    %1495 = vmatprep.subr.bf16.mxu0 0
    %1496 = vmatpush1.bf16.msra.mxu0 0
    %1497 = vmatprep.subr.bf16.mxu0 0
    %1498 = vmatpush1.bf16.msra.mxu0 0
    %1499 = vmatprep.subr.bf16.mxu0 0
    %1500 = vmatpush1.bf16.msra.mxu0 0
    %1501 = vmatprep.mubr.bf16.mxu0 0
    %1502 = vmatmul.mubr.bf16.gmra.mrb[0].mxu0 %v884
    %v1503 = vpop.f32.mrb[0].mxu0
    %v1504 = vadd.f32 0.0, %v1503
    %v1505 = vpop.f32.mrb[0].mxu0
    %v1506 = vadd.f32 0.0, %v1505
    %v1507 = vpop.f32.mrb[0].mxu0
    %v1508 = vadd.f32 0.0, %v1507
    %v1509 = vpop.f32.mrb[0].mxu0
    %v1510 = vadd.f32 0.0, %v1509
    %1511 = vdwg.mxu0
    %v1512 = vadd.f32 %v241, %v1461
    %v1513 = vadd.f32 %v243, %v1463
    %v1514 = vadd.f32 %v354, %v1504
    %v1515 = vadd.f32 %v356, %v1506
    %v1516 = vadd.f32 %v245, %v1465
    %v1517 = vadd.f32 %v247, %v1467
    %v1518 = vadd.f32 %v358, %v1508
    %v1519 = vadd.f32 %v360, %v1510
    %v1520 = vxor.u32 %v1512, 2147483648
    %v1521 = vxor.u32 %v1516, 2147483648
    %v1522 = vmul.f32 %v1520, 1.442695
    %v1523 = vpow.pop %v1522
    %v1524 = vmul.f32 %v1521, 1.442695
    %v1525 = vpow.pop %v1524
    %v1526 = vadd.f32 %v1523, 1.0
    %v1527 = vadd.f32 %v1525, 1.0
    %v1528 = vrcp.pop %v1526
    %v1529 = vmul.f32 1.0, %v1528
    %v1530 = vrcp.pop %v1527
    %v1531 = vmul.f32 1.0, %v1530
    %v1532 = vxor.u32 %v1513, 2147483648
    %v1533 = vxor.u32 %v1517, 2147483648
    %v1534 = vmul.f32 %v1532, 1.442695
    %v1535 = vpow.pop %v1534
    %v1536 = vmul.f32 %v1533, 1.442695
    %v1537 = vpow.pop %v1536
    %v1538 = vadd.f32 %v1535, 1.0
    %v1539 = vadd.f32 %v1537, 1.0
    %v1540 = vrcp.pop %v1538
    %v1541 = vmul.f32 1.0, %v1540
    %v1542 = vrcp.pop %v1539
    %v1543 = vmul.f32 1.0, %v1542
    %v1544 = vtanh.pop %v1514
    %v1545 = vtanh.pop %v1518
    %v1546 = vxor.u32 %v1515, 2147483648
    %v1547 = vxor.u32 %v1519, 2147483648
    %v1548 = vmul.f32 %v1546, 1.442695
    %v1549 = vpow.pop %v1548
    %v1550 = vmul.f32 %v1547, 1.442695
    %v1551 = vpow.pop %v1550
    %v1552 = vadd.f32 %v1549, 1.0
    %v1553 = vadd.f32 %v1551, 1.0
    %v1554 = vrcp.pop %v1552
    %v1555 = vmul.f32 1.0, %v1554
    %v1556 = vrcp.pop %v1553
    %v1557 = vmul.f32 1.0, %v1556
    %v1558 = vmul.f32 %v1541, %v878
    %v1559 = vmul.f32 %v1543, %v879
    %v1560 = vmul.f32 %v1529, %v1544
    %v1561 = vmul.f32 %v1531, %v1545
    %v1562 = vadd.f32 %v1558, %v1560
    %v1563 = vadd.f32 %v1559, %v1561
    %v1564 = vtanh.pop %v1562
    %v1565 = vtanh.pop %v1563
    %v1566 = vmul.f32 %v1555, %v1564
    %v1567 = vmul.f32 %v1557, %v1565
    %v1568 = vpack.c.bf16 %v1567, %v1566
    %1569 = vmatprep.subr.bf16.mxu0 %v982
    %1570 = vmatpush1.bf16.msra.mxu0 %v981
    %1571 = vmatprep.subr.bf16.mxu0 %v986
    %1572 = vmatpush1.bf16.msra.mxu0 %v985
    %1573 = vmatprep.subr.bf16.mxu0 %v990
    %1574 = vmatpush1.bf16.msra.mxu0 %v989
    %1575 = vmatprep.subr.bf16.mxu0 %v994
    %1576 = vmatpush1.bf16.msra.mxu0 %v993
    %1577 = vmatprep.subr.bf16.mxu0 %v998
    %1578 = vmatpush1.bf16.msra.mxu0 %v997
    %1579 = vmatprep.subr.bf16.mxu0 %v1002
    %1580 = vmatpush1.bf16.msra.mxu0 %v1001
    %1581 = vmatprep.subr.bf16.mxu0 %v1006
    %1582 = vmatpush1.bf16.msra.mxu0 %v1005
    %1583 = vmatprep.subr.bf16.mxu0 %v1010
    %1584 = vmatpush1.bf16.msra.mxu0 %v1009
    %1585 = vmatprep.subr.bf16.mxu0 0
    %1586 = vmatpush1.bf16.msra.mxu0 0
    %1587 = vmatprep.subr.bf16.mxu0 0
    %1588 = vmatpush1.bf16.msra.mxu0 0
    %1589 = vmatprep.subr.bf16.mxu0 0
    %1590 = vmatpush1.bf16.msra.mxu0 0
    %1591 = vmatprep.subr.bf16.mxu0 0
    %1592 = vmatpush1.bf16.msra.mxu0 0
    %1593 = vmatprep.subr.bf16.mxu0 0
    %1594 = vmatpush1.bf16.msra.mxu0 0
    %1595 = vmatprep.subr.bf16.mxu0 0
    %1596 = vmatpush1.bf16.msra.mxu0 0
    %1597 = vmatprep.subr.bf16.mxu0 0
    %1598 = vmatpush1.bf16.msra.mxu0 0
    %1599 = vmatprep.subr.bf16.mxu0 0
    %1600 = vmatpush1.bf16.msra.mxu0 0
    %1601 = vmatprep.mubr.bf16.mxu0 0
    %1602 = vmatmul.mubr.bf16.gmra.mrb[0].mxu0 %v1425
    %v1603 = vpop.f32.mrb[0].mxu0
    %v1604 = vadd.f32 0.0, %v1603
    %v1605 = vpop.f32.mrb[0].mxu0
    %v1606 = vadd.f32 0.0, %v1605
    %v1607 = vpop.f32.mrb[0].mxu0
    %v1608 = vadd.f32 0.0, %v1607
    %v1609 = vpop.f32.mrb[0].mxu0
    %v1610 = vadd.f32 0.0, %v1609
    %1611 = vdwg.mxu0
    %1612 = vmatprep.subr.bf16.mxu0 %v984
    %1613 = vmatpush1.bf16.msra.mxu0 %v983
    %1614 = vmatprep.subr.bf16.mxu0 %v988
    %1615 = vmatpush1.bf16.msra.mxu0 %v987
    %1616 = vmatprep.subr.bf16.mxu0 %v992
    %1617 = vmatpush1.bf16.msra.mxu0 %v991
    %1618 = vmatprep.subr.bf16.mxu0 %v996
    %1619 = vmatpush1.bf16.msra.mxu0 %v995
    %1620 = vmatprep.subr.bf16.mxu0 %v1000
    %1621 = vmatpush1.bf16.msra.mxu0 %v999
    %1622 = vmatprep.subr.bf16.mxu0 %v1004
    %1623 = vmatpush1.bf16.msra.mxu0 %v1003
    %1624 = vmatprep.subr.bf16.mxu0 %v1008
    %1625 = vmatpush1.bf16.msra.mxu0 %v1007
    %1626 = vmatprep.subr.bf16.mxu0 %v1012
    %1627 = vmatpush1.bf16.msra.mxu0 %v1011
    %1628 = vmatprep.subr.bf16.mxu0 0
    %1629 = vmatpush1.bf16.msra.mxu0 0
    %1630 = vmatprep.subr.bf16.mxu0 0
    %1631 = vmatpush1.bf16.msra.mxu0 0
    %1632 = vmatprep.subr.bf16.mxu0 0
    %1633 = vmatpush1.bf16.msra.mxu0 0
    %1634 = vmatprep.subr.bf16.mxu0 0
    %1635 = vmatpush1.bf16.msra.mxu0 0
    %1636 = vmatprep.subr.bf16.mxu0 0
    %1637 = vmatpush1.bf16.msra.mxu0 0
    %1638 = vmatprep.subr.bf16.mxu0 0
    %1639 = vmatpush1.bf16.msra.mxu0 0
    %1640 = vmatprep.subr.bf16.mxu0 0
    %1641 = vmatpush1.bf16.msra.mxu0 0
    %1642 = vmatprep.subr.bf16.mxu0 0
    %1643 = vmatpush1.bf16.msra.mxu0 0
    %1644 = vmatprep.mubr.bf16.mxu0 0
    %1645 = vmatmul.mubr.bf16.gmra.mrb[0].mxu0 %v1425
    %v1646 = vpop.f32.mrb[0].mxu0
    %v1647 = vadd.f32 0.0, %v1646
    %v1648 = vpop.f32.mrb[0].mxu0
    %v1649 = vadd.f32 0.0, %v1648
    %v1650 = vpop.f32.mrb[0].mxu0
    %v1651 = vadd.f32 0.0, %v1650
    %v1652 = vpop.f32.mrb[0].mxu0
    %v1653 = vadd.f32 0.0, %v1652
    %1654 = vdwg.mxu0
    %1655 = vmatprep.subr.bf16.mxu0 %v1228
    %1656 = vmatpush1.bf16.msra.mxu0 %v1227
    %1657 = vmatprep.subr.bf16.mxu0 %v1232
    %1658 = vmatpush1.bf16.msra.mxu0 %v1231
    %1659 = vmatprep.subr.bf16.mxu0 %v1236
    %1660 = vmatpush1.bf16.msra.mxu0 %v1235
    %1661 = vmatprep.subr.bf16.mxu0 %v1240
    %1662 = vmatpush1.bf16.msra.mxu0 %v1239
    %1663 = vmatprep.subr.bf16.mxu0 %v1244
    %1664 = vmatpush1.bf16.msra.mxu0 %v1243
    %1665 = vmatprep.subr.bf16.mxu0 %v1248
    %1666 = vmatpush1.bf16.msra.mxu0 %v1247
    %1667 = vmatprep.subr.bf16.mxu0 %v1252
    %1668 = vmatpush1.bf16.msra.mxu0 %v1251
    %1669 = vmatprep.subr.bf16.mxu0 %v1256
    %1670 = vmatpush1.bf16.msra.mxu0 %v1255
    %1671 = vmatprep.subr.bf16.mxu0 0
    %1672 = vmatpush1.bf16.msra.mxu0 0
    %1673 = vmatprep.subr.bf16.mxu0 0
    %1674 = vmatpush1.bf16.msra.mxu0 0
    %1675 = vmatprep.subr.bf16.mxu0 0
    %1676 = vmatpush1.bf16.msra.mxu0 0
    %1677 = vmatprep.subr.bf16.mxu0 0
    %1678 = vmatpush1.bf16.msra.mxu0 0
    %1679 = vmatprep.subr.bf16.mxu0 0
    %1680 = vmatpush1.bf16.msra.mxu0 0
    %1681 = vmatprep.subr.bf16.mxu0 0
    %1682 = vmatpush1.bf16.msra.mxu0 0
    %1683 = vmatprep.subr.bf16.mxu0 0
    %1684 = vmatpush1.bf16.msra.mxu0 0
    %1685 = vmatprep.subr.bf16.mxu0 0
    %1686 = vmatpush1.bf16.msra.mxu0 0
    %1687 = vmatprep.mubr.bf16.mxu0 0
    %1688 = vmatmul.mubr.bf16.gmra.mrb[0].mxu0 %v1568
    %v1689 = vpop.f32.mrb[0].mxu0
    %v1690 = vadd.f32 %v1604, %v1689
    %v1691 = vpop.f32.mrb[0].mxu0
    %v1692 = vadd.f32 %v1606, %v1691
    %v1693 = vpop.f32.mrb[0].mxu0
    %v1694 = vadd.f32 %v1608, %v1693
    %v1695 = vpop.f32.mrb[0].mxu0
    %v1696 = vadd.f32 %v1610, %v1695
    %1697 = vdwg.mxu0
    %1698 = vmatprep.subr.bf16.mxu0 %v1230
    %1699 = vmatpush1.bf16.msra.mxu0 %v1229
    %1700 = vmatprep.subr.bf16.mxu0 %v1234
    %1701 = vmatpush1.bf16.msra.mxu0 %v1233
    %1702 = vmatprep.subr.bf16.mxu0 %v1238
    %1703 = vmatpush1.bf16.msra.mxu0 %v1237
    %1704 = vmatprep.subr.bf16.mxu0 %v1242
    %1705 = vmatpush1.bf16.msra.mxu0 %v1241
    %1706 = vmatprep.subr.bf16.mxu0 %v1246
    %1707 = vmatpush1.bf16.msra.mxu0 %v1245
    %1708 = vmatprep.subr.bf16.mxu0 %v1250
    %1709 = vmatpush1.bf16.msra.mxu0 %v1249
    %1710 = vmatprep.subr.bf16.mxu0 %v1254
    %1711 = vmatpush1.bf16.msra.mxu0 %v1253
    %1712 = vmatprep.subr.bf16.mxu0 %v1258
    %1713 = vmatpush1.bf16.msra.mxu0 %v1257
    %1714 = vmatprep.subr.bf16.mxu0 0
    %1715 = vmatpush1.bf16.msra.mxu0 0
    %1716 = vmatprep.subr.bf16.mxu0 0
    %1717 = vmatpush1.bf16.msra.mxu0 0
    %1718 = vmatprep.subr.bf16.mxu0 0
    %1719 = vmatpush1.bf16.msra.mxu0 0
    %1720 = vmatprep.subr.bf16.mxu0 0
    %1721 = vmatpush1.bf16.msra.mxu0 0
    %1722 = vmatprep.subr.bf16.mxu0 0
    %1723 = vmatpush1.bf16.msra.mxu0 0
    %1724 = vmatprep.subr.bf16.mxu0 0
    %1725 = vmatpush1.bf16.msra.mxu0 0
    %1726 = vmatprep.subr.bf16.mxu0 0
    %1727 = vmatpush1.bf16.msra.mxu0 0
    %1728 = vmatprep.subr.bf16.mxu0 0
    %1729 = vmatpush1.bf16.msra.mxu0 0
    %1730 = vmatprep.mubr.bf16.mxu0 0
    %1731 = vmatmul.mubr.bf16.gmra.mrb[0].mxu0 %v1568
    %v1732 = vpop.f32.mrb[0].mxu0
    %v1733 = vadd.f32 %v1647, %v1732
    %v1734 = vpop.f32.mrb[0].mxu0
    %v1735 = vadd.f32 %v1649, %v1734
    %v1736 = vpop.f32.mrb[0].mxu0
    %v1737 = vadd.f32 %v1651, %v1736
    %v1738 = vpop.f32.mrb[0].mxu0
    %v1739 = vadd.f32 %v1653, %v1738
    %1740 = vdwg.mxu0
    %v1741 = vxor.u32 %v1690, 2147483648
    %v1742 = vxor.u32 %v1694, 2147483648
    %v1743 = vmul.f32 %v1741, 1.442695
    %v1744 = vpow.pop %v1743
    %v1745 = vmul.f32 %v1742, 1.442695
    %v1746 = vpow.pop %v1745
    %v1747 = vadd.f32 %v1744, 1.0
    %v1748 = vadd.f32 %v1746, 1.0
    %v1749 = vrcp.pop %v1747
    %v1750 = vmul.f32 1.0, %v1749
    %v1751 = vrcp.pop %v1748
    %v1752 = vmul.f32 1.0, %v1751
    %v1753 = vxor.u32 %v1692, 2147483648
    %v1754 = vxor.u32 %v1696, 2147483648
    %v1755 = vmul.f32 %v1753, 1.442695
    %v1756 = vpow.pop %v1755
    %v1757 = vmul.f32 %v1754, 1.442695
    %v1758 = vpow.pop %v1757
    %v1759 = vadd.f32 %v1756, 1.0
    %v1760 = vadd.f32 %v1758, 1.0
    %v1761 = vrcp.pop %v1759
    %v1762 = vmul.f32 1.0, %v1761
    %v1763 = vrcp.pop %v1760
    %v1764 = vmul.f32 1.0, %v1763
    %v1765 = vtanh.pop %v1733
    %v1766 = vtanh.pop %v1737
    %v1767 = vxor.u32 %v1735, 2147483648
    %v1768 = vxor.u32 %v1739, 2147483648
    %v1769 = vmul.f32 %v1767, 1.442695
    %v1770 = vpow.pop %v1769
    %v1771 = vmul.f32 %v1768, 1.442695
    %v1772 = vpow.pop %v1771
    %v1773 = vadd.f32 %v1770, 1.0
    %v1774 = vadd.f32 %v1772, 1.0
    %v1775 = vrcp.pop %v1773
    %v1776 = vmul.f32 1.0, %v1775
    %v1777 = vrcp.pop %v1774
    %v1778 = vmul.f32 1.0, %v1777
    %v1779 = vmul.f32 %v1762, %v1419
    %v1780 = vmul.f32 %v1764, %v1420
    %v1781 = vmul.f32 %v1750, %v1765
    %v1782 = vmul.f32 %v1752, %v1766
    %v1783 = vadd.f32 %v1779, %v1781
    %v1784 = vadd.f32 %v1780, %v1782
    %v1785 = vtanh.pop %v1783
    %v1786 = vtanh.pop %v1784
    %v1787 = vmul.f32 %v1776, %v1785
    %v1788 = vmul.f32 %v1778, %v1786
    %v1789 = vpack.c.bf16 %v1788, %v1787
    %v1798 = vunpack.c.l.b16 %v526
    %v1799 = vunpack.c.l.b16 %v527
    %v1800 = vunpack.c.l.b16 %v528
    %v1801 = vunpack.c.l.b16 %v529
    %v1802 = vunpack.c.l.b16 %v530
    %v1803 = vunpack.c.l.b16 %v531
    %v1804 = vunpack.c.l.b16 %v532
    %v1805 = vunpack.c.l.b16 %v533
    %v1806 = vpack.c.b16 %v1799, %v1798
    %v1807 = vpack.c.b16 %v1801, %v1800
    %v1808 = vpack.c.b16 %v1803, %v1802
    %v1809 = vpack.c.b16 %v1805, %v1804
    %vm1814 = vcmask 523264
    %v1816 = vsel %vm1814, %v1789, 0
    %1818 = vmatprep.subr.bf16.mxu0 0
    %1819 = vmatpush1.bf16.msra.mxu0 %v1806
    %1820 = vmatprep.subr.bf16.mxu0 0
    %1821 = vmatpush1.bf16.msra.mxu0 %v1807
    %1822 = vmatprep.subr.bf16.mxu0 0
    %1823 = vmatpush1.bf16.msra.mxu0 %v1808
    %1824 = vmatprep.subr.bf16.mxu0 0
    %1825 = vmatpush1.bf16.msra.mxu0 %v1809
    %1826 = vmatprep.subr.bf16.mxu0 0
    %1827 = vmatpush1.bf16.msra.mxu0 0
    %1828 = vmatprep.subr.bf16.mxu0 0
    %1829 = vmatpush1.bf16.msra.mxu0 0
    %1830 = vmatprep.subr.bf16.mxu0 0
    %1831 = vmatpush1.bf16.msra.mxu0 0
    %1832 = vmatprep.subr.bf16.mxu0 0
    %1833 = vmatpush1.bf16.msra.mxu0 0
    %1834 = vmatprep.subr.bf16.mxu0 0
    %1835 = vmatpush1.bf16.msra.mxu0 0
    %1836 = vmatprep.subr.bf16.mxu0 0
    %1837 = vmatpush1.bf16.msra.mxu0 0
    %1838 = vmatprep.subr.bf16.mxu0 0
    %1839 = vmatpush1.bf16.msra.mxu0 0
    %1840 = vmatprep.subr.bf16.mxu0 0
    %1841 = vmatpush1.bf16.msra.mxu0 0
    %1842 = vmatprep.subr.bf16.mxu0 0
    %1843 = vmatpush1.bf16.msra.mxu0 0
    %1844 = vmatprep.subr.bf16.mxu0 0
    %1845 = vmatpush1.bf16.msra.mxu0 0
    %1846 = vmatprep.subr.bf16.mxu0 0
    %1847 = vmatpush1.bf16.msra.mxu0 0
    %1848 = vmatprep.subr.bf16.mxu0 0
    %1849 = vmatpush1.bf16.msra.mxu0 0
    %1850 = vmatprep.mubr.bf16.mxu0 0
    %1851 = vmatmul.mubr.bf16.gmra.mrb[0].mxu0 %v1816
    %v1852 = vpop.f32.mrb[0].mxu0
    %v1853 = vadd.f32 0.0, %v1852
    %v1854 = vpop.f32.mrb[0].mxu0
    %v1855 = vpop.f32.mrb[0].mxu0
    %v1856 = vadd.f32 0.0, %v1855
    %v1857 = vpop.f32.mrb[0].mxu0
    %1858 = vdwg.mxu0
    %v1867 = vunpack.c.l.b16 %v518
    %v1868 = vunpack.c.l.b16 %v519
    %v1869 = vunpack.c.l.b16 %v520
    %v1870 = vunpack.c.l.b16 %v521
    %v1871 = vunpack.c.l.b16 %v522
    %v1872 = vunpack.c.l.b16 %v523
    %v1873 = vunpack.c.l.b16 %v524
    %v1874 = vunpack.c.l.b16 %v525
    %v1875 = vpack.c.b16 %v1868, %v1867
    %v1876 = vpack.c.b16 %v1870, %v1869
    %v1877 = vpack.c.b16 %v1872, %v1871
    %v1878 = vpack.c.b16 %v1874, %v1873
    %v1884 = vsel %vm1814, %v1425, 0
    %1886 = vmatprep.subr.bf16.mxu0 0
    %1887 = vmatpush1.bf16.msra.mxu0 %v1875
    %1888 = vmatprep.subr.bf16.mxu0 0
    %1889 = vmatpush1.bf16.msra.mxu0 %v1876
    %1890 = vmatprep.subr.bf16.mxu0 0
    %1891 = vmatpush1.bf16.msra.mxu0 %v1877
    %1892 = vmatprep.subr.bf16.mxu0 0
    %1893 = vmatpush1.bf16.msra.mxu0 %v1878
    %1894 = vmatprep.subr.bf16.mxu0 0
    %1895 = vmatpush1.bf16.msra.mxu0 0
    %1896 = vmatprep.subr.bf16.mxu0 0
    %1897 = vmatpush1.bf16.msra.mxu0 0
    %1898 = vmatprep.subr.bf16.mxu0 0
    %1899 = vmatpush1.bf16.msra.mxu0 0
    %1900 = vmatprep.subr.bf16.mxu0 0
    %1901 = vmatpush1.bf16.msra.mxu0 0
    %1902 = vmatprep.subr.bf16.mxu0 0
    %1903 = vmatpush1.bf16.msra.mxu0 0
    %1904 = vmatprep.subr.bf16.mxu0 0
    %1905 = vmatpush1.bf16.msra.mxu0 0
    %1906 = vmatprep.subr.bf16.mxu0 0
    %1907 = vmatpush1.bf16.msra.mxu0 0
    %1908 = vmatprep.subr.bf16.mxu0 0
    %1909 = vmatpush1.bf16.msra.mxu0 0
    %1910 = vmatprep.subr.bf16.mxu0 0
    %1911 = vmatpush1.bf16.msra.mxu0 0
    %1912 = vmatprep.subr.bf16.mxu0 0
    %1913 = vmatpush1.bf16.msra.mxu0 0
    %1914 = vmatprep.subr.bf16.mxu0 0
    %1915 = vmatpush1.bf16.msra.mxu0 0
    %1916 = vmatprep.subr.bf16.mxu0 0
    %1917 = vmatpush1.bf16.msra.mxu0 0
    %1918 = vmatprep.mubr.bf16.mxu0 0
    %1919 = vmatmul.mubr.bf16.gmra.mrb[0].mxu0 %v1884
    %v1920 = vpop.f32.mrb[0].mxu0
    %v1921 = vadd.f32 %v1853, %v1920
    %v1922 = vpop.f32.mrb[0].mxu0
    %v1923 = vpop.f32.mrb[0].mxu0
    %v1924 = vadd.f32 %v1856, %v1923
    %v1925 = vpop.f32.mrb[0].mxu0
    %1926 = vdwg.mxu0
    %1927 = vmatprep.subr.bf16.mxu0 %v679
    %1928 = vmatpush1.bf16.msra.mxu0 %v678
    %1929 = vmatprep.subr.bf16.mxu0 %v683
    %1930 = vmatpush1.bf16.msra.mxu0 %v682
    %1931 = vmatprep.subr.bf16.mxu0 %v687
    %1932 = vmatpush1.bf16.msra.mxu0 %v686
    %1933 = vmatprep.subr.bf16.mxu0 %v691
    %1934 = vmatpush1.bf16.msra.mxu0 %v690
    %1935 = vmatprep.subr.bf16.mxu0 %v695
    %1936 = vmatpush1.bf16.msra.mxu0 %v694
    %1937 = vmatprep.subr.bf16.mxu0 %v699
    %1938 = vmatpush1.bf16.msra.mxu0 %v698
    %1939 = vmatprep.subr.bf16.mxu0 %v703
    %1940 = vmatpush1.bf16.msra.mxu0 %v702
    %1941 = vmatprep.subr.bf16.mxu0 %v707
    %1942 = vmatpush1.bf16.msra.mxu0 %v706
    %1943 = vmatprep.subr.bf16.mxu0 0
    %1944 = vmatpush1.bf16.msra.mxu0 0
    %1945 = vmatprep.subr.bf16.mxu0 0
    %1946 = vmatpush1.bf16.msra.mxu0 0
    %1947 = vmatprep.subr.bf16.mxu0 0
    %1948 = vmatpush1.bf16.msra.mxu0 0
    %1949 = vmatprep.subr.bf16.mxu0 0
    %1950 = vmatpush1.bf16.msra.mxu0 0
    %1951 = vmatprep.subr.bf16.mxu0 0
    %1952 = vmatpush1.bf16.msra.mxu0 0
    %1953 = vmatprep.subr.bf16.mxu0 0
    %1954 = vmatpush1.bf16.msra.mxu0 0
    %1955 = vmatprep.subr.bf16.mxu0 0
    %1956 = vmatpush1.bf16.msra.mxu0 0
    %1957 = vmatprep.subr.bf16.mxu0 0
    %1958 = vmatpush1.bf16.msra.mxu0 0
    %1959 = vmatprep.mubr.bf16.mxu0 0
    %1960 = vmatmul.mubr.bf16.gmra.mrb[0].mxu0 %v1568
    %v1961 = vpop.f32.mrb[0].mxu0
    %v1962 = vadd.f32 0.0, %v1961
    %v1963 = vpop.f32.mrb[0].mxu0
    %v1964 = vadd.f32 0.0, %v1963
    %v1965 = vpop.f32.mrb[0].mxu0
    %v1966 = vadd.f32 0.0, %v1965
    %v1967 = vpop.f32.mrb[0].mxu0
    %v1968 = vadd.f32 0.0, %v1967
    %1969 = vdwg.mxu0
    %1970 = vmatprep.subr.bf16.mxu0 %v681
    %1971 = vmatpush1.bf16.msra.mxu0 %v680
    %1972 = vmatprep.subr.bf16.mxu0 %v685
    %1973 = vmatpush1.bf16.msra.mxu0 %v684
    %1974 = vmatprep.subr.bf16.mxu0 %v689
    %1975 = vmatpush1.bf16.msra.mxu0 %v688
    %1976 = vmatprep.subr.bf16.mxu0 %v693
    %1977 = vmatpush1.bf16.msra.mxu0 %v692
    %1978 = vmatprep.subr.bf16.mxu0 %v697
    %1979 = vmatpush1.bf16.msra.mxu0 %v696
    %1980 = vmatprep.subr.bf16.mxu0 %v701
    %1981 = vmatpush1.bf16.msra.mxu0 %v700
    %1982 = vmatprep.subr.bf16.mxu0 %v705
    %1983 = vmatpush1.bf16.msra.mxu0 %v704
    %1984 = vmatprep.subr.bf16.mxu0 %v709
    %1985 = vmatpush1.bf16.msra.mxu0 %v708
    %1986 = vmatprep.subr.bf16.mxu0 0
    %1987 = vmatpush1.bf16.msra.mxu0 0
    %1988 = vmatprep.subr.bf16.mxu0 0
    %1989 = vmatpush1.bf16.msra.mxu0 0
    %1990 = vmatprep.subr.bf16.mxu0 0
    %1991 = vmatpush1.bf16.msra.mxu0 0
    %1992 = vmatprep.subr.bf16.mxu0 0
    %1993 = vmatpush1.bf16.msra.mxu0 0
    %1994 = vmatprep.subr.bf16.mxu0 0
    %1995 = vmatpush1.bf16.msra.mxu0 0
    %1996 = vmatprep.subr.bf16.mxu0 0
    %1997 = vmatpush1.bf16.msra.mxu0 0
    %1998 = vmatprep.subr.bf16.mxu0 0
    %1999 = vmatpush1.bf16.msra.mxu0 0
    %2000 = vmatprep.subr.bf16.mxu0 0
    %2001 = vmatpush1.bf16.msra.mxu0 0
    %2002 = vmatprep.mubr.bf16.mxu0 0
    %2003 = vmatmul.mubr.bf16.gmra.mrb[0].mxu0 %v1568
    %v2004 = vpop.f32.mrb[0].mxu0
    %v2005 = vadd.f32 0.0, %v2004
    %v2006 = vpop.f32.mrb[0].mxu0
    %v2007 = vadd.f32 0.0, %v2006
    %v2008 = vpop.f32.mrb[0].mxu0
    %v2009 = vadd.f32 0.0, %v2008
    %v2010 = vpop.f32.mrb[0].mxu0
    %v2011 = vadd.f32 0.0, %v2010
    %2012 = vdwg.mxu0
    %v2013 = vadd.f32 %v251, %v1962
    %v2014 = vadd.f32 %v253, %v1964
    %v2015 = vadd.f32 %v364, %v2005
    %v2016 = vadd.f32 %v366, %v2007
    %v2017 = vadd.f32 %v255, %v1966
    %v2018 = vadd.f32 %v257, %v1968
    %v2019 = vadd.f32 %v368, %v2009
    %v2020 = vadd.f32 %v370, %v2011
    %v2021 = vxor.u32 %v2013, 2147483648
    %v2022 = vxor.u32 %v2017, 2147483648
    %v2023 = vmul.f32 %v2021, 1.442695
    %v2024 = vpow.pop %v2023
    %v2025 = vmul.f32 %v2022, 1.442695
    %v2026 = vpow.pop %v2025
    %v2027 = vadd.f32 %v2024, 1.0
    %v2028 = vadd.f32 %v2026, 1.0
    %v2029 = vrcp.pop %v2027
    %v2030 = vmul.f32 1.0, %v2029
    %v2031 = vrcp.pop %v2028
    %v2032 = vmul.f32 1.0, %v2031
    %v2033 = vxor.u32 %v2014, 2147483648
    %v2034 = vxor.u32 %v2018, 2147483648
    %v2035 = vmul.f32 %v2033, 1.442695
    %v2036 = vpow.pop %v2035
    %v2037 = vmul.f32 %v2034, 1.442695
    %v2038 = vpow.pop %v2037
    %v2039 = vadd.f32 %v2036, 1.0
    %v2040 = vadd.f32 %v2038, 1.0
    %v2041 = vrcp.pop %v2039
    %v2042 = vmul.f32 1.0, %v2041
    %v2043 = vrcp.pop %v2040
    %v2044 = vmul.f32 1.0, %v2043
    %v2045 = vtanh.pop %v2015
    %v2046 = vtanh.pop %v2019
    %v2047 = vxor.u32 %v2016, 2147483648
    %v2048 = vxor.u32 %v2020, 2147483648
    %v2049 = vmul.f32 %v2047, 1.442695
    %v2050 = vpow.pop %v2049
    %v2051 = vmul.f32 %v2048, 1.442695
    %v2052 = vpow.pop %v2051
    %v2053 = vadd.f32 %v2050, 1.0
    %v2054 = vadd.f32 %v2052, 1.0
    %v2055 = vrcp.pop %v2053
    %v2056 = vmul.f32 1.0, %v2055
    %v2057 = vrcp.pop %v2054
    %v2058 = vmul.f32 1.0, %v2057
    %v2059 = vmul.f32 %v2042, %v1562
    %v2060 = vmul.f32 %v2044, %v1563
    %v2061 = vmul.f32 %v2030, %v2045
    %v2062 = vmul.f32 %v2032, %v2046
    %v2063 = vadd.f32 %v2059, %v2061
    %v2064 = vadd.f32 %v2060, %v2062
    %v2065 = vtanh.pop %v2063
    %v2066 = vtanh.pop %v2064
    %v2067 = vmul.f32 %v2056, %v2065
    %v2068 = vmul.f32 %v2058, %v2066
    %v2069 = vpack.c.bf16 %v2068, %v2067
    %2070 = vmatprep.subr.bf16.mxu0 %v982
    %2071 = vmatpush1.bf16.msra.mxu0 %v981
    %2072 = vmatprep.subr.bf16.mxu0 %v986
    %2073 = vmatpush1.bf16.msra.mxu0 %v985
    %2074 = vmatprep.subr.bf16.mxu0 %v990
    %2075 = vmatpush1.bf16.msra.mxu0 %v989
    %2076 = vmatprep.subr.bf16.mxu0 %v994
    %2077 = vmatpush1.bf16.msra.mxu0 %v993
    %2078 = vmatprep.subr.bf16.mxu0 %v998
    %2079 = vmatpush1.bf16.msra.mxu0 %v997
    %2080 = vmatprep.subr.bf16.mxu0 %v1002
    %2081 = vmatpush1.bf16.msra.mxu0 %v1001
    %2082 = vmatprep.subr.bf16.mxu0 %v1006
    %2083 = vmatpush1.bf16.msra.mxu0 %v1005
    %2084 = vmatprep.subr.bf16.mxu0 %v1010
    %2085 = vmatpush1.bf16.msra.mxu0 %v1009
    %2086 = vmatprep.subr.bf16.mxu0 0
    %2087 = vmatpush1.bf16.msra.mxu0 0
    %2088 = vmatprep.subr.bf16.mxu0 0
    %2089 = vmatpush1.bf16.msra.mxu0 0
    %2090 = vmatprep.subr.bf16.mxu0 0
    %2091 = vmatpush1.bf16.msra.mxu0 0
    %2092 = vmatprep.subr.bf16.mxu0 0
    %2093 = vmatpush1.bf16.msra.mxu0 0
    %2094 = vmatprep.subr.bf16.mxu0 0
    %2095 = vmatpush1.bf16.msra.mxu0 0
    %2096 = vmatprep.subr.bf16.mxu0 0
    %2097 = vmatpush1.bf16.msra.mxu0 0
    %2098 = vmatprep.subr.bf16.mxu0 0
    %2099 = vmatpush1.bf16.msra.mxu0 0
    %2100 = vmatprep.subr.bf16.mxu0 0
    %2101 = vmatpush1.bf16.msra.mxu0 0
    %2102 = vmatprep.mubr.bf16.mxu0 0
    %2103 = vmatmul.mubr.bf16.gmra.mrb[0].mxu0 %v1789
    %v2104 = vpop.f32.mrb[0].mxu0
    %v2105 = vadd.f32 0.0, %v2104
    %v2106 = vpop.f32.mrb[0].mxu0
    %v2107 = vadd.f32 0.0, %v2106
    %v2108 = vpop.f32.mrb[0].mxu0
    %v2109 = vadd.f32 0.0, %v2108
    %v2110 = vpop.f32.mrb[0].mxu0
    %v2111 = vadd.f32 0.0, %v2110
    %2112 = vdwg.mxu0
    %2113 = vmatprep.subr.bf16.mxu0 %v984
    %2114 = vmatpush1.bf16.msra.mxu0 %v983
    %2115 = vmatprep.subr.bf16.mxu0 %v988
    %2116 = vmatpush1.bf16.msra.mxu0 %v987
    %2117 = vmatprep.subr.bf16.mxu0 %v992
    %2118 = vmatpush1.bf16.msra.mxu0 %v991
    %2119 = vmatprep.subr.bf16.mxu0 %v996
    %2120 = vmatpush1.bf16.msra.mxu0 %v995
    %2121 = vmatprep.subr.bf16.mxu0 %v1000
    %2122 = vmatpush1.bf16.msra.mxu0 %v999
    %2123 = vmatprep.subr.bf16.mxu0 %v1004
    %2124 = vmatpush1.bf16.msra.mxu0 %v1003
    %2125 = vmatprep.subr.bf16.mxu0 %v1008
    %2126 = vmatpush1.bf16.msra.mxu0 %v1007
    %2127 = vmatprep.subr.bf16.mxu0 %v1012
    %2128 = vmatpush1.bf16.msra.mxu0 %v1011
    %2129 = vmatprep.subr.bf16.mxu0 0
    %2130 = vmatpush1.bf16.msra.mxu0 0
    %2131 = vmatprep.subr.bf16.mxu0 0
    %2132 = vmatpush1.bf16.msra.mxu0 0
    %2133 = vmatprep.subr.bf16.mxu0 0
    %2134 = vmatpush1.bf16.msra.mxu0 0
    %2135 = vmatprep.subr.bf16.mxu0 0
    %2136 = vmatpush1.bf16.msra.mxu0 0
    %2137 = vmatprep.subr.bf16.mxu0 0
    %2138 = vmatpush1.bf16.msra.mxu0 0
    %2139 = vmatprep.subr.bf16.mxu0 0
    %2140 = vmatpush1.bf16.msra.mxu0 0
    %2141 = vmatprep.subr.bf16.mxu0 0
    %2142 = vmatpush1.bf16.msra.mxu0 0
    %2143 = vmatprep.subr.bf16.mxu0 0
    %2144 = vmatpush1.bf16.msra.mxu0 0
    %2145 = vmatprep.mubr.bf16.mxu0 0
    %2146 = vmatmul.mubr.bf16.gmra.mrb[0].mxu0 %v1789
    %v2147 = vpop.f32.mrb[0].mxu0
    %v2148 = vadd.f32 0.0, %v2147
    %v2149 = vpop.f32.mrb[0].mxu0
    %v2150 = vadd.f32 0.0, %v2149
    %v2151 = vpop.f32.mrb[0].mxu0
    %v2152 = vadd.f32 0.0, %v2151
    %v2153 = vpop.f32.mrb[0].mxu0
    %v2154 = vadd.f32 0.0, %v2153
    %2155 = vdwg.mxu0
    %2156 = vmatprep.subr.bf16.mxu0 %v1228
    %2157 = vmatpush1.bf16.msra.mxu0 %v1227
    %2158 = vmatprep.subr.bf16.mxu0 %v1232
    %2159 = vmatpush1.bf16.msra.mxu0 %v1231
    %2160 = vmatprep.subr.bf16.mxu0 %v1236
    %2161 = vmatpush1.bf16.msra.mxu0 %v1235
    %2162 = vmatprep.subr.bf16.mxu0 %v1240
    %2163 = vmatpush1.bf16.msra.mxu0 %v1239
    %2164 = vmatprep.subr.bf16.mxu0 %v1244
    %2165 = vmatpush1.bf16.msra.mxu0 %v1243
    %2166 = vmatprep.subr.bf16.mxu0 %v1248
    %2167 = vmatpush1.bf16.msra.mxu0 %v1247
    %2168 = vmatprep.subr.bf16.mxu0 %v1252
    %2169 = vmatpush1.bf16.msra.mxu0 %v1251
    %2170 = vmatprep.subr.bf16.mxu0 %v1256
    %2171 = vmatpush1.bf16.msra.mxu0 %v1255
    %2172 = vmatprep.subr.bf16.mxu0 0
    %2173 = vmatpush1.bf16.msra.mxu0 0
    %2174 = vmatprep.subr.bf16.mxu0 0
    %2175 = vmatpush1.bf16.msra.mxu0 0
    %2176 = vmatprep.subr.bf16.mxu0 0
    %2177 = vmatpush1.bf16.msra.mxu0 0
    %2178 = vmatprep.subr.bf16.mxu0 0
    %2179 = vmatpush1.bf16.msra.mxu0 0
    %2180 = vmatprep.subr.bf16.mxu0 0
    %2181 = vmatpush1.bf16.msra.mxu0 0
    %2182 = vmatprep.subr.bf16.mxu0 0
    %2183 = vmatpush1.bf16.msra.mxu0 0
    %2184 = vmatprep.subr.bf16.mxu0 0
    %2185 = vmatpush1.bf16.msra.mxu0 0
    %2186 = vmatprep.subr.bf16.mxu0 0
    %2187 = vmatpush1.bf16.msra.mxu0 0
    %2188 = vmatprep.mubr.bf16.mxu0 0
    %2189 = vmatmul.mubr.bf16.gmra.mrb[0].mxu0 %v2069
    %v2190 = vpop.f32.mrb[0].mxu0
    %v2191 = vadd.f32 %v2105, %v2190
    %v2192 = vpop.f32.mrb[0].mxu0
    %v2193 = vadd.f32 %v2107, %v2192
    %v2194 = vpop.f32.mrb[0].mxu0
    %v2195 = vadd.f32 %v2109, %v2194
    %v2196 = vpop.f32.mrb[0].mxu0
    %v2197 = vadd.f32 %v2111, %v2196
    %2198 = vdwg.mxu0
    %2199 = vmatprep.subr.bf16.mxu0 %v1230
    %2200 = vmatpush1.bf16.msra.mxu0 %v1229
    %2201 = vmatprep.subr.bf16.mxu0 %v1234
    %2202 = vmatpush1.bf16.msra.mxu0 %v1233
    %2203 = vmatprep.subr.bf16.mxu0 %v1238
    %2204 = vmatpush1.bf16.msra.mxu0 %v1237
    %2205 = vmatprep.subr.bf16.mxu0 %v1242
    %2206 = vmatpush1.bf16.msra.mxu0 %v1241
    %2207 = vmatprep.subr.bf16.mxu0 %v1246
    %2208 = vmatpush1.bf16.msra.mxu0 %v1245
    %2209 = vmatprep.subr.bf16.mxu0 %v1250
    %2210 = vmatpush1.bf16.msra.mxu0 %v1249
    %2211 = vmatprep.subr.bf16.mxu0 %v1254
    %2212 = vmatpush1.bf16.msra.mxu0 %v1253
    %2213 = vmatprep.subr.bf16.mxu0 %v1258
    %2214 = vmatpush1.bf16.msra.mxu0 %v1257
    %2215 = vmatprep.subr.bf16.mxu0 0
    %2216 = vmatpush1.bf16.msra.mxu0 0
    %2217 = vmatprep.subr.bf16.mxu0 0
    %2218 = vmatpush1.bf16.msra.mxu0 0
    %2219 = vmatprep.subr.bf16.mxu0 0
    %2220 = vmatpush1.bf16.msra.mxu0 0
    %2221 = vmatprep.subr.bf16.mxu0 0
    %2222 = vmatpush1.bf16.msra.mxu0 0
    %2223 = vmatprep.subr.bf16.mxu0 0
    %2224 = vmatpush1.bf16.msra.mxu0 0
    %2225 = vmatprep.subr.bf16.mxu0 0
    %2226 = vmatpush1.bf16.msra.mxu0 0
    %2227 = vmatprep.subr.bf16.mxu0 0
    %2228 = vmatpush1.bf16.msra.mxu0 0
    %2229 = vmatprep.subr.bf16.mxu0 0
    %2230 = vmatpush1.bf16.msra.mxu0 0
    %2231 = vmatprep.mubr.bf16.mxu0 0
    %2232 = vmatmul.mubr.bf16.gmra.mrb[0].mxu0 %v2069
    %v2233 = vpop.f32.mrb[0].mxu0
    %v2234 = vadd.f32 %v2148, %v2233
    %v2235 = vpop.f32.mrb[0].mxu0
    %v2236 = vadd.f32 %v2150, %v2235
    %v2237 = vpop.f32.mrb[0].mxu0
    %v2238 = vadd.f32 %v2152, %v2237
    %v2239 = vpop.f32.mrb[0].mxu0
    %v2240 = vadd.f32 %v2154, %v2239
    %2241 = vdwg.mxu0
    %v2242 = vxor.u32 %v2191, 2147483648
    %v2243 = vxor.u32 %v2195, 2147483648
    %v2244 = vmul.f32 %v2242, 1.442695
    %v2245 = vpow.pop %v2244
    %v2246 = vmul.f32 %v2243, 1.442695
    %v2247 = vpow.pop %v2246
    %v2248 = vadd.f32 %v2245, 1.0
    %v2249 = vadd.f32 %v2247, 1.0
    %v2250 = vrcp.pop %v2248
    %v2251 = vmul.f32 1.0, %v2250
    %v2252 = vrcp.pop %v2249
    %v2253 = vmul.f32 1.0, %v2252
    %v2254 = vxor.u32 %v2193, 2147483648
    %v2255 = vxor.u32 %v2197, 2147483648
    %v2256 = vmul.f32 %v2254, 1.442695
    %v2257 = vpow.pop %v2256
    %v2258 = vmul.f32 %v2255, 1.442695
    %v2259 = vpow.pop %v2258
    %v2260 = vadd.f32 %v2257, 1.0
    %v2261 = vadd.f32 %v2259, 1.0
    %v2262 = vrcp.pop %v2260
    %v2263 = vmul.f32 1.0, %v2262
    %v2264 = vrcp.pop %v2261
    %v2265 = vmul.f32 1.0, %v2264
    %v2266 = vtanh.pop %v2234
    %v2267 = vtanh.pop %v2238
    %v2268 = vxor.u32 %v2236, 2147483648
    %v2269 = vxor.u32 %v2240, 2147483648
    %v2270 = vmul.f32 %v2268, 1.442695
    %v2271 = vpow.pop %v2270
    %v2272 = vmul.f32 %v2269, 1.442695
    %v2273 = vpow.pop %v2272
    %v2274 = vadd.f32 %v2271, 1.0
    %v2275 = vadd.f32 %v2273, 1.0
    %v2276 = vrcp.pop %v2274
    %v2277 = vmul.f32 1.0, %v2276
    %v2278 = vrcp.pop %v2275
    %v2279 = vmul.f32 1.0, %v2278
    %v2280 = vmul.f32 %v2263, %v1783
    %v2281 = vmul.f32 %v2265, %v1784
    %v2282 = vmul.f32 %v2251, %v2266
    %v2283 = vmul.f32 %v2253, %v2267
    %v2284 = vadd.f32 %v2280, %v2282
    %v2285 = vadd.f32 %v2281, %v2283
    %v2286 = vtanh.pop %v2284
    %v2287 = vtanh.pop %v2285
    %v2288 = vmul.f32 %v2277, %v2286
    %v2289 = vmul.f32 %v2279, %v2287
    %v2290 = vpack.c.bf16 %v2289, %v2288
    %v2299 = vunpack.c.l.b16 %v534
    %v2300 = vunpack.c.l.b16 %v535
    %v2301 = vunpack.c.l.b16 %v536
    %v2302 = vunpack.c.l.b16 %v537
    %v2303 = vunpack.c.l.b16 %v538
    %v2304 = vunpack.c.l.b16 %v539
    %v2305 = vunpack.c.l.b16 %v540
    %v2306 = vunpack.c.l.b16 %v541
    %v2307 = vpack.c.b16 %v2300, %v2299
    %v2308 = vpack.c.b16 %v2302, %v2301
    %v2309 = vpack.c.b16 %v2304, %v2303
    %v2310 = vpack.c.b16 %v2306, %v2305
    %v2316 = vsel %vm1814, %v2290, 0
    %2318 = vmatprep.subr.bf16.mxu0 0
    %2319 = vmatpush1.bf16.msra.mxu0 %v2307
    %2320 = vmatprep.subr.bf16.mxu0 0
    %2321 = vmatpush1.bf16.msra.mxu0 %v2308
    %2322 = vmatprep.subr.bf16.mxu0 0
    %2323 = vmatpush1.bf16.msra.mxu0 %v2309
    %2324 = vmatprep.subr.bf16.mxu0 0
    %2325 = vmatpush1.bf16.msra.mxu0 %v2310
    %2326 = vmatprep.subr.bf16.mxu0 0
    %2327 = vmatpush1.bf16.msra.mxu0 0
    %2328 = vmatprep.subr.bf16.mxu0 0
    %2329 = vmatpush1.bf16.msra.mxu0 0
    %2330 = vmatprep.subr.bf16.mxu0 0
    %2331 = vmatpush1.bf16.msra.mxu0 0
    %2332 = vmatprep.subr.bf16.mxu0 0
    %2333 = vmatpush1.bf16.msra.mxu0 0
    %2334 = vmatprep.subr.bf16.mxu0 0
    %2335 = vmatpush1.bf16.msra.mxu0 0
    %2336 = vmatprep.subr.bf16.mxu0 0
    %2337 = vmatpush1.bf16.msra.mxu0 0
    %2338 = vmatprep.subr.bf16.mxu0 0
    %2339 = vmatpush1.bf16.msra.mxu0 0
    %2340 = vmatprep.subr.bf16.mxu0 0
    %2341 = vmatpush1.bf16.msra.mxu0 0
    %2342 = vmatprep.subr.bf16.mxu0 0
    %2343 = vmatpush1.bf16.msra.mxu0 0
    %2344 = vmatprep.subr.bf16.mxu0 0
    %2345 = vmatpush1.bf16.msra.mxu0 0
    %2346 = vmatprep.subr.bf16.mxu0 0
    %2347 = vmatpush1.bf16.msra.mxu0 0
    %2348 = vmatprep.subr.bf16.mxu0 0
    %2349 = vmatpush1.bf16.msra.mxu0 0
    %2350 = vmatprep.mubr.bf16.mxu0 0
    %2351 = vmatmul.mubr.bf16.gmra.mrb[0].mxu0 %v2316
    %v2352 = vpop.f32.mrb[0].mxu0
    %v2353 = vadd.f32 0.0, %v2352
    %v2354 = vpop.f32.mrb[0].mxu0
    %v2355 = vpop.f32.mrb[0].mxu0
    %v2356 = vadd.f32 0.0, %v2355
    %v2357 = vpop.f32.mrb[0].mxu0
    %2358 = vdwg.mxu0
    %v2359 = vadd.f32 %v1921, %v2353
    %v2360 = vadd.f32 %v1924, %v2356
    %2361 = vmatprep.subr.bf16.mxu0 %v679
    %2362 = vmatpush1.bf16.msra.mxu0 %v678
    %2363 = vmatprep.subr.bf16.mxu0 %v683
    %2364 = vmatpush1.bf16.msra.mxu0 %v682
    %2365 = vmatprep.subr.bf16.mxu0 %v687
    %2366 = vmatpush1.bf16.msra.mxu0 %v686
    %2367 = vmatprep.subr.bf16.mxu0 %v691
    %2368 = vmatpush1.bf16.msra.mxu0 %v690
    %2369 = vmatprep.subr.bf16.mxu0 %v695
    %2370 = vmatpush1.bf16.msra.mxu0 %v694
    %2371 = vmatprep.subr.bf16.mxu0 %v699
    %2372 = vmatpush1.bf16.msra.mxu0 %v698
    %2373 = vmatprep.subr.bf16.mxu0 %v703
    %2374 = vmatpush1.bf16.msra.mxu0 %v702
    %2375 = vmatprep.subr.bf16.mxu0 %v707
    %2376 = vmatpush1.bf16.msra.mxu0 %v706
    %2377 = vmatprep.subr.bf16.mxu0 0
    %2378 = vmatpush1.bf16.msra.mxu0 0
    %2379 = vmatprep.subr.bf16.mxu0 0
    %2380 = vmatpush1.bf16.msra.mxu0 0
    %2381 = vmatprep.subr.bf16.mxu0 0
    %2382 = vmatpush1.bf16.msra.mxu0 0
    %2383 = vmatprep.subr.bf16.mxu0 0
    %2384 = vmatpush1.bf16.msra.mxu0 0
    %2385 = vmatprep.subr.bf16.mxu0 0
    %2386 = vmatpush1.bf16.msra.mxu0 0
    %2387 = vmatprep.subr.bf16.mxu0 0
    %2388 = vmatpush1.bf16.msra.mxu0 0
    %2389 = vmatprep.subr.bf16.mxu0 0
    %2390 = vmatpush1.bf16.msra.mxu0 0
    %2391 = vmatprep.subr.bf16.mxu0 0
    %2392 = vmatpush1.bf16.msra.mxu0 0
    %2393 = vmatprep.mubr.bf16.mxu0 0
    %2394 = vmatmul.mubr.bf16.gmra.mrb[0].mxu0 %v2069
    %v2395 = vpop.f32.mrb[0].mxu0
    %v2396 = vadd.f32 0.0, %v2395
    %v2397 = vpop.f32.mrb[0].mxu0
    %v2398 = vadd.f32 0.0, %v2397
    %v2399 = vpop.f32.mrb[0].mxu0
    %v2400 = vadd.f32 0.0, %v2399
    %v2401 = vpop.f32.mrb[0].mxu0
    %v2402 = vadd.f32 0.0, %v2401
    %2403 = vdwg.mxu0
    %2404 = vmatprep.subr.bf16.mxu0 %v681
    %2405 = vmatpush1.bf16.msra.mxu0 %v680
    %2406 = vmatprep.subr.bf16.mxu0 %v685
    %2407 = vmatpush1.bf16.msra.mxu0 %v684
    %2408 = vmatprep.subr.bf16.mxu0 %v689
    %2409 = vmatpush1.bf16.msra.mxu0 %v688
    %2410 = vmatprep.subr.bf16.mxu0 %v693
    %2411 = vmatpush1.bf16.msra.mxu0 %v692
    %2412 = vmatprep.subr.bf16.mxu0 %v697
    %2413 = vmatpush1.bf16.msra.mxu0 %v696
    %2414 = vmatprep.subr.bf16.mxu0 %v701
    %2415 = vmatpush1.bf16.msra.mxu0 %v700
    %2416 = vmatprep.subr.bf16.mxu0 %v705
    %2417 = vmatpush1.bf16.msra.mxu0 %v704
    %2418 = vmatprep.subr.bf16.mxu0 %v709
    %2419 = vmatpush1.bf16.msra.mxu0 %v708
    %2420 = vmatprep.subr.bf16.mxu0 0
    %2421 = vmatpush1.bf16.msra.mxu0 0
    %2422 = vmatprep.subr.bf16.mxu0 0
    %2423 = vmatpush1.bf16.msra.mxu0 0
    %2424 = vmatprep.subr.bf16.mxu0 0
    %2425 = vmatpush1.bf16.msra.mxu0 0
    %2426 = vmatprep.subr.bf16.mxu0 0
    %2427 = vmatpush1.bf16.msra.mxu0 0
    %2428 = vmatprep.subr.bf16.mxu0 0
    %2429 = vmatpush1.bf16.msra.mxu0 0
    %2430 = vmatprep.subr.bf16.mxu0 0
    %2431 = vmatpush1.bf16.msra.mxu0 0
    %2432 = vmatprep.subr.bf16.mxu0 0
    %2433 = vmatpush1.bf16.msra.mxu0 0
    %2434 = vmatprep.subr.bf16.mxu0 0
    %2435 = vmatpush1.bf16.msra.mxu0 0
    %2436 = vmatprep.mubr.bf16.mxu0 0
    %2437 = vmatmul.mubr.bf16.gmra.mrb[0].mxu0 %v2069
    %v2438 = vpop.f32.mrb[0].mxu0
    %v2439 = vadd.f32 0.0, %v2438
    %v2440 = vpop.f32.mrb[0].mxu0
    %v2441 = vadd.f32 0.0, %v2440
    %v2442 = vpop.f32.mrb[0].mxu0
    %v2443 = vadd.f32 0.0, %v2442
    %v2444 = vpop.f32.mrb[0].mxu0
    %v2445 = vadd.f32 0.0, %v2444
    %2446 = vdwg.mxu0
    %v2447 = vadd.f32 %v261, %v2396
    %v2448 = vadd.f32 %v263, %v2398
    %v2449 = vadd.f32 %v374, %v2439
    %v2450 = vadd.f32 %v376, %v2441
    %v2451 = vadd.f32 %v265, %v2400
    %v2452 = vadd.f32 %v267, %v2402
    %v2453 = vadd.f32 %v378, %v2443
    %v2454 = vadd.f32 %v380, %v2445
    %v2455 = vxor.u32 %v2447, 2147483648
    %v2456 = vxor.u32 %v2451, 2147483648
    %v2457 = vmul.f32 %v2455, 1.442695
    %v2458 = vpow.pop %v2457
    %v2459 = vmul.f32 %v2456, 1.442695
    %v2460 = vpow.pop %v2459
    %v2461 = vadd.f32 %v2458, 1.0
    %v2462 = vadd.f32 %v2460, 1.0
    %v2463 = vrcp.pop %v2461
    %v2464 = vmul.f32 1.0, %v2463
    %v2465 = vrcp.pop %v2462
    %v2466 = vmul.f32 1.0, %v2465
    %v2467 = vxor.u32 %v2448, 2147483648
    %v2468 = vxor.u32 %v2452, 2147483648
    %v2469 = vmul.f32 %v2467, 1.442695
    %v2470 = vpow.pop %v2469
    %v2471 = vmul.f32 %v2468, 1.442695
    %v2472 = vpow.pop %v2471
    %v2473 = vadd.f32 %v2470, 1.0
    %v2474 = vadd.f32 %v2472, 1.0
    %v2475 = vrcp.pop %v2473
    %v2476 = vmul.f32 1.0, %v2475
    %v2477 = vrcp.pop %v2474
    %v2478 = vmul.f32 1.0, %v2477
    %v2479 = vtanh.pop %v2449
    %v2480 = vtanh.pop %v2453
    %v2481 = vxor.u32 %v2450, 2147483648
    %v2482 = vxor.u32 %v2454, 2147483648
    %v2483 = vmul.f32 %v2481, 1.442695
    %v2484 = vpow.pop %v2483
    %v2485 = vmul.f32 %v2482, 1.442695
    %v2486 = vpow.pop %v2485
    %v2487 = vadd.f32 %v2484, 1.0
    %v2488 = vadd.f32 %v2486, 1.0
    %v2489 = vrcp.pop %v2487
    %v2490 = vmul.f32 1.0, %v2489
    %v2491 = vrcp.pop %v2488
    %v2492 = vmul.f32 1.0, %v2491
    %v2493 = vmul.f32 %v2476, %v2063
    %v2494 = vmul.f32 %v2478, %v2064
    %v2495 = vmul.f32 %v2464, %v2479
    %v2496 = vmul.f32 %v2466, %v2480
    %v2497 = vadd.f32 %v2493, %v2495
    %v2498 = vadd.f32 %v2494, %v2496
    %v2499 = vtanh.pop %v2497
    %v2500 = vtanh.pop %v2498
    %v2501 = vmul.f32 %v2490, %v2499
    %v2502 = vmul.f32 %v2492, %v2500
    %v2503 = vpack.c.bf16 %v2502, %v2501
    %2504 = vmatprep.subr.bf16.mxu0 %v982
    %2505 = vmatpush1.bf16.msra.mxu0 %v981
    %2506 = vmatprep.subr.bf16.mxu0 %v986
    %2507 = vmatpush1.bf16.msra.mxu0 %v985
    %2508 = vmatprep.subr.bf16.mxu0 %v990
    %2509 = vmatpush1.bf16.msra.mxu0 %v989
    %2510 = vmatprep.subr.bf16.mxu0 %v994
    %2511 = vmatpush1.bf16.msra.mxu0 %v993
    %2512 = vmatprep.subr.bf16.mxu0 %v998
    %2513 = vmatpush1.bf16.msra.mxu0 %v997
    %2514 = vmatprep.subr.bf16.mxu0 %v1002
    %2515 = vmatpush1.bf16.msra.mxu0 %v1001
    %2516 = vmatprep.subr.bf16.mxu0 %v1006
    %2517 = vmatpush1.bf16.msra.mxu0 %v1005
    %2518 = vmatprep.subr.bf16.mxu0 %v1010
    %2519 = vmatpush1.bf16.msra.mxu0 %v1009
    %2520 = vmatprep.subr.bf16.mxu0 0
    %2521 = vmatpush1.bf16.msra.mxu0 0
    %2522 = vmatprep.subr.bf16.mxu0 0
    %2523 = vmatpush1.bf16.msra.mxu0 0
    %2524 = vmatprep.subr.bf16.mxu0 0
    %2525 = vmatpush1.bf16.msra.mxu0 0
    %2526 = vmatprep.subr.bf16.mxu0 0
    %2527 = vmatpush1.bf16.msra.mxu0 0
    %2528 = vmatprep.subr.bf16.mxu0 0
    %2529 = vmatpush1.bf16.msra.mxu0 0
    %2530 = vmatprep.subr.bf16.mxu0 0
    %2531 = vmatpush1.bf16.msra.mxu0 0
    %2532 = vmatprep.subr.bf16.mxu0 0
    %2533 = vmatpush1.bf16.msra.mxu0 0
    %2534 = vmatprep.subr.bf16.mxu0 0
    %2535 = vmatpush1.bf16.msra.mxu0 0
    %2536 = vmatprep.mubr.bf16.mxu0 0
    %2537 = vmatmul.mubr.bf16.gmra.mrb[0].mxu0 %v2290
    %v2538 = vpop.f32.mrb[0].mxu0
    %v2539 = vadd.f32 0.0, %v2538
    %v2540 = vpop.f32.mrb[0].mxu0
    %v2541 = vadd.f32 0.0, %v2540
    %v2542 = vpop.f32.mrb[0].mxu0
    %v2543 = vadd.f32 0.0, %v2542
    %v2544 = vpop.f32.mrb[0].mxu0
    %v2545 = vadd.f32 0.0, %v2544
    %2546 = vdwg.mxu0
    %2547 = vmatprep.subr.bf16.mxu0 %v984
    %2548 = vmatpush1.bf16.msra.mxu0 %v983
    %2549 = vmatprep.subr.bf16.mxu0 %v988
    %2550 = vmatpush1.bf16.msra.mxu0 %v987
    %2551 = vmatprep.subr.bf16.mxu0 %v992
    %2552 = vmatpush1.bf16.msra.mxu0 %v991
    %2553 = vmatprep.subr.bf16.mxu0 %v996
    %2554 = vmatpush1.bf16.msra.mxu0 %v995
    %2555 = vmatprep.subr.bf16.mxu0 %v1000
    %2556 = vmatpush1.bf16.msra.mxu0 %v999
    %2557 = vmatprep.subr.bf16.mxu0 %v1004
    %2558 = vmatpush1.bf16.msra.mxu0 %v1003
    %2559 = vmatprep.subr.bf16.mxu0 %v1008
    %2560 = vmatpush1.bf16.msra.mxu0 %v1007
    %2561 = vmatprep.subr.bf16.mxu0 %v1012
    %2562 = vmatpush1.bf16.msra.mxu0 %v1011
    %2563 = vmatprep.subr.bf16.mxu0 0
    %2564 = vmatpush1.bf16.msra.mxu0 0
    %2565 = vmatprep.subr.bf16.mxu0 0
    %2566 = vmatpush1.bf16.msra.mxu0 0
    %2567 = vmatprep.subr.bf16.mxu0 0
    %2568 = vmatpush1.bf16.msra.mxu0 0
    %2569 = vmatprep.subr.bf16.mxu0 0
    %2570 = vmatpush1.bf16.msra.mxu0 0
    %2571 = vmatprep.subr.bf16.mxu0 0
    %2572 = vmatpush1.bf16.msra.mxu0 0
    %2573 = vmatprep.subr.bf16.mxu0 0
    %2574 = vmatpush1.bf16.msra.mxu0 0
    %2575 = vmatprep.subr.bf16.mxu0 0
    %2576 = vmatpush1.bf16.msra.mxu0 0
    %2577 = vmatprep.subr.bf16.mxu0 0
    %2578 = vmatpush1.bf16.msra.mxu0 0
    %2579 = vmatprep.mubr.bf16.mxu0 0
    %2580 = vmatmul.mubr.bf16.gmra.mrb[0].mxu0 %v2290
    %v2581 = vpop.f32.mrb[0].mxu0
    %v2582 = vadd.f32 0.0, %v2581
    %v2583 = vpop.f32.mrb[0].mxu0
    %v2584 = vadd.f32 0.0, %v2583
    %v2585 = vpop.f32.mrb[0].mxu0
    %v2586 = vadd.f32 0.0, %v2585
    %v2587 = vpop.f32.mrb[0].mxu0
    %v2588 = vadd.f32 0.0, %v2587
    %2589 = vdwg.mxu0
    %2590 = vmatprep.subr.bf16.mxu0 %v1228
    %2591 = vmatpush1.bf16.msra.mxu0 %v1227
    %2592 = vmatprep.subr.bf16.mxu0 %v1232
    %2593 = vmatpush1.bf16.msra.mxu0 %v1231
    %2594 = vmatprep.subr.bf16.mxu0 %v1236
    %2595 = vmatpush1.bf16.msra.mxu0 %v1235
    %2596 = vmatprep.subr.bf16.mxu0 %v1240
    %2597 = vmatpush1.bf16.msra.mxu0 %v1239
    %2598 = vmatprep.subr.bf16.mxu0 %v1244
    %2599 = vmatpush1.bf16.msra.mxu0 %v1243
    %2600 = vmatprep.subr.bf16.mxu0 %v1248
    %2601 = vmatpush1.bf16.msra.mxu0 %v1247
    %2602 = vmatprep.subr.bf16.mxu0 %v1252
    %2603 = vmatpush1.bf16.msra.mxu0 %v1251
    %2604 = vmatprep.subr.bf16.mxu0 %v1256
    %2605 = vmatpush1.bf16.msra.mxu0 %v1255
    %2606 = vmatprep.subr.bf16.mxu0 0
    %2607 = vmatpush1.bf16.msra.mxu0 0
    %2608 = vmatprep.subr.bf16.mxu0 0
    %2609 = vmatpush1.bf16.msra.mxu0 0
    %2610 = vmatprep.subr.bf16.mxu0 0
    %2611 = vmatpush1.bf16.msra.mxu0 0
    %2612 = vmatprep.subr.bf16.mxu0 0
    %2613 = vmatpush1.bf16.msra.mxu0 0
    %2614 = vmatprep.subr.bf16.mxu0 0
    %2615 = vmatpush1.bf16.msra.mxu0 0
    %2616 = vmatprep.subr.bf16.mxu0 0
    %2617 = vmatpush1.bf16.msra.mxu0 0
    %2618 = vmatprep.subr.bf16.mxu0 0
    %2619 = vmatpush1.bf16.msra.mxu0 0
    %2620 = vmatprep.subr.bf16.mxu0 0
    %2621 = vmatpush1.bf16.msra.mxu0 0
    %2622 = vmatprep.mubr.bf16.mxu0 0
    %2623 = vmatmul.mubr.bf16.gmra.mrb[0].mxu0 %v2503
    %v2624 = vpop.f32.mrb[0].mxu0
    %v2625 = vadd.f32 %v2539, %v2624
    %v2626 = vpop.f32.mrb[0].mxu0
    %v2627 = vadd.f32 %v2541, %v2626
    %v2628 = vpop.f32.mrb[0].mxu0
    %v2629 = vadd.f32 %v2543, %v2628
    %v2630 = vpop.f32.mrb[0].mxu0
    %v2631 = vadd.f32 %v2545, %v2630
    %2632 = vdwg.mxu0
    %2633 = vmatprep.subr.bf16.mxu0 %v1230
    %2634 = vmatpush1.bf16.msra.mxu0 %v1229
    %2635 = vmatprep.subr.bf16.mxu0 %v1234
    %2636 = vmatpush1.bf16.msra.mxu0 %v1233
    %2637 = vmatprep.subr.bf16.mxu0 %v1238
    %2638 = vmatpush1.bf16.msra.mxu0 %v1237
    %2639 = vmatprep.subr.bf16.mxu0 %v1242
    %2640 = vmatpush1.bf16.msra.mxu0 %v1241
    %2641 = vmatprep.subr.bf16.mxu0 %v1246
    %2642 = vmatpush1.bf16.msra.mxu0 %v1245
    %2643 = vmatprep.subr.bf16.mxu0 %v1250
    %2644 = vmatpush1.bf16.msra.mxu0 %v1249
    %2645 = vmatprep.subr.bf16.mxu0 %v1254
    %2646 = vmatpush1.bf16.msra.mxu0 %v1253
    %2647 = vmatprep.subr.bf16.mxu0 %v1258
    %2648 = vmatpush1.bf16.msra.mxu0 %v1257
    %2649 = vmatprep.subr.bf16.mxu0 0
    %2650 = vmatpush1.bf16.msra.mxu0 0
    %2651 = vmatprep.subr.bf16.mxu0 0
    %2652 = vmatpush1.bf16.msra.mxu0 0
    %2653 = vmatprep.subr.bf16.mxu0 0
    %2654 = vmatpush1.bf16.msra.mxu0 0
    %2655 = vmatprep.subr.bf16.mxu0 0
    %2656 = vmatpush1.bf16.msra.mxu0 0
    %2657 = vmatprep.subr.bf16.mxu0 0
    %2658 = vmatpush1.bf16.msra.mxu0 0
    %2659 = vmatprep.subr.bf16.mxu0 0
    %2660 = vmatpush1.bf16.msra.mxu0 0
    %2661 = vmatprep.subr.bf16.mxu0 0
    %2662 = vmatpush1.bf16.msra.mxu0 0
    %2663 = vmatprep.subr.bf16.mxu0 0
    %2664 = vmatpush1.bf16.msra.mxu0 0
    %2665 = vmatprep.mubr.bf16.mxu0 0
    %2666 = vmatmul.mubr.bf16.gmra.mrb[0].mxu0 %v2503
    %v2667 = vpop.f32.mrb[0].mxu0
    %v2668 = vadd.f32 %v2582, %v2667
    %v2669 = vpop.f32.mrb[0].mxu0
    %v2670 = vadd.f32 %v2584, %v2669
    %v2671 = vpop.f32.mrb[0].mxu0
    %v2672 = vadd.f32 %v2586, %v2671
    %v2673 = vpop.f32.mrb[0].mxu0
    %v2674 = vadd.f32 %v2588, %v2673
    %2675 = vdwg.mxu0
    %v2676 = vxor.u32 %v2625, 2147483648
    %v2677 = vxor.u32 %v2629, 2147483648
    %v2678 = vmul.f32 %v2676, 1.442695
    %v2679 = vpow.pop %v2678
    %v2680 = vmul.f32 %v2677, 1.442695
    %v2681 = vpow.pop %v2680
    %v2682 = vadd.f32 %v2679, 1.0
    %v2683 = vadd.f32 %v2681, 1.0
    %v2684 = vrcp.pop %v2682
    %v2685 = vmul.f32 1.0, %v2684
    %v2686 = vrcp.pop %v2683
    %v2687 = vmul.f32 1.0, %v2686
    %v2688 = vxor.u32 %v2627, 2147483648
    %v2689 = vxor.u32 %v2631, 2147483648
    %v2690 = vmul.f32 %v2688, 1.442695
    %v2691 = vpow.pop %v2690
    %v2692 = vmul.f32 %v2689, 1.442695
    %v2693 = vpow.pop %v2692
    %v2694 = vadd.f32 %v2691, 1.0
    %v2695 = vadd.f32 %v2693, 1.0
    %v2696 = vrcp.pop %v2694
    %v2697 = vmul.f32 1.0, %v2696
    %v2698 = vrcp.pop %v2695
    %v2699 = vmul.f32 1.0, %v2698
    %v2700 = vtanh.pop %v2668
    %v2701 = vtanh.pop %v2672
    %v2702 = vxor.u32 %v2670, 2147483648
    %v2703 = vxor.u32 %v2674, 2147483648
    %v2704 = vmul.f32 %v2702, 1.442695
    %v2705 = vpow.pop %v2704
    %v2706 = vmul.f32 %v2703, 1.442695
    %v2707 = vpow.pop %v2706
    %v2708 = vadd.f32 %v2705, 1.0
    %v2709 = vadd.f32 %v2707, 1.0
    %v2710 = vrcp.pop %v2708
    %v2711 = vmul.f32 1.0, %v2710
    %v2712 = vrcp.pop %v2709
    %v2713 = vmul.f32 1.0, %v2712
    %v2714 = vmul.f32 %v2697, %v2284
    %v2715 = vmul.f32 %v2699, %v2285
    %v2716 = vmul.f32 %v2685, %v2700
    %v2717 = vmul.f32 %v2687, %v2701
    %v2718 = vadd.f32 %v2714, %v2716
    %v2719 = vadd.f32 %v2715, %v2717
    %v2720 = vtanh.pop %v2718
    %v2721 = vtanh.pop %v2719
    %v2722 = vmul.f32 %v2711, %v2720
    %v2723 = vmul.f32 %v2713, %v2721
    %v2724 = vpack.c.bf16 %v2723, %v2722
    %v2733 = vunpack.c.l.b16 %v542
    %v2734 = vunpack.c.l.b16 %v543
    %v2735 = vunpack.c.l.b16 %v544
    %v2736 = vunpack.c.l.b16 %v545
    %v2737 = vunpack.c.l.b16 %v546
    %v2738 = vunpack.c.l.b16 %v547
    %v2739 = vunpack.c.l.b16 %v548
    %v2740 = vunpack.c.l.b16 %v549
    %v2741 = vpack.c.b16 %v2734, %v2733
    %v2742 = vpack.c.b16 %v2736, %v2735
    %v2743 = vpack.c.b16 %v2738, %v2737
    %v2744 = vpack.c.b16 %v2740, %v2739
    %v2750 = vsel %vm1814, %v2724, 0
    %2752 = vmatprep.subr.bf16.mxu0 0
    %2753 = vmatpush1.bf16.msra.mxu0 %v2741
    %2754 = vmatprep.subr.bf16.mxu0 0
    %2755 = vmatpush1.bf16.msra.mxu0 %v2742
    %2756 = vmatprep.subr.bf16.mxu0 0
    %2757 = vmatpush1.bf16.msra.mxu0 %v2743
    %2758 = vmatprep.subr.bf16.mxu0 0
    %2759 = vmatpush1.bf16.msra.mxu0 %v2744
    %2760 = vmatprep.subr.bf16.mxu0 0
    %2761 = vmatpush1.bf16.msra.mxu0 0
    %2762 = vmatprep.subr.bf16.mxu0 0
    %2763 = vmatpush1.bf16.msra.mxu0 0
    %2764 = vmatprep.subr.bf16.mxu0 0
    %2765 = vmatpush1.bf16.msra.mxu0 0
    %2766 = vmatprep.subr.bf16.mxu0 0
    %2767 = vmatpush1.bf16.msra.mxu0 0
    %2768 = vmatprep.subr.bf16.mxu0 0
    %2769 = vmatpush1.bf16.msra.mxu0 0
    %2770 = vmatprep.subr.bf16.mxu0 0
    %2771 = vmatpush1.bf16.msra.mxu0 0
    %2772 = vmatprep.subr.bf16.mxu0 0
    %2773 = vmatpush1.bf16.msra.mxu0 0
    %2774 = vmatprep.subr.bf16.mxu0 0
    %2775 = vmatpush1.bf16.msra.mxu0 0
    %2776 = vmatprep.subr.bf16.mxu0 0
    %2777 = vmatpush1.bf16.msra.mxu0 0
    %2778 = vmatprep.subr.bf16.mxu0 0
    %2779 = vmatpush1.bf16.msra.mxu0 0
    %2780 = vmatprep.subr.bf16.mxu0 0
    %2781 = vmatpush1.bf16.msra.mxu0 0
    %2782 = vmatprep.subr.bf16.mxu0 0
    %2783 = vmatpush1.bf16.msra.mxu0 0
    %2784 = vmatprep.mubr.bf16.mxu0 0
    %2785 = vmatmul.mubr.bf16.gmra.mrb[0].mxu0 %v2750
    %v2786 = vpop.f32.mrb[0].mxu0
    %v2787 = vadd.f32 0.0, %v2786
    %v2788 = vpop.f32.mrb[0].mxu0
    %v2789 = vpop.f32.mrb[0].mxu0
    %v2790 = vadd.f32 0.0, %v2789
    %v2791 = vpop.f32.mrb[0].mxu0
    %2792 = vdwg.mxu0
    %v2793 = vadd.f32 %v2359, %v2787
    %v2794 = vadd.f32 %v2360, %v2790
    %2795 = vmatprep.subr.bf16.mxu0 %v679
    %2796 = vmatpush1.bf16.msra.mxu0 %v678
    %2797 = vmatprep.subr.bf16.mxu0 %v683
    %2798 = vmatpush1.bf16.msra.mxu0 %v682
    %2799 = vmatprep.subr.bf16.mxu0 %v687
    %2800 = vmatpush1.bf16.msra.mxu0 %v686
    %2801 = vmatprep.subr.bf16.mxu0 %v691
    %2802 = vmatpush1.bf16.msra.mxu0 %v690
    %2803 = vmatprep.subr.bf16.mxu0 %v695
    %2804 = vmatpush1.bf16.msra.mxu0 %v694
    %2805 = vmatprep.subr.bf16.mxu0 %v699
    %2806 = vmatpush1.bf16.msra.mxu0 %v698
    %2807 = vmatprep.subr.bf16.mxu0 %v703
    %2808 = vmatpush1.bf16.msra.mxu0 %v702
    %2809 = vmatprep.subr.bf16.mxu0 %v707
    %2810 = vmatpush1.bf16.msra.mxu0 %v706
    %2811 = vmatprep.subr.bf16.mxu0 0
    %2812 = vmatpush1.bf16.msra.mxu0 0
    %2813 = vmatprep.subr.bf16.mxu0 0
    %2814 = vmatpush1.bf16.msra.mxu0 0
    %2815 = vmatprep.subr.bf16.mxu0 0
    %2816 = vmatpush1.bf16.msra.mxu0 0
    %2817 = vmatprep.subr.bf16.mxu0 0
    %2818 = vmatpush1.bf16.msra.mxu0 0
    %2819 = vmatprep.subr.bf16.mxu0 0
    %2820 = vmatpush1.bf16.msra.mxu0 0
    %2821 = vmatprep.subr.bf16.mxu0 0
    %2822 = vmatpush1.bf16.msra.mxu0 0
    %2823 = vmatprep.subr.bf16.mxu0 0
    %2824 = vmatpush1.bf16.msra.mxu0 0
    %2825 = vmatprep.subr.bf16.mxu0 0
    %2826 = vmatpush1.bf16.msra.mxu0 0
    %2827 = vmatprep.mubr.bf16.mxu0 0
    %2828 = vmatmul.mubr.bf16.gmra.mrb[0].mxu0 %v2503
    %v2829 = vpop.f32.mrb[0].mxu0
    %v2830 = vadd.f32 0.0, %v2829
    %v2831 = vpop.f32.mrb[0].mxu0
    %v2832 = vadd.f32 0.0, %v2831
    %v2833 = vpop.f32.mrb[0].mxu0
    %v2834 = vadd.f32 0.0, %v2833
    %v2835 = vpop.f32.mrb[0].mxu0
    %v2836 = vadd.f32 0.0, %v2835
    %2837 = vdwg.mxu0
    %2838 = vmatprep.subr.bf16.mxu0 %v681
    %2839 = vmatpush1.bf16.msra.mxu0 %v680
    %2840 = vmatprep.subr.bf16.mxu0 %v685
    %2841 = vmatpush1.bf16.msra.mxu0 %v684
    %2842 = vmatprep.subr.bf16.mxu0 %v689
    %2843 = vmatpush1.bf16.msra.mxu0 %v688
    %2844 = vmatprep.subr.bf16.mxu0 %v693
    %2845 = vmatpush1.bf16.msra.mxu0 %v692
    %2846 = vmatprep.subr.bf16.mxu0 %v697
    %2847 = vmatpush1.bf16.msra.mxu0 %v696
    %2848 = vmatprep.subr.bf16.mxu0 %v701
    %2849 = vmatpush1.bf16.msra.mxu0 %v700
    %2850 = vmatprep.subr.bf16.mxu0 %v705
    %2851 = vmatpush1.bf16.msra.mxu0 %v704
    %2852 = vmatprep.subr.bf16.mxu0 %v709
    %2853 = vmatpush1.bf16.msra.mxu0 %v708
    %2854 = vmatprep.subr.bf16.mxu0 0
    %2855 = vmatpush1.bf16.msra.mxu0 0
    %2856 = vmatprep.subr.bf16.mxu0 0
    %2857 = vmatpush1.bf16.msra.mxu0 0
    %2858 = vmatprep.subr.bf16.mxu0 0
    %2859 = vmatpush1.bf16.msra.mxu0 0
    %2860 = vmatprep.subr.bf16.mxu0 0
    %2861 = vmatpush1.bf16.msra.mxu0 0
    %2862 = vmatprep.subr.bf16.mxu0 0
    %2863 = vmatpush1.bf16.msra.mxu0 0
    %2864 = vmatprep.subr.bf16.mxu0 0
    %2865 = vmatpush1.bf16.msra.mxu0 0
    %2866 = vmatprep.subr.bf16.mxu0 0
    %2867 = vmatpush1.bf16.msra.mxu0 0
    %2868 = vmatprep.subr.bf16.mxu0 0
    %2869 = vmatpush1.bf16.msra.mxu0 0
    %2870 = vmatprep.mubr.bf16.mxu0 0
    %2871 = vmatmul.mubr.bf16.gmra.mrb[0].mxu0 %v2503
    %v2872 = vpop.f32.mrb[0].mxu0
    %v2873 = vadd.f32 0.0, %v2872
    %v2874 = vpop.f32.mrb[0].mxu0
    %v2875 = vadd.f32 0.0, %v2874
    %v2876 = vpop.f32.mrb[0].mxu0
    %v2877 = vadd.f32 0.0, %v2876
    %v2878 = vpop.f32.mrb[0].mxu0
    %v2879 = vadd.f32 0.0, %v2878
    %2880 = vdwg.mxu0
    %v2881 = vadd.f32 %v271, %v2830
    %v2882 = vadd.f32 %v273, %v2832
    %v2883 = vadd.f32 %v384, %v2873
    %v2884 = vadd.f32 %v386, %v2875
    %v2885 = vadd.f32 %v275, %v2834
    %v2886 = vadd.f32 %v277, %v2836
    %v2887 = vadd.f32 %v388, %v2877
    %v2888 = vadd.f32 %v390, %v2879
    %v2889 = vxor.u32 %v2881, 2147483648
    %v2890 = vxor.u32 %v2885, 2147483648
    %v2891 = vmul.f32 %v2889, 1.442695
    %v2892 = vpow.pop %v2891
    %v2893 = vmul.f32 %v2890, 1.442695
    %v2894 = vpow.pop %v2893
    %v2895 = vadd.f32 %v2892, 1.0
    %v2896 = vadd.f32 %v2894, 1.0
    %v2897 = vrcp.pop %v2895
    %v2898 = vmul.f32 1.0, %v2897
    %v2899 = vrcp.pop %v2896
    %v2900 = vmul.f32 1.0, %v2899
    %v2901 = vxor.u32 %v2882, 2147483648
    %v2902 = vxor.u32 %v2886, 2147483648
    %v2903 = vmul.f32 %v2901, 1.442695
    %v2904 = vpow.pop %v2903
    %v2905 = vmul.f32 %v2902, 1.442695
    %v2906 = vpow.pop %v2905
    %v2907 = vadd.f32 %v2904, 1.0
    %v2908 = vadd.f32 %v2906, 1.0
    %v2909 = vrcp.pop %v2907
    %v2910 = vmul.f32 1.0, %v2909
    %v2911 = vrcp.pop %v2908
    %v2912 = vmul.f32 1.0, %v2911
    %v2913 = vtanh.pop %v2883
    %v2914 = vtanh.pop %v2887
    %v2915 = vxor.u32 %v2884, 2147483648
    %v2916 = vxor.u32 %v2888, 2147483648
    %v2917 = vmul.f32 %v2915, 1.442695
    %v2918 = vpow.pop %v2917
    %v2919 = vmul.f32 %v2916, 1.442695
    %v2920 = vpow.pop %v2919
    %v2921 = vadd.f32 %v2918, 1.0
    %v2922 = vadd.f32 %v2920, 1.0
    %v2923 = vrcp.pop %v2921
    %v2924 = vmul.f32 1.0, %v2923
    %v2925 = vrcp.pop %v2922
    %v2926 = vmul.f32 1.0, %v2925
    %v2927 = vmul.f32 %v2910, %v2497
    %v2928 = vmul.f32 %v2912, %v2498
    %v2929 = vmul.f32 %v2898, %v2913
    %v2930 = vmul.f32 %v2900, %v2914
    %v2931 = vadd.f32 %v2927, %v2929
    %v2932 = vadd.f32 %v2928, %v2930
    %v2933 = vtanh.pop %v2931
    %v2934 = vtanh.pop %v2932
    %v2935 = vmul.f32 %v2924, %v2933
    %v2936 = vmul.f32 %v2926, %v2934
    %v2937 = vpack.c.bf16 %v2936, %v2935
    %2938 = vmatprep.subr.bf16.mxu0 %v982
    %2939 = vmatpush1.bf16.msra.mxu0 %v981
    %2940 = vmatprep.subr.bf16.mxu0 %v986
    %2941 = vmatpush1.bf16.msra.mxu0 %v985
    %2942 = vmatprep.subr.bf16.mxu0 %v990
    %2943 = vmatpush1.bf16.msra.mxu0 %v989
    %2944 = vmatprep.subr.bf16.mxu0 %v994
    %2945 = vmatpush1.bf16.msra.mxu0 %v993
    %2946 = vmatprep.subr.bf16.mxu0 %v998
    %2947 = vmatpush1.bf16.msra.mxu0 %v997
    %2948 = vmatprep.subr.bf16.mxu0 %v1002
    %2949 = vmatpush1.bf16.msra.mxu0 %v1001
    %2950 = vmatprep.subr.bf16.mxu0 %v1006
    %2951 = vmatpush1.bf16.msra.mxu0 %v1005
    %2952 = vmatprep.subr.bf16.mxu0 %v1010
    %2953 = vmatpush1.bf16.msra.mxu0 %v1009
    %2954 = vmatprep.subr.bf16.mxu0 0
    %2955 = vmatpush1.bf16.msra.mxu0 0
    %2956 = vmatprep.subr.bf16.mxu0 0
    %2957 = vmatpush1.bf16.msra.mxu0 0
    %2958 = vmatprep.subr.bf16.mxu0 0
    %2959 = vmatpush1.bf16.msra.mxu0 0
    %2960 = vmatprep.subr.bf16.mxu0 0
    %2961 = vmatpush1.bf16.msra.mxu0 0
    %2962 = vmatprep.subr.bf16.mxu0 0
    %2963 = vmatpush1.bf16.msra.mxu0 0
    %2964 = vmatprep.subr.bf16.mxu0 0
    %2965 = vmatpush1.bf16.msra.mxu0 0
    %2966 = vmatprep.subr.bf16.mxu0 0
    %2967 = vmatpush1.bf16.msra.mxu0 0
    %2968 = vmatprep.subr.bf16.mxu0 0
    %2969 = vmatpush1.bf16.msra.mxu0 0
    %2970 = vmatprep.mubr.bf16.mxu0 0
    %2971 = vmatmul.mubr.bf16.gmra.mrb[0].mxu0 %v2724
    %v2972 = vpop.f32.mrb[0].mxu0
    %v2973 = vadd.f32 0.0, %v2972
    %v2974 = vpop.f32.mrb[0].mxu0
    %v2975 = vadd.f32 0.0, %v2974
    %v2976 = vpop.f32.mrb[0].mxu0
    %v2977 = vadd.f32 0.0, %v2976
    %v2978 = vpop.f32.mrb[0].mxu0
    %v2979 = vadd.f32 0.0, %v2978
    %2980 = vdwg.mxu0
    %2981 = vmatprep.subr.bf16.mxu0 %v984
    %2982 = vmatpush1.bf16.msra.mxu0 %v983
    %2983 = vmatprep.subr.bf16.mxu0 %v988
    %2984 = vmatpush1.bf16.msra.mxu0 %v987
    %2985 = vmatprep.subr.bf16.mxu0 %v992
    %2986 = vmatpush1.bf16.msra.mxu0 %v991
    %2987 = vmatprep.subr.bf16.mxu0 %v996
    %2988 = vmatpush1.bf16.msra.mxu0 %v995
    %2989 = vmatprep.subr.bf16.mxu0 %v1000
    %2990 = vmatpush1.bf16.msra.mxu0 %v999
    %2991 = vmatprep.subr.bf16.mxu0 %v1004
    %2992 = vmatpush1.bf16.msra.mxu0 %v1003
    %2993 = vmatprep.subr.bf16.mxu0 %v1008
    %2994 = vmatpush1.bf16.msra.mxu0 %v1007
    %2995 = vmatprep.subr.bf16.mxu0 %v1012
    %2996 = vmatpush1.bf16.msra.mxu0 %v1011
    %2997 = vmatprep.subr.bf16.mxu0 0
    %2998 = vmatpush1.bf16.msra.mxu0 0
    %2999 = vmatprep.subr.bf16.mxu0 0
    %3000 = vmatpush1.bf16.msra.mxu0 0
    %3001 = vmatprep.subr.bf16.mxu0 0
    %3002 = vmatpush1.bf16.msra.mxu0 0
    %3003 = vmatprep.subr.bf16.mxu0 0
    %3004 = vmatpush1.bf16.msra.mxu0 0
    %3005 = vmatprep.subr.bf16.mxu0 0
    %3006 = vmatpush1.bf16.msra.mxu0 0
    %3007 = vmatprep.subr.bf16.mxu0 0
    %3008 = vmatpush1.bf16.msra.mxu0 0
    %3009 = vmatprep.subr.bf16.mxu0 0
    %3010 = vmatpush1.bf16.msra.mxu0 0
    %3011 = vmatprep.subr.bf16.mxu0 0
    %3012 = vmatpush1.bf16.msra.mxu0 0
    %3013 = vmatprep.mubr.bf16.mxu0 0
    %3014 = vmatmul.mubr.bf16.gmra.mrb[0].mxu0 %v2724
    %v3015 = vpop.f32.mrb[0].mxu0
    %v3016 = vadd.f32 0.0, %v3015
    %v3017 = vpop.f32.mrb[0].mxu0
    %v3018 = vadd.f32 0.0, %v3017
    %v3019 = vpop.f32.mrb[0].mxu0
    %v3020 = vadd.f32 0.0, %v3019
    %v3021 = vpop.f32.mrb[0].mxu0
    %v3022 = vadd.f32 0.0, %v3021
    %3023 = vdwg.mxu0
    %3024 = vmatprep.subr.bf16.mxu0 %v1228
    %3025 = vmatpush1.bf16.msra.mxu0 %v1227
    %3026 = vmatprep.subr.bf16.mxu0 %v1232
    %3027 = vmatpush1.bf16.msra.mxu0 %v1231
    %3028 = vmatprep.subr.bf16.mxu0 %v1236
    %3029 = vmatpush1.bf16.msra.mxu0 %v1235
    %3030 = vmatprep.subr.bf16.mxu0 %v1240
    %3031 = vmatpush1.bf16.msra.mxu0 %v1239
    %3032 = vmatprep.subr.bf16.mxu0 %v1244
    %3033 = vmatpush1.bf16.msra.mxu0 %v1243
    %3034 = vmatprep.subr.bf16.mxu0 %v1248
    %3035 = vmatpush1.bf16.msra.mxu0 %v1247
    %3036 = vmatprep.subr.bf16.mxu0 %v1252
    %3037 = vmatpush1.bf16.msra.mxu0 %v1251
    %3038 = vmatprep.subr.bf16.mxu0 %v1256
    %3039 = vmatpush1.bf16.msra.mxu0 %v1255
    %3040 = vmatprep.subr.bf16.mxu0 0
    %3041 = vmatpush1.bf16.msra.mxu0 0
    %3042 = vmatprep.subr.bf16.mxu0 0
    %3043 = vmatpush1.bf16.msra.mxu0 0
    %3044 = vmatprep.subr.bf16.mxu0 0
    %3045 = vmatpush1.bf16.msra.mxu0 0
    %3046 = vmatprep.subr.bf16.mxu0 0
    %3047 = vmatpush1.bf16.msra.mxu0 0
    %3048 = vmatprep.subr.bf16.mxu0 0
    %3049 = vmatpush1.bf16.msra.mxu0 0
    %3050 = vmatprep.subr.bf16.mxu0 0
    %3051 = vmatpush1.bf16.msra.mxu0 0
    %3052 = vmatprep.subr.bf16.mxu0 0
    %3053 = vmatpush1.bf16.msra.mxu0 0
    %3054 = vmatprep.subr.bf16.mxu0 0
    %3055 = vmatpush1.bf16.msra.mxu0 0
    %3056 = vmatprep.mubr.bf16.mxu0 0
    %3057 = vmatmul.mubr.bf16.gmra.mrb[0].mxu0 %v2937
    %v3058 = vpop.f32.mrb[0].mxu0
    %v3059 = vadd.f32 %v2973, %v3058
    %v3060 = vpop.f32.mrb[0].mxu0
    %v3061 = vadd.f32 %v2975, %v3060
    %v3062 = vpop.f32.mrb[0].mxu0
    %v3063 = vadd.f32 %v2977, %v3062
    %v3064 = vpop.f32.mrb[0].mxu0
    %v3065 = vadd.f32 %v2979, %v3064
    %3066 = vdwg.mxu0
    %3067 = vmatprep.subr.bf16.mxu0 %v1230
    %3068 = vmatpush1.bf16.msra.mxu0 %v1229
    %3069 = vmatprep.subr.bf16.mxu0 %v1234
    %3070 = vmatpush1.bf16.msra.mxu0 %v1233
    %3071 = vmatprep.subr.bf16.mxu0 %v1238
    %3072 = vmatpush1.bf16.msra.mxu0 %v1237
    %3073 = vmatprep.subr.bf16.mxu0 %v1242
    %3074 = vmatpush1.bf16.msra.mxu0 %v1241
    %3075 = vmatprep.subr.bf16.mxu0 %v1246
    %3076 = vmatpush1.bf16.msra.mxu0 %v1245
    %3077 = vmatprep.subr.bf16.mxu0 %v1250
    %3078 = vmatpush1.bf16.msra.mxu0 %v1249
    %3079 = vmatprep.subr.bf16.mxu0 %v1254
    %3080 = vmatpush1.bf16.msra.mxu0 %v1253
    %3081 = vmatprep.subr.bf16.mxu0 %v1258
    %3082 = vmatpush1.bf16.msra.mxu0 %v1257
    %3083 = vmatprep.subr.bf16.mxu0 0
    %3084 = vmatpush1.bf16.msra.mxu0 0
    %3085 = vmatprep.subr.bf16.mxu0 0
    %3086 = vmatpush1.bf16.msra.mxu0 0
    %3087 = vmatprep.subr.bf16.mxu0 0
    %3088 = vmatpush1.bf16.msra.mxu0 0
    %3089 = vmatprep.subr.bf16.mxu0 0
    %3090 = vmatpush1.bf16.msra.mxu0 0
    %3091 = vmatprep.subr.bf16.mxu0 0
    %3092 = vmatpush1.bf16.msra.mxu0 0
    %3093 = vmatprep.subr.bf16.mxu0 0
    %3094 = vmatpush1.bf16.msra.mxu0 0
    %3095 = vmatprep.subr.bf16.mxu0 0
    %3096 = vmatpush1.bf16.msra.mxu0 0
    %3097 = vmatprep.subr.bf16.mxu0 0
    %3098 = vmatpush1.bf16.msra.mxu0 0
    %3099 = vmatprep.mubr.bf16.mxu0 0
    %3100 = vmatmul.mubr.bf16.gmra.mrb[0].mxu0 %v2937
    %v3101 = vpop.f32.mrb[0].mxu0
    %v3102 = vadd.f32 %v3016, %v3101
    %v3103 = vpop.f32.mrb[0].mxu0
    %v3104 = vadd.f32 %v3018, %v3103
    %v3105 = vpop.f32.mrb[0].mxu0
    %v3106 = vadd.f32 %v3020, %v3105
    %v3107 = vpop.f32.mrb[0].mxu0
    %v3108 = vadd.f32 %v3022, %v3107
    %3109 = vdwg.mxu0
    %v3110 = vxor.u32 %v3059, 2147483648
    %v3111 = vxor.u32 %v3063, 2147483648
    %v3112 = vmul.f32 %v3110, 1.442695
    %v3113 = vpow.pop %v3112
    %v3114 = vmul.f32 %v3111, 1.442695
    %v3115 = vpow.pop %v3114
    %v3116 = vadd.f32 %v3113, 1.0
    %v3117 = vadd.f32 %v3115, 1.0
    %v3118 = vrcp.pop %v3116
    %v3119 = vmul.f32 1.0, %v3118
    %v3120 = vrcp.pop %v3117
    %v3121 = vmul.f32 1.0, %v3120
    %v3122 = vxor.u32 %v3061, 2147483648
    %v3123 = vxor.u32 %v3065, 2147483648
    %v3124 = vmul.f32 %v3122, 1.442695
    %v3125 = vpow.pop %v3124
    %v3126 = vmul.f32 %v3123, 1.442695
    %v3127 = vpow.pop %v3126
    %v3128 = vadd.f32 %v3125, 1.0
    %v3129 = vadd.f32 %v3127, 1.0
    %v3130 = vrcp.pop %v3128
    %v3131 = vmul.f32 1.0, %v3130
    %v3132 = vrcp.pop %v3129
    %v3133 = vmul.f32 1.0, %v3132
    %v3134 = vtanh.pop %v3102
    %v3135 = vtanh.pop %v3106
    %v3136 = vxor.u32 %v3104, 2147483648
    %v3137 = vxor.u32 %v3108, 2147483648
    %v3138 = vmul.f32 %v3136, 1.442695
    %v3139 = vpow.pop %v3138
    %v3140 = vmul.f32 %v3137, 1.442695
    %v3141 = vpow.pop %v3140
    %v3142 = vadd.f32 %v3139, 1.0
    %v3143 = vadd.f32 %v3141, 1.0
    %v3144 = vrcp.pop %v3142
    %v3145 = vmul.f32 1.0, %v3144
    %v3146 = vrcp.pop %v3143
    %v3147 = vmul.f32 1.0, %v3146
    %v3148 = vmul.f32 %v3131, %v2718
    %v3149 = vmul.f32 %v3133, %v2719
    %v3150 = vmul.f32 %v3119, %v3134
    %v3151 = vmul.f32 %v3121, %v3135
    %v3152 = vadd.f32 %v3148, %v3150
    %v3153 = vadd.f32 %v3149, %v3151
    %v3154 = vtanh.pop %v3152
    %v3155 = vtanh.pop %v3153
    %v3156 = vmul.f32 %v3145, %v3154
    %v3157 = vmul.f32 %v3147, %v3155
    %v3158 = vpack.c.bf16 %v3157, %v3156
    %v3167 = vunpack.c.l.b16 %v550
    %v3168 = vunpack.c.l.b16 %v551
    %v3169 = vunpack.c.l.b16 %v552
    %v3170 = vunpack.c.l.b16 %v553
    %v3171 = vunpack.c.l.b16 %v554
    %v3172 = vunpack.c.l.b16 %v555
    %v3173 = vunpack.c.l.b16 %v556
    %v3174 = vunpack.c.l.b16 %v557
    %v3175 = vpack.c.b16 %v3168, %v3167
    %v3176 = vpack.c.b16 %v3170, %v3169
    %v3177 = vpack.c.b16 %v3172, %v3171
    %v3178 = vpack.c.b16 %v3174, %v3173
    %v3184 = vsel %vm1814, %v3158, 0
    %3186 = vmatprep.subr.bf16.mxu0 0
    %3187 = vmatpush1.bf16.msra.mxu0 %v3175
    %3188 = vmatprep.subr.bf16.mxu0 0
    %3189 = vmatpush1.bf16.msra.mxu0 %v3176
    %3190 = vmatprep.subr.bf16.mxu0 0
    %3191 = vmatpush1.bf16.msra.mxu0 %v3177
    %3192 = vmatprep.subr.bf16.mxu0 0
    %3193 = vmatpush1.bf16.msra.mxu0 %v3178
    %3194 = vmatprep.subr.bf16.mxu0 0
    %3195 = vmatpush1.bf16.msra.mxu0 0
    %3196 = vmatprep.subr.bf16.mxu0 0
    %3197 = vmatpush1.bf16.msra.mxu0 0
    %3198 = vmatprep.subr.bf16.mxu0 0
    %3199 = vmatpush1.bf16.msra.mxu0 0
    %3200 = vmatprep.subr.bf16.mxu0 0
    %3201 = vmatpush1.bf16.msra.mxu0 0
    %3202 = vmatprep.subr.bf16.mxu0 0
    %3203 = vmatpush1.bf16.msra.mxu0 0
    %3204 = vmatprep.subr.bf16.mxu0 0
    %3205 = vmatpush1.bf16.msra.mxu0 0
    %3206 = vmatprep.subr.bf16.mxu0 0
    %3207 = vmatpush1.bf16.msra.mxu0 0
    %3208 = vmatprep.subr.bf16.mxu0 0
    %3209 = vmatpush1.bf16.msra.mxu0 0
    %3210 = vmatprep.subr.bf16.mxu0 0
    %3211 = vmatpush1.bf16.msra.mxu0 0
    %3212 = vmatprep.subr.bf16.mxu0 0
    %3213 = vmatpush1.bf16.msra.mxu0 0
    %3214 = vmatprep.subr.bf16.mxu0 0
    %3215 = vmatpush1.bf16.msra.mxu0 0
    %3216 = vmatprep.subr.bf16.mxu0 0
    %3217 = vmatpush1.bf16.msra.mxu0 0
    %3218 = vmatprep.mubr.bf16.mxu0 0
    %3219 = vmatmul.mubr.bf16.gmra.mrb[0].mxu0 %v3184
    %v3220 = vpop.f32.mrb[0].mxu0
    %v3221 = vadd.f32 0.0, %v3220
    %v3222 = vpop.f32.mrb[0].mxu0
    %v3223 = vpop.f32.mrb[0].mxu0
    %v3224 = vadd.f32 0.0, %v3223
    %v3225 = vpop.f32.mrb[0].mxu0
    %3226 = vdwg.mxu0
    %v3227 = vadd.f32 %v2793, %v3221
    %v3228 = vadd.f32 %v2794, %v3224
    %3229 = vmatprep.subr.bf16.mxu0 %v679
    %3230 = vmatpush1.bf16.msra.mxu0 %v678
    %3231 = vmatprep.subr.bf16.mxu0 %v683
    %3232 = vmatpush1.bf16.msra.mxu0 %v682
    %3233 = vmatprep.subr.bf16.mxu0 %v687
    %3234 = vmatpush1.bf16.msra.mxu0 %v686
    %3235 = vmatprep.subr.bf16.mxu0 %v691
    %3236 = vmatpush1.bf16.msra.mxu0 %v690
    %3237 = vmatprep.subr.bf16.mxu0 %v695
    %3238 = vmatpush1.bf16.msra.mxu0 %v694
    %3239 = vmatprep.subr.bf16.mxu0 %v699
    %3240 = vmatpush1.bf16.msra.mxu0 %v698
    %3241 = vmatprep.subr.bf16.mxu0 %v703
    %3242 = vmatpush1.bf16.msra.mxu0 %v702
    %3243 = vmatprep.subr.bf16.mxu0 %v707
    %3244 = vmatpush1.bf16.msra.mxu0 %v706
    %3245 = vmatprep.subr.bf16.mxu0 0
    %3246 = vmatpush1.bf16.msra.mxu0 0
    %3247 = vmatprep.subr.bf16.mxu0 0
    %3248 = vmatpush1.bf16.msra.mxu0 0
    %3249 = vmatprep.subr.bf16.mxu0 0
    %3250 = vmatpush1.bf16.msra.mxu0 0
    %3251 = vmatprep.subr.bf16.mxu0 0
    %3252 = vmatpush1.bf16.msra.mxu0 0
    %3253 = vmatprep.subr.bf16.mxu0 0
    %3254 = vmatpush1.bf16.msra.mxu0 0
    %3255 = vmatprep.subr.bf16.mxu0 0
    %3256 = vmatpush1.bf16.msra.mxu0 0
    %3257 = vmatprep.subr.bf16.mxu0 0
    %3258 = vmatpush1.bf16.msra.mxu0 0
    %3259 = vmatprep.subr.bf16.mxu0 0
    %3260 = vmatpush1.bf16.msra.mxu0 0
    %3261 = vmatprep.mubr.bf16.mxu0 0
    %3262 = vmatmul.mubr.bf16.gmra.mrb[0].mxu0 %v2937
    %v3263 = vpop.f32.mrb[0].mxu0
    %v3264 = vadd.f32 0.0, %v3263
    %v3265 = vpop.f32.mrb[0].mxu0
    %v3266 = vadd.f32 0.0, %v3265
    %v3267 = vpop.f32.mrb[0].mxu0
    %v3268 = vadd.f32 0.0, %v3267
    %v3269 = vpop.f32.mrb[0].mxu0
    %v3270 = vadd.f32 0.0, %v3269
    %3271 = vdwg.mxu0
    %3272 = vmatprep.subr.bf16.mxu0 %v681
    %3273 = vmatpush1.bf16.msra.mxu0 %v680
    %3274 = vmatprep.subr.bf16.mxu0 %v685
    %3275 = vmatpush1.bf16.msra.mxu0 %v684
    %3276 = vmatprep.subr.bf16.mxu0 %v689
    %3277 = vmatpush1.bf16.msra.mxu0 %v688
    %3278 = vmatprep.subr.bf16.mxu0 %v693
    %3279 = vmatpush1.bf16.msra.mxu0 %v692
    %3280 = vmatprep.subr.bf16.mxu0 %v697
    %3281 = vmatpush1.bf16.msra.mxu0 %v696
    %3282 = vmatprep.subr.bf16.mxu0 %v701
    %3283 = vmatpush1.bf16.msra.mxu0 %v700
    %3284 = vmatprep.subr.bf16.mxu0 %v705
    %3285 = vmatpush1.bf16.msra.mxu0 %v704
    %3286 = vmatprep.subr.bf16.mxu0 %v709
    %3287 = vmatpush1.bf16.msra.mxu0 %v708
    %3288 = vmatprep.subr.bf16.mxu0 0
    %3289 = vmatpush1.bf16.msra.mxu0 0
    %3290 = vmatprep.subr.bf16.mxu0 0
    %3291 = vmatpush1.bf16.msra.mxu0 0
    %3292 = vmatprep.subr.bf16.mxu0 0
    %3293 = vmatpush1.bf16.msra.mxu0 0
    %3294 = vmatprep.subr.bf16.mxu0 0
    %3295 = vmatpush1.bf16.msra.mxu0 0
    %3296 = vmatprep.subr.bf16.mxu0 0
    %3297 = vmatpush1.bf16.msra.mxu0 0
    %3298 = vmatprep.subr.bf16.mxu0 0
    %3299 = vmatpush1.bf16.msra.mxu0 0
    %3300 = vmatprep.subr.bf16.mxu0 0
    %3301 = vmatpush1.bf16.msra.mxu0 0
    %3302 = vmatprep.subr.bf16.mxu0 0
    %3303 = vmatpush1.bf16.msra.mxu0 0
    %3304 = vmatprep.mubr.bf16.mxu0 0
    %3305 = vmatmul.mubr.bf16.gmra.mrb[0].mxu0 %v2937
    %v3306 = vpop.f32.mrb[0].mxu0
    %v3307 = vadd.f32 0.0, %v3306
    %v3308 = vpop.f32.mrb[0].mxu0
    %v3309 = vadd.f32 0.0, %v3308
    %v3310 = vpop.f32.mrb[0].mxu0
    %v3311 = vadd.f32 0.0, %v3310
    %v3312 = vpop.f32.mrb[0].mxu0
    %v3313 = vadd.f32 0.0, %v3312
    %3314 = vdwg.mxu0
    %v3315 = vadd.f32 %v281, %v3264
    %v3316 = vadd.f32 %v283, %v3266
    %v3317 = vadd.f32 %v394, %v3307
    %v3318 = vadd.f32 %v396, %v3309
    %v3319 = vadd.f32 %v285, %v3268
    %v3320 = vadd.f32 %v287, %v3270
    %v3321 = vadd.f32 %v398, %v3311
    %v3322 = vadd.f32 %v400, %v3313
    %v3323 = vxor.u32 %v3315, 2147483648
    %v3324 = vxor.u32 %v3319, 2147483648
    %v3325 = vmul.f32 %v3323, 1.442695
    %v3326 = vpow.pop %v3325
    %v3327 = vmul.f32 %v3324, 1.442695
    %v3328 = vpow.pop %v3327
    %v3329 = vadd.f32 %v3326, 1.0
    %v3330 = vadd.f32 %v3328, 1.0
    %v3331 = vrcp.pop %v3329
    %v3332 = vmul.f32 1.0, %v3331
    %v3333 = vrcp.pop %v3330
    %v3334 = vmul.f32 1.0, %v3333
    %v3335 = vxor.u32 %v3316, 2147483648
    %v3336 = vxor.u32 %v3320, 2147483648
    %v3337 = vmul.f32 %v3335, 1.442695
    %v3338 = vpow.pop %v3337
    %v3339 = vmul.f32 %v3336, 1.442695
    %v3340 = vpow.pop %v3339
    %v3341 = vadd.f32 %v3338, 1.0
    %v3342 = vadd.f32 %v3340, 1.0
    %v3343 = vrcp.pop %v3341
    %v3344 = vmul.f32 1.0, %v3343
    %v3345 = vrcp.pop %v3342
    %v3346 = vmul.f32 1.0, %v3345
    %v3347 = vtanh.pop %v3317
    %v3348 = vtanh.pop %v3321
    %v3349 = vxor.u32 %v3318, 2147483648
    %v3350 = vxor.u32 %v3322, 2147483648
    %v3351 = vmul.f32 %v3349, 1.442695
    %v3352 = vpow.pop %v3351
    %v3353 = vmul.f32 %v3350, 1.442695
    %v3354 = vpow.pop %v3353
    %v3355 = vadd.f32 %v3352, 1.0
    %v3356 = vadd.f32 %v3354, 1.0
    %v3357 = vrcp.pop %v3355
    %v3358 = vmul.f32 1.0, %v3357
    %v3359 = vrcp.pop %v3356
    %v3360 = vmul.f32 1.0, %v3359
    %v3361 = vmul.f32 %v3344, %v2931
    %v3362 = vmul.f32 %v3346, %v2932
    %v3363 = vmul.f32 %v3332, %v3347
    %v3364 = vmul.f32 %v3334, %v3348
    %v3365 = vadd.f32 %v3361, %v3363
    %v3366 = vadd.f32 %v3362, %v3364
    %v3367 = vtanh.pop %v3365
    %v3368 = vtanh.pop %v3366
    %v3369 = vmul.f32 %v3358, %v3367
    %v3370 = vmul.f32 %v3360, %v3368
    %v3371 = vpack.c.bf16 %v3370, %v3369
    %3372 = vmatprep.subr.bf16.mxu0 %v982
    %3373 = vmatpush1.bf16.msra.mxu0 %v981
    %3374 = vmatprep.subr.bf16.mxu0 %v986
    %3375 = vmatpush1.bf16.msra.mxu0 %v985
    %3376 = vmatprep.subr.bf16.mxu0 %v990
    %3377 = vmatpush1.bf16.msra.mxu0 %v989
    %3378 = vmatprep.subr.bf16.mxu0 %v994
    %3379 = vmatpush1.bf16.msra.mxu0 %v993
    %3380 = vmatprep.subr.bf16.mxu0 %v998
    %3381 = vmatpush1.bf16.msra.mxu0 %v997
    %3382 = vmatprep.subr.bf16.mxu0 %v1002
    %3383 = vmatpush1.bf16.msra.mxu0 %v1001
    %3384 = vmatprep.subr.bf16.mxu0 %v1006
    %3385 = vmatpush1.bf16.msra.mxu0 %v1005
    %3386 = vmatprep.subr.bf16.mxu0 %v1010
    %3387 = vmatpush1.bf16.msra.mxu0 %v1009
    %3388 = vmatprep.subr.bf16.mxu0 0
    %3389 = vmatpush1.bf16.msra.mxu0 0
    %3390 = vmatprep.subr.bf16.mxu0 0
    %3391 = vmatpush1.bf16.msra.mxu0 0
    %3392 = vmatprep.subr.bf16.mxu0 0
    %3393 = vmatpush1.bf16.msra.mxu0 0
    %3394 = vmatprep.subr.bf16.mxu0 0
    %3395 = vmatpush1.bf16.msra.mxu0 0
    %3396 = vmatprep.subr.bf16.mxu0 0
    %3397 = vmatpush1.bf16.msra.mxu0 0
    %3398 = vmatprep.subr.bf16.mxu0 0
    %3399 = vmatpush1.bf16.msra.mxu0 0
    %3400 = vmatprep.subr.bf16.mxu0 0
    %3401 = vmatpush1.bf16.msra.mxu0 0
    %3402 = vmatprep.subr.bf16.mxu0 0
    %3403 = vmatpush1.bf16.msra.mxu0 0
    %3404 = vmatprep.mubr.bf16.mxu0 0
    %3405 = vmatmul.mubr.bf16.gmra.mrb[0].mxu0 %v3158
    %v3406 = vpop.f32.mrb[0].mxu0
    %v3407 = vadd.f32 0.0, %v3406
    %v3408 = vpop.f32.mrb[0].mxu0
    %v3409 = vadd.f32 0.0, %v3408
    %v3410 = vpop.f32.mrb[0].mxu0
    %v3411 = vadd.f32 0.0, %v3410
    %v3412 = vpop.f32.mrb[0].mxu0
    %v3413 = vadd.f32 0.0, %v3412
    %3414 = vdwg.mxu0
    %3415 = vmatprep.subr.bf16.mxu0 %v984
    %3416 = vmatpush1.bf16.msra.mxu0 %v983
    %3417 = vmatprep.subr.bf16.mxu0 %v988
    %3418 = vmatpush1.bf16.msra.mxu0 %v987
    %3419 = vmatprep.subr.bf16.mxu0 %v992
    %3420 = vmatpush1.bf16.msra.mxu0 %v991
    %3421 = vmatprep.subr.bf16.mxu0 %v996
    %3422 = vmatpush1.bf16.msra.mxu0 %v995
    %3423 = vmatprep.subr.bf16.mxu0 %v1000
    %3424 = vmatpush1.bf16.msra.mxu0 %v999
    %3425 = vmatprep.subr.bf16.mxu0 %v1004
    %3426 = vmatpush1.bf16.msra.mxu0 %v1003
    %3427 = vmatprep.subr.bf16.mxu0 %v1008
    %3428 = vmatpush1.bf16.msra.mxu0 %v1007
    %3429 = vmatprep.subr.bf16.mxu0 %v1012
    %3430 = vmatpush1.bf16.msra.mxu0 %v1011
    %3431 = vmatprep.subr.bf16.mxu0 0
    %3432 = vmatpush1.bf16.msra.mxu0 0
    %3433 = vmatprep.subr.bf16.mxu0 0
    %3434 = vmatpush1.bf16.msra.mxu0 0
    %3435 = vmatprep.subr.bf16.mxu0 0
    %3436 = vmatpush1.bf16.msra.mxu0 0
    %3437 = vmatprep.subr.bf16.mxu0 0
    %3438 = vmatpush1.bf16.msra.mxu0 0
    %3439 = vmatprep.subr.bf16.mxu0 0
    %3440 = vmatpush1.bf16.msra.mxu0 0
    %3441 = vmatprep.subr.bf16.mxu0 0
    %3442 = vmatpush1.bf16.msra.mxu0 0
    %3443 = vmatprep.subr.bf16.mxu0 0
    %3444 = vmatpush1.bf16.msra.mxu0 0
    %3445 = vmatprep.subr.bf16.mxu0 0
    %3446 = vmatpush1.bf16.msra.mxu0 0
    %3447 = vmatprep.mubr.bf16.mxu0 0
    %3448 = vmatmul.mubr.bf16.gmra.mrb[0].mxu0 %v3158
    %v3449 = vpop.f32.mrb[0].mxu0
    %v3450 = vadd.f32 0.0, %v3449
    %v3451 = vpop.f32.mrb[0].mxu0
    %v3452 = vadd.f32 0.0, %v3451
    %v3453 = vpop.f32.mrb[0].mxu0
    %v3454 = vadd.f32 0.0, %v3453
    %v3455 = vpop.f32.mrb[0].mxu0
    %v3456 = vadd.f32 0.0, %v3455
    %3457 = vdwg.mxu0
    %3458 = vmatprep.subr.bf16.mxu0 %v1228
    %3459 = vmatpush1.bf16.msra.mxu0 %v1227
    %3460 = vmatprep.subr.bf16.mxu0 %v1232
    %3461 = vmatpush1.bf16.msra.mxu0 %v1231
    %3462 = vmatprep.subr.bf16.mxu0 %v1236
    %3463 = vmatpush1.bf16.msra.mxu0 %v1235
    %3464 = vmatprep.subr.bf16.mxu0 %v1240
    %3465 = vmatpush1.bf16.msra.mxu0 %v1239
    %3466 = vmatprep.subr.bf16.mxu0 %v1244
    %3467 = vmatpush1.bf16.msra.mxu0 %v1243
    %3468 = vmatprep.subr.bf16.mxu0 %v1248
    %3469 = vmatpush1.bf16.msra.mxu0 %v1247
    %3470 = vmatprep.subr.bf16.mxu0 %v1252
    %3471 = vmatpush1.bf16.msra.mxu0 %v1251
    %3472 = vmatprep.subr.bf16.mxu0 %v1256
    %3473 = vmatpush1.bf16.msra.mxu0 %v1255
    %3474 = vmatprep.subr.bf16.mxu0 0
    %3475 = vmatpush1.bf16.msra.mxu0 0
    %3476 = vmatprep.subr.bf16.mxu0 0
    %3477 = vmatpush1.bf16.msra.mxu0 0
    %3478 = vmatprep.subr.bf16.mxu0 0
    %3479 = vmatpush1.bf16.msra.mxu0 0
    %3480 = vmatprep.subr.bf16.mxu0 0
    %3481 = vmatpush1.bf16.msra.mxu0 0
    %3482 = vmatprep.subr.bf16.mxu0 0
    %3483 = vmatpush1.bf16.msra.mxu0 0
    %3484 = vmatprep.subr.bf16.mxu0 0
    %3485 = vmatpush1.bf16.msra.mxu0 0
    %3486 = vmatprep.subr.bf16.mxu0 0
    %3487 = vmatpush1.bf16.msra.mxu0 0
    %3488 = vmatprep.subr.bf16.mxu0 0
    %3489 = vmatpush1.bf16.msra.mxu0 0
    %3490 = vmatprep.mubr.bf16.mxu0 0
    %3491 = vmatmul.mubr.bf16.gmra.mrb[0].mxu0 %v3371
    %v3492 = vpop.f32.mrb[0].mxu0
    %v3493 = vadd.f32 %v3407, %v3492
    %v3494 = vpop.f32.mrb[0].mxu0
    %v3495 = vadd.f32 %v3409, %v3494
    %v3496 = vpop.f32.mrb[0].mxu0
    %v3497 = vadd.f32 %v3411, %v3496
    %v3498 = vpop.f32.mrb[0].mxu0
    %v3499 = vadd.f32 %v3413, %v3498
    %3500 = vdwg.mxu0
    %3501 = vmatprep.subr.bf16.mxu0 %v1230
    %3502 = vmatpush1.bf16.msra.mxu0 %v1229
    %3503 = vmatprep.subr.bf16.mxu0 %v1234
    %3504 = vmatpush1.bf16.msra.mxu0 %v1233
    %3505 = vmatprep.subr.bf16.mxu0 %v1238
    %3506 = vmatpush1.bf16.msra.mxu0 %v1237
    %3507 = vmatprep.subr.bf16.mxu0 %v1242
    %3508 = vmatpush1.bf16.msra.mxu0 %v1241
    %3509 = vmatprep.subr.bf16.mxu0 %v1246
    %3510 = vmatpush1.bf16.msra.mxu0 %v1245
    %3511 = vmatprep.subr.bf16.mxu0 %v1250
    %3512 = vmatpush1.bf16.msra.mxu0 %v1249
    %3513 = vmatprep.subr.bf16.mxu0 %v1254
    %3514 = vmatpush1.bf16.msra.mxu0 %v1253
    %3515 = vmatprep.subr.bf16.mxu0 %v1258
    %3516 = vmatpush1.bf16.msra.mxu0 %v1257
    %3517 = vmatprep.subr.bf16.mxu0 0
    %3518 = vmatpush1.bf16.msra.mxu0 0
    %3519 = vmatprep.subr.bf16.mxu0 0
    %3520 = vmatpush1.bf16.msra.mxu0 0
    %3521 = vmatprep.subr.bf16.mxu0 0
    %3522 = vmatpush1.bf16.msra.mxu0 0
    %3523 = vmatprep.subr.bf16.mxu0 0
    %3524 = vmatpush1.bf16.msra.mxu0 0
    %3525 = vmatprep.subr.bf16.mxu0 0
    %3526 = vmatpush1.bf16.msra.mxu0 0
    %3527 = vmatprep.subr.bf16.mxu0 0
    %3528 = vmatpush1.bf16.msra.mxu0 0
    %3529 = vmatprep.subr.bf16.mxu0 0
    %3530 = vmatpush1.bf16.msra.mxu0 0
    %3531 = vmatprep.subr.bf16.mxu0 0
    %3532 = vmatpush1.bf16.msra.mxu0 0
    %3533 = vmatprep.mubr.bf16.mxu0 0
    %3534 = vmatmul.mubr.bf16.gmra.mrb[0].mxu0 %v3371
    %v3535 = vpop.f32.mrb[0].mxu0
    %v3536 = vadd.f32 %v3450, %v3535
    %v3537 = vpop.f32.mrb[0].mxu0
    %v3538 = vadd.f32 %v3452, %v3537
    %v3539 = vpop.f32.mrb[0].mxu0
    %v3540 = vadd.f32 %v3454, %v3539
    %v3541 = vpop.f32.mrb[0].mxu0
    %v3542 = vadd.f32 %v3456, %v3541
    %3543 = vdwg.mxu0
    %v3544 = vxor.u32 %v3493, 2147483648
    %v3545 = vxor.u32 %v3497, 2147483648
    %v3546 = vmul.f32 %v3544, 1.442695
    %v3547 = vpow.pop %v3546
    %v3548 = vmul.f32 %v3545, 1.442695
    %v3549 = vpow.pop %v3548
    %v3550 = vadd.f32 %v3547, 1.0
    %v3551 = vadd.f32 %v3549, 1.0
    %v3552 = vrcp.pop %v3550
    %v3553 = vmul.f32 1.0, %v3552
    %v3554 = vrcp.pop %v3551
    %v3555 = vmul.f32 1.0, %v3554
    %v3556 = vxor.u32 %v3495, 2147483648
    %v3557 = vxor.u32 %v3499, 2147483648
    %v3558 = vmul.f32 %v3556, 1.442695
    %v3559 = vpow.pop %v3558
    %v3560 = vmul.f32 %v3557, 1.442695
    %v3561 = vpow.pop %v3560
    %v3562 = vadd.f32 %v3559, 1.0
    %v3563 = vadd.f32 %v3561, 1.0
    %v3564 = vrcp.pop %v3562
    %v3565 = vmul.f32 1.0, %v3564
    %v3566 = vrcp.pop %v3563
    %v3567 = vmul.f32 1.0, %v3566
    %v3568 = vtanh.pop %v3536
    %v3569 = vtanh.pop %v3540
    %v3570 = vxor.u32 %v3538, 2147483648
    %v3571 = vxor.u32 %v3542, 2147483648
    %v3572 = vmul.f32 %v3570, 1.442695
    %v3573 = vpow.pop %v3572
    %v3574 = vmul.f32 %v3571, 1.442695
    %v3575 = vpow.pop %v3574
    %v3576 = vadd.f32 %v3573, 1.0
    %v3577 = vadd.f32 %v3575, 1.0
    %v3578 = vrcp.pop %v3576
    %v3579 = vmul.f32 1.0, %v3578
    %v3580 = vrcp.pop %v3577
    %v3581 = vmul.f32 1.0, %v3580
    %v3582 = vmul.f32 %v3565, %v3152
    %v3583 = vmul.f32 %v3567, %v3153
    %v3584 = vmul.f32 %v3553, %v3568
    %v3585 = vmul.f32 %v3555, %v3569
    %v3586 = vadd.f32 %v3582, %v3584
    %v3587 = vadd.f32 %v3583, %v3585
    %v3588 = vtanh.pop %v3586
    %v3589 = vtanh.pop %v3587
    %v3590 = vmul.f32 %v3579, %v3588
    %v3591 = vmul.f32 %v3581, %v3589
    %v3592 = vpack.c.bf16 %v3591, %v3590
    %v3601 = vunpack.c.l.b16 %v558
    %v3602 = vunpack.c.l.b16 %v559
    %v3603 = vunpack.c.l.b16 %v560
    %v3604 = vunpack.c.l.b16 %v561
    %v3605 = vunpack.c.l.b16 %v562
    %v3606 = vunpack.c.l.b16 %v563
    %v3607 = vunpack.c.l.b16 %v564
    %v3608 = vunpack.c.l.b16 %v565
    %v3609 = vpack.c.b16 %v3602, %v3601
    %v3610 = vpack.c.b16 %v3604, %v3603
    %v3611 = vpack.c.b16 %v3606, %v3605
    %v3612 = vpack.c.b16 %v3608, %v3607
    %v3618 = vsel %vm1814, %v3592, 0
    %3620 = vmatprep.subr.bf16.mxu0 0
    %3621 = vmatpush1.bf16.msra.mxu0 %v3609
    %3622 = vmatprep.subr.bf16.mxu0 0
    %3623 = vmatpush1.bf16.msra.mxu0 %v3610
    %3624 = vmatprep.subr.bf16.mxu0 0
    %3625 = vmatpush1.bf16.msra.mxu0 %v3611
    %3626 = vmatprep.subr.bf16.mxu0 0
    %3627 = vmatpush1.bf16.msra.mxu0 %v3612
    %3628 = vmatprep.subr.bf16.mxu0 0
    %3629 = vmatpush1.bf16.msra.mxu0 0
    %3630 = vmatprep.subr.bf16.mxu0 0
    %3631 = vmatpush1.bf16.msra.mxu0 0
    %3632 = vmatprep.subr.bf16.mxu0 0
    %3633 = vmatpush1.bf16.msra.mxu0 0
    %3634 = vmatprep.subr.bf16.mxu0 0
    %3635 = vmatpush1.bf16.msra.mxu0 0
    %3636 = vmatprep.subr.bf16.mxu0 0
    %3637 = vmatpush1.bf16.msra.mxu0 0
    %3638 = vmatprep.subr.bf16.mxu0 0
    %3639 = vmatpush1.bf16.msra.mxu0 0
    %3640 = vmatprep.subr.bf16.mxu0 0
    %3641 = vmatpush1.bf16.msra.mxu0 0
    %3642 = vmatprep.subr.bf16.mxu0 0
    %3643 = vmatpush1.bf16.msra.mxu0 0
    %3644 = vmatprep.subr.bf16.mxu0 0
    %3645 = vmatpush1.bf16.msra.mxu0 0
    %3646 = vmatprep.subr.bf16.mxu0 0
    %3647 = vmatpush1.bf16.msra.mxu0 0
    %3648 = vmatprep.subr.bf16.mxu0 0
    %3649 = vmatpush1.bf16.msra.mxu0 0
    %3650 = vmatprep.subr.bf16.mxu0 0
    %3651 = vmatpush1.bf16.msra.mxu0 0
    %3652 = vmatprep.mubr.bf16.mxu0 0
    %3653 = vmatmul.mubr.bf16.gmra.mrb[0].mxu0 %v3618
    %v3654 = vpop.f32.mrb[0].mxu0
    %v3655 = vadd.f32 0.0, %v3654
    %v3656 = vpop.f32.mrb[0].mxu0
    %v3657 = vpop.f32.mrb[0].mxu0
    %v3658 = vadd.f32 0.0, %v3657
    %v3659 = vpop.f32.mrb[0].mxu0
    %3660 = vdwg.mxu0
    %v3661 = vadd.f32 %v3227, %v3655
    %v3662 = vadd.f32 %v3228, %v3658
    %3663 = vmatprep.subr.bf16.mxu0 %v679
    %3664 = vmatpush1.bf16.msra.mxu0 %v678
    %3665 = vmatprep.subr.bf16.mxu0 %v683
    %3666 = vmatpush1.bf16.msra.mxu0 %v682
    %3667 = vmatprep.subr.bf16.mxu0 %v687
    %3668 = vmatpush1.bf16.msra.mxu0 %v686
    %3669 = vmatprep.subr.bf16.mxu0 %v691
    %3670 = vmatpush1.bf16.msra.mxu0 %v690
    %3671 = vmatprep.subr.bf16.mxu0 %v695
    %3672 = vmatpush1.bf16.msra.mxu0 %v694
    %3673 = vmatprep.subr.bf16.mxu0 %v699
    %3674 = vmatpush1.bf16.msra.mxu0 %v698
    %3675 = vmatprep.subr.bf16.mxu0 %v703
    %3676 = vmatpush1.bf16.msra.mxu0 %v702
    %3677 = vmatprep.subr.bf16.mxu0 %v707
    %3678 = vmatpush1.bf16.msra.mxu0 %v706
    %3679 = vmatprep.subr.bf16.mxu0 0
    %3680 = vmatpush1.bf16.msra.mxu0 0
    %3681 = vmatprep.subr.bf16.mxu0 0
    %3682 = vmatpush1.bf16.msra.mxu0 0
    %3683 = vmatprep.subr.bf16.mxu0 0
    %3684 = vmatpush1.bf16.msra.mxu0 0
    %3685 = vmatprep.subr.bf16.mxu0 0
    %3686 = vmatpush1.bf16.msra.mxu0 0
    %3687 = vmatprep.subr.bf16.mxu0 0
    %3688 = vmatpush1.bf16.msra.mxu0 0
    %3689 = vmatprep.subr.bf16.mxu0 0
    %3690 = vmatpush1.bf16.msra.mxu0 0
    %3691 = vmatprep.subr.bf16.mxu0 0
    %3692 = vmatpush1.bf16.msra.mxu0 0
    %3693 = vmatprep.subr.bf16.mxu0 0
    %3694 = vmatpush1.bf16.msra.mxu0 0
    %3695 = vmatprep.mubr.bf16.mxu0 0
    %3696 = vmatmul.mubr.bf16.gmra.mrb[0].mxu0 %v3371
    %v3697 = vpop.f32.mrb[0].mxu0
    %v3698 = vadd.f32 0.0, %v3697
    %v3699 = vpop.f32.mrb[0].mxu0
    %v3700 = vadd.f32 0.0, %v3699
    %v3701 = vpop.f32.mrb[0].mxu0
    %v3702 = vadd.f32 0.0, %v3701
    %v3703 = vpop.f32.mrb[0].mxu0
    %v3704 = vadd.f32 0.0, %v3703
    %3705 = vdwg.mxu0
    %3706 = vmatprep.subr.bf16.mxu0 %v681
    %3707 = vmatpush1.bf16.msra.mxu0 %v680
    %3708 = vmatprep.subr.bf16.mxu0 %v685
    %3709 = vmatpush1.bf16.msra.mxu0 %v684
    %3710 = vmatprep.subr.bf16.mxu0 %v689
    %3711 = vmatpush1.bf16.msra.mxu0 %v688
    %3712 = vmatprep.subr.bf16.mxu0 %v693
    %3713 = vmatpush1.bf16.msra.mxu0 %v692
    %3714 = vmatprep.subr.bf16.mxu0 %v697
    %3715 = vmatpush1.bf16.msra.mxu0 %v696
    %3716 = vmatprep.subr.bf16.mxu0 %v701
    %3717 = vmatpush1.bf16.msra.mxu0 %v700
    %3718 = vmatprep.subr.bf16.mxu0 %v705
    %3719 = vmatpush1.bf16.msra.mxu0 %v704
    %3720 = vmatprep.subr.bf16.mxu0 %v709
    %3721 = vmatpush1.bf16.msra.mxu0 %v708
    %3722 = vmatprep.subr.bf16.mxu0 0
    %3723 = vmatpush1.bf16.msra.mxu0 0
    %3724 = vmatprep.subr.bf16.mxu0 0
    %3725 = vmatpush1.bf16.msra.mxu0 0
    %3726 = vmatprep.subr.bf16.mxu0 0
    %3727 = vmatpush1.bf16.msra.mxu0 0
    %3728 = vmatprep.subr.bf16.mxu0 0
    %3729 = vmatpush1.bf16.msra.mxu0 0
    %3730 = vmatprep.subr.bf16.mxu0 0
    %3731 = vmatpush1.bf16.msra.mxu0 0
    %3732 = vmatprep.subr.bf16.mxu0 0
    %3733 = vmatpush1.bf16.msra.mxu0 0
    %3734 = vmatprep.subr.bf16.mxu0 0
    %3735 = vmatpush1.bf16.msra.mxu0 0
    %3736 = vmatprep.subr.bf16.mxu0 0
    %3737 = vmatpush1.bf16.msra.mxu0 0
    %3738 = vmatprep.mubr.bf16.mxu0 0
    %3739 = vmatmul.mubr.bf16.gmra.mrb[0].mxu0 %v3371
    %v3740 = vpop.f32.mrb[0].mxu0
    %v3741 = vadd.f32 0.0, %v3740
    %v3742 = vpop.f32.mrb[0].mxu0
    %v3743 = vadd.f32 0.0, %v3742
    %v3744 = vpop.f32.mrb[0].mxu0
    %v3745 = vadd.f32 0.0, %v3744
    %v3746 = vpop.f32.mrb[0].mxu0
    %v3747 = vadd.f32 0.0, %v3746
    %3748 = vdwg.mxu0
    %v3749 = vadd.f32 %v291, %v3698
    %v3750 = vadd.f32 %v293, %v3700
    %v3751 = vadd.f32 %v404, %v3741
    %v3752 = vadd.f32 %v406, %v3743
    %v3753 = vadd.f32 %v295, %v3702
    %v3754 = vadd.f32 %v297, %v3704
    %v3755 = vadd.f32 %v408, %v3745
    %v3756 = vadd.f32 %v410, %v3747
    %v3757 = vxor.u32 %v3749, 2147483648
    %v3758 = vxor.u32 %v3753, 2147483648
    %v3759 = vmul.f32 %v3757, 1.442695
    %v3760 = vpow.pop %v3759
    %v3761 = vmul.f32 %v3758, 1.442695
    %v3762 = vpow.pop %v3761
    %v3763 = vadd.f32 %v3760, 1.0
    %v3764 = vadd.f32 %v3762, 1.0
    %v3765 = vrcp.pop %v3763
    %v3766 = vmul.f32 1.0, %v3765
    %v3767 = vrcp.pop %v3764
    %v3768 = vmul.f32 1.0, %v3767
    %v3769 = vxor.u32 %v3750, 2147483648
    %v3770 = vxor.u32 %v3754, 2147483648
    %v3771 = vmul.f32 %v3769, 1.442695
    %v3772 = vpow.pop %v3771
    %v3773 = vmul.f32 %v3770, 1.442695
    %v3774 = vpow.pop %v3773
    %v3775 = vadd.f32 %v3772, 1.0
    %v3776 = vadd.f32 %v3774, 1.0
    %v3777 = vrcp.pop %v3775
    %v3778 = vmul.f32 1.0, %v3777
    %v3779 = vrcp.pop %v3776
    %v3780 = vmul.f32 1.0, %v3779
    %v3781 = vtanh.pop %v3751
    %v3782 = vtanh.pop %v3755
    %v3783 = vxor.u32 %v3752, 2147483648
    %v3784 = vxor.u32 %v3756, 2147483648
    %v3785 = vmul.f32 %v3783, 1.442695
    %v3786 = vpow.pop %v3785
    %v3787 = vmul.f32 %v3784, 1.442695
    %v3788 = vpow.pop %v3787
    %v3789 = vadd.f32 %v3786, 1.0
    %v3790 = vadd.f32 %v3788, 1.0
    %v3791 = vrcp.pop %v3789
    %v3792 = vmul.f32 1.0, %v3791
    %v3793 = vrcp.pop %v3790
    %v3794 = vmul.f32 1.0, %v3793
    %v3795 = vmul.f32 %v3778, %v3365
    %v3796 = vmul.f32 %v3780, %v3366
    %v3797 = vmul.f32 %v3766, %v3781
    %v3798 = vmul.f32 %v3768, %v3782
    %v3799 = vadd.f32 %v3795, %v3797
    %v3800 = vadd.f32 %v3796, %v3798
    %v3801 = vtanh.pop %v3799
    %v3802 = vtanh.pop %v3800
    %v3803 = vmul.f32 %v3792, %v3801
    %v3804 = vmul.f32 %v3794, %v3802
    %v3805 = vpack.c.bf16 %v3804, %v3803
    %3806 = vmatprep.subr.bf16.mxu0 %v982
    %3807 = vmatpush1.bf16.msra.mxu0 %v981
    %3808 = vmatprep.subr.bf16.mxu0 %v986
    %3809 = vmatpush1.bf16.msra.mxu0 %v985
    %3810 = vmatprep.subr.bf16.mxu0 %v990
    %3811 = vmatpush1.bf16.msra.mxu0 %v989
    %3812 = vmatprep.subr.bf16.mxu0 %v994
    %3813 = vmatpush1.bf16.msra.mxu0 %v993
    %3814 = vmatprep.subr.bf16.mxu0 %v998
    %3815 = vmatpush1.bf16.msra.mxu0 %v997
    %3816 = vmatprep.subr.bf16.mxu0 %v1002
    %3817 = vmatpush1.bf16.msra.mxu0 %v1001
    %3818 = vmatprep.subr.bf16.mxu0 %v1006
    %3819 = vmatpush1.bf16.msra.mxu0 %v1005
    %3820 = vmatprep.subr.bf16.mxu0 %v1010
    %3821 = vmatpush1.bf16.msra.mxu0 %v1009
    %3822 = vmatprep.subr.bf16.mxu0 0
    %3823 = vmatpush1.bf16.msra.mxu0 0
    %3824 = vmatprep.subr.bf16.mxu0 0
    %3825 = vmatpush1.bf16.msra.mxu0 0
    %3826 = vmatprep.subr.bf16.mxu0 0
    %3827 = vmatpush1.bf16.msra.mxu0 0
    %3828 = vmatprep.subr.bf16.mxu0 0
    %3829 = vmatpush1.bf16.msra.mxu0 0
    %3830 = vmatprep.subr.bf16.mxu0 0
    %3831 = vmatpush1.bf16.msra.mxu0 0
    %3832 = vmatprep.subr.bf16.mxu0 0
    %3833 = vmatpush1.bf16.msra.mxu0 0
    %3834 = vmatprep.subr.bf16.mxu0 0
    %3835 = vmatpush1.bf16.msra.mxu0 0
    %3836 = vmatprep.subr.bf16.mxu0 0
    %3837 = vmatpush1.bf16.msra.mxu0 0
    %3838 = vmatprep.mubr.bf16.mxu0 0
    %3839 = vmatmul.mubr.bf16.gmra.mrb[0].mxu0 %v3592
    %v3840 = vpop.f32.mrb[0].mxu0
    %v3841 = vadd.f32 0.0, %v3840
    %v3842 = vpop.f32.mrb[0].mxu0
    %v3843 = vadd.f32 0.0, %v3842
    %v3844 = vpop.f32.mrb[0].mxu0
    %v3845 = vadd.f32 0.0, %v3844
    %v3846 = vpop.f32.mrb[0].mxu0
    %v3847 = vadd.f32 0.0, %v3846
    %3848 = vdwg.mxu0
    %3849 = vmatprep.subr.bf16.mxu0 %v984
    %3850 = vmatpush1.bf16.msra.mxu0 %v983
    %3851 = vmatprep.subr.bf16.mxu0 %v988
    %3852 = vmatpush1.bf16.msra.mxu0 %v987
    %3853 = vmatprep.subr.bf16.mxu0 %v992
    %3854 = vmatpush1.bf16.msra.mxu0 %v991
    %3855 = vmatprep.subr.bf16.mxu0 %v996
    %3856 = vmatpush1.bf16.msra.mxu0 %v995
    %3857 = vmatprep.subr.bf16.mxu0 %v1000
    %3858 = vmatpush1.bf16.msra.mxu0 %v999
    %3859 = vmatprep.subr.bf16.mxu0 %v1004
    %3860 = vmatpush1.bf16.msra.mxu0 %v1003
    %3861 = vmatprep.subr.bf16.mxu0 %v1008
    %3862 = vmatpush1.bf16.msra.mxu0 %v1007
    %3863 = vmatprep.subr.bf16.mxu0 %v1012
    %3864 = vmatpush1.bf16.msra.mxu0 %v1011
    %3865 = vmatprep.subr.bf16.mxu0 0
    %3866 = vmatpush1.bf16.msra.mxu0 0
    %3867 = vmatprep.subr.bf16.mxu0 0
    %3868 = vmatpush1.bf16.msra.mxu0 0
    %3869 = vmatprep.subr.bf16.mxu0 0
    %3870 = vmatpush1.bf16.msra.mxu0 0
    %3871 = vmatprep.subr.bf16.mxu0 0
    %3872 = vmatpush1.bf16.msra.mxu0 0
    %3873 = vmatprep.subr.bf16.mxu0 0
    %3874 = vmatpush1.bf16.msra.mxu0 0
    %3875 = vmatprep.subr.bf16.mxu0 0
    %3876 = vmatpush1.bf16.msra.mxu0 0
    %3877 = vmatprep.subr.bf16.mxu0 0
    %3878 = vmatpush1.bf16.msra.mxu0 0
    %3879 = vmatprep.subr.bf16.mxu0 0
    %3880 = vmatpush1.bf16.msra.mxu0 0
    %3881 = vmatprep.mubr.bf16.mxu0 0
    %3882 = vmatmul.mubr.bf16.gmra.mrb[0].mxu0 %v3592
    %v3883 = vpop.f32.mrb[0].mxu0
    %v3884 = vadd.f32 0.0, %v3883
    %v3885 = vpop.f32.mrb[0].mxu0
    %v3886 = vadd.f32 0.0, %v3885
    %v3887 = vpop.f32.mrb[0].mxu0
    %v3888 = vadd.f32 0.0, %v3887
    %v3889 = vpop.f32.mrb[0].mxu0
    %v3890 = vadd.f32 0.0, %v3889
    %3891 = vdwg.mxu0
    %3892 = vmatprep.subr.bf16.mxu0 %v1228
    %3893 = vmatpush1.bf16.msra.mxu0 %v1227
    %3894 = vmatprep.subr.bf16.mxu0 %v1232
    %3895 = vmatpush1.bf16.msra.mxu0 %v1231
    %3896 = vmatprep.subr.bf16.mxu0 %v1236
    %3897 = vmatpush1.bf16.msra.mxu0 %v1235
    %3898 = vmatprep.subr.bf16.mxu0 %v1240
    %3899 = vmatpush1.bf16.msra.mxu0 %v1239
    %3900 = vmatprep.subr.bf16.mxu0 %v1244
    %3901 = vmatpush1.bf16.msra.mxu0 %v1243
    %3902 = vmatprep.subr.bf16.mxu0 %v1248
    %3903 = vmatpush1.bf16.msra.mxu0 %v1247
    %3904 = vmatprep.subr.bf16.mxu0 %v1252
    %3905 = vmatpush1.bf16.msra.mxu0 %v1251
    %3906 = vmatprep.subr.bf16.mxu0 %v1256
    %3907 = vmatpush1.bf16.msra.mxu0 %v1255
    %3908 = vmatprep.subr.bf16.mxu0 0
    %3909 = vmatpush1.bf16.msra.mxu0 0
    %3910 = vmatprep.subr.bf16.mxu0 0
    %3911 = vmatpush1.bf16.msra.mxu0 0
    %3912 = vmatprep.subr.bf16.mxu0 0
    %3913 = vmatpush1.bf16.msra.mxu0 0
    %3914 = vmatprep.subr.bf16.mxu0 0
    %3915 = vmatpush1.bf16.msra.mxu0 0
    %3916 = vmatprep.subr.bf16.mxu0 0
    %3917 = vmatpush1.bf16.msra.mxu0 0
    %3918 = vmatprep.subr.bf16.mxu0 0
    %3919 = vmatpush1.bf16.msra.mxu0 0
    %3920 = vmatprep.subr.bf16.mxu0 0
    %3921 = vmatpush1.bf16.msra.mxu0 0
    %3922 = vmatprep.subr.bf16.mxu0 0
    %3923 = vmatpush1.bf16.msra.mxu0 0
    %3924 = vmatprep.mubr.bf16.mxu0 0
    %3925 = vmatmul.mubr.bf16.gmra.mrb[0].mxu0 %v3805
    %v3926 = vpop.f32.mrb[0].mxu0
    %v3927 = vadd.f32 %v3841, %v3926
    %v3928 = vpop.f32.mrb[0].mxu0
    %v3929 = vadd.f32 %v3843, %v3928
    %v3930 = vpop.f32.mrb[0].mxu0
    %v3931 = vadd.f32 %v3845, %v3930
    %v3932 = vpop.f32.mrb[0].mxu0
    %v3933 = vadd.f32 %v3847, %v3932
    %3934 = vdwg.mxu0
    %3935 = vmatprep.subr.bf16.mxu0 %v1230
    %3936 = vmatpush1.bf16.msra.mxu0 %v1229
    %3937 = vmatprep.subr.bf16.mxu0 %v1234
    %3938 = vmatpush1.bf16.msra.mxu0 %v1233
    %3939 = vmatprep.subr.bf16.mxu0 %v1238
    %3940 = vmatpush1.bf16.msra.mxu0 %v1237
    %3941 = vmatprep.subr.bf16.mxu0 %v1242
    %3942 = vmatpush1.bf16.msra.mxu0 %v1241
    %3943 = vmatprep.subr.bf16.mxu0 %v1246
    %3944 = vmatpush1.bf16.msra.mxu0 %v1245
    %3945 = vmatprep.subr.bf16.mxu0 %v1250
    %3946 = vmatpush1.bf16.msra.mxu0 %v1249
    %3947 = vmatprep.subr.bf16.mxu0 %v1254
    %3948 = vmatpush1.bf16.msra.mxu0 %v1253
    %3949 = vmatprep.subr.bf16.mxu0 %v1258
    %3950 = vmatpush1.bf16.msra.mxu0 %v1257
    %3951 = vmatprep.subr.bf16.mxu0 0
    %3952 = vmatpush1.bf16.msra.mxu0 0
    %3953 = vmatprep.subr.bf16.mxu0 0
    %3954 = vmatpush1.bf16.msra.mxu0 0
    %3955 = vmatprep.subr.bf16.mxu0 0
    %3956 = vmatpush1.bf16.msra.mxu0 0
    %3957 = vmatprep.subr.bf16.mxu0 0
    %3958 = vmatpush1.bf16.msra.mxu0 0
    %3959 = vmatprep.subr.bf16.mxu0 0
    %3960 = vmatpush1.bf16.msra.mxu0 0
    %3961 = vmatprep.subr.bf16.mxu0 0
    %3962 = vmatpush1.bf16.msra.mxu0 0
    %3963 = vmatprep.subr.bf16.mxu0 0
    %3964 = vmatpush1.bf16.msra.mxu0 0
    %3965 = vmatprep.subr.bf16.mxu0 0
    %3966 = vmatpush1.bf16.msra.mxu0 0
    %3967 = vmatprep.mubr.bf16.mxu0 0
    %3968 = vmatmul.mubr.bf16.gmra.mrb[0].mxu0 %v3805
    %v3969 = vpop.f32.mrb[0].mxu0
    %v3970 = vadd.f32 %v3884, %v3969
    %v3971 = vpop.f32.mrb[0].mxu0
    %v3972 = vadd.f32 %v3886, %v3971
    %v3973 = vpop.f32.mrb[0].mxu0
    %v3974 = vadd.f32 %v3888, %v3973
    %v3975 = vpop.f32.mrb[0].mxu0
    %v3976 = vadd.f32 %v3890, %v3975
    %3977 = vdwg.mxu0
    %v3978 = vxor.u32 %v3927, 2147483648
    %v3979 = vxor.u32 %v3931, 2147483648
    %v3980 = vmul.f32 %v3978, 1.442695
    %v3981 = vpow.pop %v3980
    %v3982 = vmul.f32 %v3979, 1.442695
    %v3983 = vpow.pop %v3982
    %v3984 = vadd.f32 %v3981, 1.0
    %v3985 = vadd.f32 %v3983, 1.0
    %v3986 = vrcp.pop %v3984
    %v3987 = vmul.f32 1.0, %v3986
    %v3988 = vrcp.pop %v3985
    %v3989 = vmul.f32 1.0, %v3988
    %v3990 = vxor.u32 %v3929, 2147483648
    %v3991 = vxor.u32 %v3933, 2147483648
    %v3992 = vmul.f32 %v3990, 1.442695
    %v3993 = vpow.pop %v3992
    %v3994 = vmul.f32 %v3991, 1.442695
    %v3995 = vpow.pop %v3994
    %v3996 = vadd.f32 %v3993, 1.0
    %v3997 = vadd.f32 %v3995, 1.0
    %v3998 = vrcp.pop %v3996
    %v3999 = vmul.f32 1.0, %v3998
    %v4000 = vrcp.pop %v3997
    %v4001 = vmul.f32 1.0, %v4000
    %v4002 = vtanh.pop %v3970
    %v4003 = vtanh.pop %v3974
    %v4004 = vxor.u32 %v3972, 2147483648
    %v4005 = vxor.u32 %v3976, 2147483648
    %v4006 = vmul.f32 %v4004, 1.442695
    %v4007 = vpow.pop %v4006
    %v4008 = vmul.f32 %v4005, 1.442695
    %v4009 = vpow.pop %v4008
    %v4010 = vadd.f32 %v4007, 1.0
    %v4011 = vadd.f32 %v4009, 1.0
    %v4012 = vrcp.pop %v4010
    %v4013 = vmul.f32 1.0, %v4012
    %v4014 = vrcp.pop %v4011
    %v4015 = vmul.f32 1.0, %v4014
    %v4016 = vmul.f32 %v3999, %v3586
    %v4017 = vmul.f32 %v4001, %v3587
    %v4018 = vmul.f32 %v3987, %v4002
    %v4019 = vmul.f32 %v3989, %v4003
    %v4020 = vadd.f32 %v4016, %v4018
    %v4021 = vadd.f32 %v4017, %v4019
    %v4022 = vtanh.pop %v4020
    %v4023 = vtanh.pop %v4021
    %v4024 = vmul.f32 %v4013, %v4022
    %v4025 = vmul.f32 %v4015, %v4023
    %v4026 = vpack.c.bf16 %v4025, %v4024
    %v4035 = vunpack.c.l.b16 %v566
    %v4036 = vunpack.c.l.b16 %v567
    %v4037 = vunpack.c.l.b16 %v568
    %v4038 = vunpack.c.l.b16 %v569
    %v4039 = vunpack.c.l.b16 %v570
    %v4040 = vunpack.c.l.b16 %v571
    %v4041 = vunpack.c.l.b16 %v572
    %v4042 = vunpack.c.l.b16 %v573
    %v4043 = vpack.c.b16 %v4036, %v4035
    %v4044 = vpack.c.b16 %v4038, %v4037
    %v4045 = vpack.c.b16 %v4040, %v4039
    %v4046 = vpack.c.b16 %v4042, %v4041
    %v4052 = vsel %vm1814, %v4026, 0
    %4054 = vmatprep.subr.bf16.mxu0 0
    %4055 = vmatpush1.bf16.msra.mxu0 %v4043
    %4056 = vmatprep.subr.bf16.mxu0 0
    %4057 = vmatpush1.bf16.msra.mxu0 %v4044
    %4058 = vmatprep.subr.bf16.mxu0 0
    %4059 = vmatpush1.bf16.msra.mxu0 %v4045
    %4060 = vmatprep.subr.bf16.mxu0 0
    %4061 = vmatpush1.bf16.msra.mxu0 %v4046
    %4062 = vmatprep.subr.bf16.mxu0 0
    %4063 = vmatpush1.bf16.msra.mxu0 0
    %4064 = vmatprep.subr.bf16.mxu0 0
    %4065 = vmatpush1.bf16.msra.mxu0 0
    %4066 = vmatprep.subr.bf16.mxu0 0
    %4067 = vmatpush1.bf16.msra.mxu0 0
    %4068 = vmatprep.subr.bf16.mxu0 0
    %4069 = vmatpush1.bf16.msra.mxu0 0
    %4070 = vmatprep.subr.bf16.mxu0 0
    %4071 = vmatpush1.bf16.msra.mxu0 0
    %4072 = vmatprep.subr.bf16.mxu0 0
    %4073 = vmatpush1.bf16.msra.mxu0 0
    %4074 = vmatprep.subr.bf16.mxu0 0
    %4075 = vmatpush1.bf16.msra.mxu0 0
    %4076 = vmatprep.subr.bf16.mxu0 0
    %4077 = vmatpush1.bf16.msra.mxu0 0
    %4078 = vmatprep.subr.bf16.mxu0 0
    %4079 = vmatpush1.bf16.msra.mxu0 0
    %4080 = vmatprep.subr.bf16.mxu0 0
    %4081 = vmatpush1.bf16.msra.mxu0 0
    %4082 = vmatprep.subr.bf16.mxu0 0
    %4083 = vmatpush1.bf16.msra.mxu0 0
    %4084 = vmatprep.subr.bf16.mxu0 0
    %4085 = vmatpush1.bf16.msra.mxu0 0
    %4086 = vmatprep.mubr.bf16.mxu0 0
    %4087 = vmatmul.mubr.bf16.gmra.mrb[0].mxu0 %v4052
    %v4088 = vpop.f32.mrb[0].mxu0
    %v4089 = vadd.f32 0.0, %v4088
    %v4090 = vpop.f32.mrb[0].mxu0
    %v4091 = vpop.f32.mrb[0].mxu0
    %v4092 = vadd.f32 0.0, %v4091
    %v4093 = vpop.f32.mrb[0].mxu0
    %4094 = vdwg.mxu0
    %v4095 = vadd.f32 %v3661, %v4089
    %v4096 = vadd.f32 %v3662, %v4092
    %4097 = vmatprep.subr.bf16.mxu0 %v679
    %4098 = vmatpush1.bf16.msra.mxu0 %v678
    %4099 = vmatprep.subr.bf16.mxu0 %v683
    %4100 = vmatpush1.bf16.msra.mxu0 %v682
    %4101 = vmatprep.subr.bf16.mxu0 %v687
    %4102 = vmatpush1.bf16.msra.mxu0 %v686
    %4103 = vmatprep.subr.bf16.mxu0 %v691
    %4104 = vmatpush1.bf16.msra.mxu0 %v690
    %4105 = vmatprep.subr.bf16.mxu0 %v695
    %4106 = vmatpush1.bf16.msra.mxu0 %v694
    %4107 = vmatprep.subr.bf16.mxu0 %v699
    %4108 = vmatpush1.bf16.msra.mxu0 %v698
    %4109 = vmatprep.subr.bf16.mxu0 %v703
    %4110 = vmatpush1.bf16.msra.mxu0 %v702
    %4111 = vmatprep.subr.bf16.mxu0 %v707
    %4112 = vmatpush1.bf16.msra.mxu0 %v706
    %4113 = vmatprep.subr.bf16.mxu0 0
    %4114 = vmatpush1.bf16.msra.mxu0 0
    %4115 = vmatprep.subr.bf16.mxu0 0
    %4116 = vmatpush1.bf16.msra.mxu0 0
    %4117 = vmatprep.subr.bf16.mxu0 0
    %4118 = vmatpush1.bf16.msra.mxu0 0
    %4119 = vmatprep.subr.bf16.mxu0 0
    %4120 = vmatpush1.bf16.msra.mxu0 0
    %4121 = vmatprep.subr.bf16.mxu0 0
    %4122 = vmatpush1.bf16.msra.mxu0 0
    %4123 = vmatprep.subr.bf16.mxu0 0
    %4124 = vmatpush1.bf16.msra.mxu0 0
    %4125 = vmatprep.subr.bf16.mxu0 0
    %4126 = vmatpush1.bf16.msra.mxu0 0
    %4127 = vmatprep.subr.bf16.mxu0 0
    %4128 = vmatpush1.bf16.msra.mxu0 0
    %4129 = vmatprep.mubr.bf16.mxu0 0
    %4130 = vmatmul.mubr.bf16.gmra.mrb[0].mxu0 %v3805
    %v4131 = vpop.f32.mrb[0].mxu0
    %v4132 = vadd.f32 0.0, %v4131
    %v4133 = vpop.f32.mrb[0].mxu0
    %v4134 = vadd.f32 0.0, %v4133
    %v4135 = vpop.f32.mrb[0].mxu0
    %v4136 = vadd.f32 0.0, %v4135
    %v4137 = vpop.f32.mrb[0].mxu0
    %v4138 = vadd.f32 0.0, %v4137
    %4139 = vdwg.mxu0
    %4140 = vmatprep.subr.bf16.mxu0 %v681
    %4141 = vmatpush1.bf16.msra.mxu0 %v680
    %4142 = vmatprep.subr.bf16.mxu0 %v685
    %4143 = vmatpush1.bf16.msra.mxu0 %v684
    %4144 = vmatprep.subr.bf16.mxu0 %v689
    %4145 = vmatpush1.bf16.msra.mxu0 %v688
    %4146 = vmatprep.subr.bf16.mxu0 %v693
    %4147 = vmatpush1.bf16.msra.mxu0 %v692
    %4148 = vmatprep.subr.bf16.mxu0 %v697
    %4149 = vmatpush1.bf16.msra.mxu0 %v696
    %4150 = vmatprep.subr.bf16.mxu0 %v701
    %4151 = vmatpush1.bf16.msra.mxu0 %v700
    %4152 = vmatprep.subr.bf16.mxu0 %v705
    %4153 = vmatpush1.bf16.msra.mxu0 %v704
    %4154 = vmatprep.subr.bf16.mxu0 %v709
    %4155 = vmatpush1.bf16.msra.mxu0 %v708
    %4156 = vmatprep.subr.bf16.mxu0 0
    %4157 = vmatpush1.bf16.msra.mxu0 0
    %4158 = vmatprep.subr.bf16.mxu0 0
    %4159 = vmatpush1.bf16.msra.mxu0 0
    %4160 = vmatprep.subr.bf16.mxu0 0
    %4161 = vmatpush1.bf16.msra.mxu0 0
    %4162 = vmatprep.subr.bf16.mxu0 0
    %4163 = vmatpush1.bf16.msra.mxu0 0
    %4164 = vmatprep.subr.bf16.mxu0 0
    %4165 = vmatpush1.bf16.msra.mxu0 0
    %4166 = vmatprep.subr.bf16.mxu0 0
    %4167 = vmatpush1.bf16.msra.mxu0 0
    %4168 = vmatprep.subr.bf16.mxu0 0
    %4169 = vmatpush1.bf16.msra.mxu0 0
    %4170 = vmatprep.subr.bf16.mxu0 0
    %4171 = vmatpush1.bf16.msra.mxu0 0
    %4172 = vmatprep.mubr.bf16.mxu0 0
    %4173 = vmatmul.mubr.bf16.gmra.mrb[0].mxu0 %v3805
    %v4174 = vpop.f32.mrb[0].mxu0
    %v4175 = vadd.f32 0.0, %v4174
    %v4176 = vpop.f32.mrb[0].mxu0
    %v4177 = vadd.f32 0.0, %v4176
    %v4178 = vpop.f32.mrb[0].mxu0
    %v4179 = vadd.f32 0.0, %v4178
    %v4180 = vpop.f32.mrb[0].mxu0
    %v4181 = vadd.f32 0.0, %v4180
    %4182 = vdwg.mxu0
    %v4183 = vadd.f32 %v301, %v4132
    %v4184 = vadd.f32 %v303, %v4134
    %v4185 = vadd.f32 %v414, %v4175
    %v4186 = vadd.f32 %v416, %v4177
    %v4187 = vadd.f32 %v305, %v4136
    %v4188 = vadd.f32 %v307, %v4138
    %v4189 = vadd.f32 %v418, %v4179
    %v4190 = vadd.f32 %v420, %v4181
    %v4191 = vxor.u32 %v4183, 2147483648
    %v4192 = vxor.u32 %v4187, 2147483648
    %v4193 = vmul.f32 %v4191, 1.442695
    %v4194 = vpow.pop %v4193
    %v4195 = vmul.f32 %v4192, 1.442695
    %v4196 = vpow.pop %v4195
    %v4197 = vadd.f32 %v4194, 1.0
    %v4198 = vadd.f32 %v4196, 1.0
    %v4199 = vrcp.pop %v4197
    %v4200 = vmul.f32 1.0, %v4199
    %v4201 = vrcp.pop %v4198
    %v4202 = vmul.f32 1.0, %v4201
    %v4203 = vxor.u32 %v4184, 2147483648
    %v4204 = vxor.u32 %v4188, 2147483648
    %v4205 = vmul.f32 %v4203, 1.442695
    %v4206 = vpow.pop %v4205
    %v4207 = vmul.f32 %v4204, 1.442695
    %v4208 = vpow.pop %v4207
    %v4209 = vadd.f32 %v4206, 1.0
    %v4210 = vadd.f32 %v4208, 1.0
    %v4211 = vrcp.pop %v4209
    %v4212 = vmul.f32 1.0, %v4211
    %v4213 = vrcp.pop %v4210
    %v4214 = vmul.f32 1.0, %v4213
    %v4215 = vtanh.pop %v4185
    %v4216 = vtanh.pop %v4189
    %v4217 = vxor.u32 %v4186, 2147483648
    %v4218 = vxor.u32 %v4190, 2147483648
    %v4219 = vmul.f32 %v4217, 1.442695
    %v4220 = vpow.pop %v4219
    %v4221 = vmul.f32 %v4218, 1.442695
    %v4222 = vpow.pop %v4221
    %v4223 = vadd.f32 %v4220, 1.0
    %v4224 = vadd.f32 %v4222, 1.0
    %v4225 = vrcp.pop %v4223
    %v4226 = vmul.f32 1.0, %v4225
    %v4227 = vrcp.pop %v4224
    %v4228 = vmul.f32 1.0, %v4227
    %v4229 = vmul.f32 %v4212, %v3799
    %v4230 = vmul.f32 %v4214, %v3800
    %v4231 = vmul.f32 %v4200, %v4215
    %v4232 = vmul.f32 %v4202, %v4216
    %v4233 = vadd.f32 %v4229, %v4231
    %v4234 = vadd.f32 %v4230, %v4232
    %v4235 = vtanh.pop %v4233
    %v4236 = vtanh.pop %v4234
    %v4237 = vmul.f32 %v4226, %v4235
    %v4238 = vmul.f32 %v4228, %v4236
    %v4239 = vpack.c.bf16 %v4238, %v4237
    %4240 = vmatprep.subr.bf16.mxu0 %v982
    %4241 = vmatpush1.bf16.msra.mxu0 %v981
    %4242 = vmatprep.subr.bf16.mxu0 %v986
    %4243 = vmatpush1.bf16.msra.mxu0 %v985
    %4244 = vmatprep.subr.bf16.mxu0 %v990
    %4245 = vmatpush1.bf16.msra.mxu0 %v989
    %4246 = vmatprep.subr.bf16.mxu0 %v994
    %4247 = vmatpush1.bf16.msra.mxu0 %v993
    %4248 = vmatprep.subr.bf16.mxu0 %v998
    %4249 = vmatpush1.bf16.msra.mxu0 %v997
    %4250 = vmatprep.subr.bf16.mxu0 %v1002
    %4251 = vmatpush1.bf16.msra.mxu0 %v1001
    %4252 = vmatprep.subr.bf16.mxu0 %v1006
    %4253 = vmatpush1.bf16.msra.mxu0 %v1005
    %4254 = vmatprep.subr.bf16.mxu0 %v1010
    %4255 = vmatpush1.bf16.msra.mxu0 %v1009
    %4256 = vmatprep.subr.bf16.mxu0 0
    %4257 = vmatpush1.bf16.msra.mxu0 0
    %4258 = vmatprep.subr.bf16.mxu0 0
    %4259 = vmatpush1.bf16.msra.mxu0 0
    %4260 = vmatprep.subr.bf16.mxu0 0
    %4261 = vmatpush1.bf16.msra.mxu0 0
    %4262 = vmatprep.subr.bf16.mxu0 0
    %4263 = vmatpush1.bf16.msra.mxu0 0
    %4264 = vmatprep.subr.bf16.mxu0 0
    %4265 = vmatpush1.bf16.msra.mxu0 0
    %4266 = vmatprep.subr.bf16.mxu0 0
    %4267 = vmatpush1.bf16.msra.mxu0 0
    %4268 = vmatprep.subr.bf16.mxu0 0
    %4269 = vmatpush1.bf16.msra.mxu0 0
    %4270 = vmatprep.subr.bf16.mxu0 0
    %4271 = vmatpush1.bf16.msra.mxu0 0
    %4272 = vmatprep.mubr.bf16.mxu0 0
    %4273 = vmatmul.mubr.bf16.gmra.mrb[0].mxu0 %v4026
    %v4274 = vpop.f32.mrb[0].mxu0
    %v4275 = vadd.f32 0.0, %v4274
    %v4276 = vpop.f32.mrb[0].mxu0
    %v4277 = vadd.f32 0.0, %v4276
    %v4278 = vpop.f32.mrb[0].mxu0
    %v4279 = vadd.f32 0.0, %v4278
    %v4280 = vpop.f32.mrb[0].mxu0
    %v4281 = vadd.f32 0.0, %v4280
    %4282 = vdwg.mxu0
    %4283 = vmatprep.subr.bf16.mxu0 %v984
    %4284 = vmatpush1.bf16.msra.mxu0 %v983
    %4285 = vmatprep.subr.bf16.mxu0 %v988
    %4286 = vmatpush1.bf16.msra.mxu0 %v987
    %4287 = vmatprep.subr.bf16.mxu0 %v992
    %4288 = vmatpush1.bf16.msra.mxu0 %v991
    %4289 = vmatprep.subr.bf16.mxu0 %v996
    %4290 = vmatpush1.bf16.msra.mxu0 %v995
    %4291 = vmatprep.subr.bf16.mxu0 %v1000
    %4292 = vmatpush1.bf16.msra.mxu0 %v999
    %4293 = vmatprep.subr.bf16.mxu0 %v1004
    %4294 = vmatpush1.bf16.msra.mxu0 %v1003
    %4295 = vmatprep.subr.bf16.mxu0 %v1008
    %4296 = vmatpush1.bf16.msra.mxu0 %v1007
    %4297 = vmatprep.subr.bf16.mxu0 %v1012
    %4298 = vmatpush1.bf16.msra.mxu0 %v1011
    %4299 = vmatprep.subr.bf16.mxu0 0
    %4300 = vmatpush1.bf16.msra.mxu0 0
    %4301 = vmatprep.subr.bf16.mxu0 0
    %4302 = vmatpush1.bf16.msra.mxu0 0
    %4303 = vmatprep.subr.bf16.mxu0 0
    %4304 = vmatpush1.bf16.msra.mxu0 0
    %4305 = vmatprep.subr.bf16.mxu0 0
    %4306 = vmatpush1.bf16.msra.mxu0 0
    %4307 = vmatprep.subr.bf16.mxu0 0
    %4308 = vmatpush1.bf16.msra.mxu0 0
    %4309 = vmatprep.subr.bf16.mxu0 0
    %4310 = vmatpush1.bf16.msra.mxu0 0
    %4311 = vmatprep.subr.bf16.mxu0 0
    %4312 = vmatpush1.bf16.msra.mxu0 0
    %4313 = vmatprep.subr.bf16.mxu0 0
    %4314 = vmatpush1.bf16.msra.mxu0 0
    %4315 = vmatprep.mubr.bf16.mxu0 0
    %4316 = vmatmul.mubr.bf16.gmra.mrb[0].mxu0 %v4026
    %v4317 = vpop.f32.mrb[0].mxu0
    %v4318 = vadd.f32 0.0, %v4317
    %v4319 = vpop.f32.mrb[0].mxu0
    %v4320 = vadd.f32 0.0, %v4319
    %v4321 = vpop.f32.mrb[0].mxu0
    %v4322 = vadd.f32 0.0, %v4321
    %v4323 = vpop.f32.mrb[0].mxu0
    %v4324 = vadd.f32 0.0, %v4323
    %4325 = vdwg.mxu0
    %4326 = vmatprep.subr.bf16.mxu0 %v1228
    %4327 = vmatpush1.bf16.msra.mxu0 %v1227
    %4328 = vmatprep.subr.bf16.mxu0 %v1232
    %4329 = vmatpush1.bf16.msra.mxu0 %v1231
    %4330 = vmatprep.subr.bf16.mxu0 %v1236
    %4331 = vmatpush1.bf16.msra.mxu0 %v1235
    %4332 = vmatprep.subr.bf16.mxu0 %v1240
    %4333 = vmatpush1.bf16.msra.mxu0 %v1239
    %4334 = vmatprep.subr.bf16.mxu0 %v1244
    %4335 = vmatpush1.bf16.msra.mxu0 %v1243
    %4336 = vmatprep.subr.bf16.mxu0 %v1248
    %4337 = vmatpush1.bf16.msra.mxu0 %v1247
    %4338 = vmatprep.subr.bf16.mxu0 %v1252
    %4339 = vmatpush1.bf16.msra.mxu0 %v1251
    %4340 = vmatprep.subr.bf16.mxu0 %v1256
    %4341 = vmatpush1.bf16.msra.mxu0 %v1255
    %4342 = vmatprep.subr.bf16.mxu0 0
    %4343 = vmatpush1.bf16.msra.mxu0 0
    %4344 = vmatprep.subr.bf16.mxu0 0
    %4345 = vmatpush1.bf16.msra.mxu0 0
    %4346 = vmatprep.subr.bf16.mxu0 0
    %4347 = vmatpush1.bf16.msra.mxu0 0
    %4348 = vmatprep.subr.bf16.mxu0 0
    %4349 = vmatpush1.bf16.msra.mxu0 0
    %4350 = vmatprep.subr.bf16.mxu0 0
    %4351 = vmatpush1.bf16.msra.mxu0 0
    %4352 = vmatprep.subr.bf16.mxu0 0
    %4353 = vmatpush1.bf16.msra.mxu0 0
    %4354 = vmatprep.subr.bf16.mxu0 0
    %4355 = vmatpush1.bf16.msra.mxu0 0
    %4356 = vmatprep.subr.bf16.mxu0 0
    %4357 = vmatpush1.bf16.msra.mxu0 0
    %4358 = vmatprep.mubr.bf16.mxu0 0
    %4359 = vmatmul.mubr.bf16.gmra.mrb[0].mxu0 %v4239
    %v4360 = vpop.f32.mrb[0].mxu0
    %v4361 = vadd.f32 %v4275, %v4360
    %v4362 = vpop.f32.mrb[0].mxu0
    %v4363 = vadd.f32 %v4277, %v4362
    %v4364 = vpop.f32.mrb[0].mxu0
    %v4365 = vadd.f32 %v4279, %v4364
    %v4366 = vpop.f32.mrb[0].mxu0
    %v4367 = vadd.f32 %v4281, %v4366
    %4368 = vdwg.mxu0
    %4369 = vmatprep.subr.bf16.mxu0 %v1230
    %4370 = vmatpush1.bf16.msra.mxu0 %v1229
    %4371 = vmatprep.subr.bf16.mxu0 %v1234
    %4372 = vmatpush1.bf16.msra.mxu0 %v1233
    %4373 = vmatprep.subr.bf16.mxu0 %v1238
    %4374 = vmatpush1.bf16.msra.mxu0 %v1237
    %4375 = vmatprep.subr.bf16.mxu0 %v1242
    %4376 = vmatpush1.bf16.msra.mxu0 %v1241
    %4377 = vmatprep.subr.bf16.mxu0 %v1246
    %4378 = vmatpush1.bf16.msra.mxu0 %v1245
    %4379 = vmatprep.subr.bf16.mxu0 %v1250
    %4380 = vmatpush1.bf16.msra.mxu0 %v1249
    %4381 = vmatprep.subr.bf16.mxu0 %v1254
    %4382 = vmatpush1.bf16.msra.mxu0 %v1253
    %4383 = vmatprep.subr.bf16.mxu0 %v1258
    %4384 = vmatpush1.bf16.msra.mxu0 %v1257
    %4385 = vmatprep.subr.bf16.mxu0 0
    %4386 = vmatpush1.bf16.msra.mxu0 0
    %4387 = vmatprep.subr.bf16.mxu0 0
    %4388 = vmatpush1.bf16.msra.mxu0 0
    %4389 = vmatprep.subr.bf16.mxu0 0
    %4390 = vmatpush1.bf16.msra.mxu0 0
    %4391 = vmatprep.subr.bf16.mxu0 0
    %4392 = vmatpush1.bf16.msra.mxu0 0
    %4393 = vmatprep.subr.bf16.mxu0 0
    %4394 = vmatpush1.bf16.msra.mxu0 0
    %4395 = vmatprep.subr.bf16.mxu0 0
    %4396 = vmatpush1.bf16.msra.mxu0 0
    %4397 = vmatprep.subr.bf16.mxu0 0
    %4398 = vmatpush1.bf16.msra.mxu0 0
    %4399 = vmatprep.subr.bf16.mxu0 0
    %4400 = vmatpush1.bf16.msra.mxu0 0
    %4401 = vmatprep.mubr.bf16.mxu0 0
    %4402 = vmatmul.mubr.bf16.gmra.mrb[0].mxu0 %v4239
    %v4403 = vpop.f32.mrb[0].mxu0
    %v4404 = vadd.f32 %v4318, %v4403
    %v4405 = vpop.f32.mrb[0].mxu0
    %v4406 = vadd.f32 %v4320, %v4405
    %v4407 = vpop.f32.mrb[0].mxu0
    %v4408 = vadd.f32 %v4322, %v4407
    %v4409 = vpop.f32.mrb[0].mxu0
    %v4410 = vadd.f32 %v4324, %v4409
    %4411 = vdwg.mxu0
    %v4412 = vxor.u32 %v4361, 2147483648
    %v4413 = vxor.u32 %v4365, 2147483648
    %v4414 = vmul.f32 %v4412, 1.442695
    %v4415 = vpow.pop %v4414
    %v4416 = vmul.f32 %v4413, 1.442695
    %v4417 = vpow.pop %v4416
    %v4418 = vadd.f32 %v4415, 1.0
    %v4419 = vadd.f32 %v4417, 1.0
    %v4420 = vrcp.pop %v4418
    %v4421 = vmul.f32 1.0, %v4420
    %v4422 = vrcp.pop %v4419
    %v4423 = vmul.f32 1.0, %v4422
    %v4424 = vxor.u32 %v4363, 2147483648
    %v4425 = vxor.u32 %v4367, 2147483648
    %v4426 = vmul.f32 %v4424, 1.442695
    %v4427 = vpow.pop %v4426
    %v4428 = vmul.f32 %v4425, 1.442695
    %v4429 = vpow.pop %v4428
    %v4430 = vadd.f32 %v4427, 1.0
    %v4431 = vadd.f32 %v4429, 1.0
    %v4432 = vrcp.pop %v4430
    %v4433 = vmul.f32 1.0, %v4432
    %v4434 = vrcp.pop %v4431
    %v4435 = vmul.f32 1.0, %v4434
    %v4436 = vtanh.pop %v4404
    %v4437 = vtanh.pop %v4408
    %v4438 = vxor.u32 %v4406, 2147483648
    %v4439 = vxor.u32 %v4410, 2147483648
    %v4440 = vmul.f32 %v4438, 1.442695
    %v4441 = vpow.pop %v4440
    %v4442 = vmul.f32 %v4439, 1.442695
    %v4443 = vpow.pop %v4442
    %v4444 = vadd.f32 %v4441, 1.0
    %v4445 = vadd.f32 %v4443, 1.0
    %v4446 = vrcp.pop %v4444
    %v4447 = vmul.f32 1.0, %v4446
    %v4448 = vrcp.pop %v4445
    %v4449 = vmul.f32 1.0, %v4448
    %v4450 = vmul.f32 %v4433, %v4020
    %v4451 = vmul.f32 %v4435, %v4021
    %v4452 = vmul.f32 %v4421, %v4436
    %v4453 = vmul.f32 %v4423, %v4437
    %v4454 = vadd.f32 %v4450, %v4452
    %v4455 = vadd.f32 %v4451, %v4453
    %v4456 = vtanh.pop %v4454
    %v4457 = vtanh.pop %v4455
    %v4458 = vmul.f32 %v4447, %v4456
    %v4459 = vmul.f32 %v4449, %v4457
    %v4460 = vpack.c.bf16 %v4459, %v4458
    %v4469 = vunpack.c.l.b16 %v574
    %v4470 = vunpack.c.l.b16 %v575
    %v4471 = vunpack.c.l.b16 %v576
    %v4472 = vunpack.c.l.b16 %v577
    %v4473 = vunpack.c.l.b16 %v578
    %v4474 = vunpack.c.l.b16 %v579
    %v4475 = vunpack.c.l.b16 %v580
    %v4476 = vunpack.c.l.b16 %v581
    %v4477 = vpack.c.b16 %v4470, %v4469
    %v4478 = vpack.c.b16 %v4472, %v4471
    %v4479 = vpack.c.b16 %v4474, %v4473
    %v4480 = vpack.c.b16 %v4476, %v4475
    %v4486 = vsel %vm1814, %v4460, 0
    %4488 = vmatprep.subr.bf16.mxu0 0
    %4489 = vmatpush1.bf16.msra.mxu0 %v4477
    %4490 = vmatprep.subr.bf16.mxu0 0
    %4491 = vmatpush1.bf16.msra.mxu0 %v4478
    %4492 = vmatprep.subr.bf16.mxu0 0
    %4493 = vmatpush1.bf16.msra.mxu0 %v4479
    %4494 = vmatprep.subr.bf16.mxu0 0
    %4495 = vmatpush1.bf16.msra.mxu0 %v4480
    %4496 = vmatprep.subr.bf16.mxu0 0
    %4497 = vmatpush1.bf16.msra.mxu0 0
    %4498 = vmatprep.subr.bf16.mxu0 0
    %4499 = vmatpush1.bf16.msra.mxu0 0
    %4500 = vmatprep.subr.bf16.mxu0 0
    %4501 = vmatpush1.bf16.msra.mxu0 0
    %4502 = vmatprep.subr.bf16.mxu0 0
    %4503 = vmatpush1.bf16.msra.mxu0 0
    %4504 = vmatprep.subr.bf16.mxu0 0
    %4505 = vmatpush1.bf16.msra.mxu0 0
    %4506 = vmatprep.subr.bf16.mxu0 0
    %4507 = vmatpush1.bf16.msra.mxu0 0
    %4508 = vmatprep.subr.bf16.mxu0 0
    %4509 = vmatpush1.bf16.msra.mxu0 0
    %4510 = vmatprep.subr.bf16.mxu0 0
    %4511 = vmatpush1.bf16.msra.mxu0 0
    %4512 = vmatprep.subr.bf16.mxu0 0
    %4513 = vmatpush1.bf16.msra.mxu0 0
    %4514 = vmatprep.subr.bf16.mxu0 0
    %4515 = vmatpush1.bf16.msra.mxu0 0
    %4516 = vmatprep.subr.bf16.mxu0 0
    %4517 = vmatpush1.bf16.msra.mxu0 0
    %4518 = vmatprep.subr.bf16.mxu0 0
    %4519 = vmatpush1.bf16.msra.mxu0 0
    %4520 = vmatprep.mubr.bf16.mxu0 0
    %4521 = vmatmul.mubr.bf16.gmra.mrb[0].mxu0 %v4486
    %v4522 = vpop.f32.mrb[0].mxu0
    %v4523 = vadd.f32 0.0, %v4522
    %v4524 = vpop.f32.mrb[0].mxu0
    %v4525 = vpop.f32.mrb[0].mxu0
    %v4526 = vadd.f32 0.0, %v4525
    %v4527 = vpop.f32.mrb[0].mxu0
    %4528 = vdwg.mxu0
    %v4529 = vadd.f32 %v4095, %v4523
    %v4530 = vadd.f32 %v4096, %v4526
    %v4531 = vld [vmem:[%s6] sm:$0x1]
    %v4533 = vlaneseq
    %v4534 = vshrl.u32 %v4533, 7
    %v4535 = vsub.s32 0, %v4534
    %v4536 = vrot.slane %v4531, %v4535
    %v4538 = vadd.f32 %v4529, %v4536
    %v4539 = vadd.f32 %v4530, %v4536
    %4540 = vst [vmem:[#allocation10] sm:$0xff] %v4538
    %4541 = vst [vmem:[#allocation10 + $0x8] sm:$0xff] %v4539
    // Predicated region
    $region46: #{tpu_custom_call.1} parent=1 // pred_check
      _
    $region47: #{tpu_custom_call.1} parent=1 // pred_check_branch
      %4543 = sbr.rel (0) target = $region49
    $region48: #{tpu_custom_call.1} parent=1 // pred_region
      %s4545 = ssub.s32 256, 256
      %4546 = vsyncadd [#allocation4], %s4545
      %s4547 = sshll.u32 [#allocation10], 4
      %s4548 = int_to_ptr.vmem [resolvable:$true] %s4547
      %4553 = dma.vmem_to_hbm [thread:$0]  %s4548, 256, %s7, [#allocation4], 128, 128, 8
    $region49: #{tpu_custom_call.1} parent=1 // pred_fallthru
      _
    // Predicated region
    $region50: #{tpu_custom_call.1} parent=1 // pred_check
      _
    $region51: #{tpu_custom_call.1} parent=1 // pred_check_branch
      %4555 = sbr.rel (0) target = $region53
    $region52: #{tpu_custom_call.1} parent=1 // pred_region
      %4556 = dma.done [#allocation4], 256
    $region53: #{tpu_custom_call.1} parent=1 // pred_fallthru
      _
    %4557 = vsyncpa [#allocation3], 1
    %4558 = vsyncpa [#allocation6], 1
    %4559 = vsyncpa [#allocation9], 1
    %4560 = vsyncpa [#allocation4], 1

</llo_original>
